<compile_context>
chip_gen: v7x
topology: tpu7x:2x2x1
jax: 0.10.0
libtpu: 0.0.40
codegen_flags: <defaults>
</compile_context>

<pallas_src>
import functools

import jax
import jax.numpy as jnp
from jax.experimental import pallas as pl
from jax.experimental.pallas import tpu as pltpu


def _layernorm_kernel(x_ref, alpha_ref, bias_ref, o_ref, *, eps, n_features):
    # x_ref: (tile_rows, f_pad)   alpha_ref/bias_ref: (1, f_pad)
    x = x_ref[...].astype(jnp.float32)
    n = jnp.float32(n_features)

    # One-pass reduction: sum and sum-of-squares together (padded lanes are 0).
    s = jnp.sum(x, axis=-1, keepdims=True)
    sq = jnp.sum(x * x, axis=-1, keepdims=True)
    mean = s / n
    # Unbiased variance (ddof=1), matching torch.std default.
    var = (sq - n * mean * mean) / (n - jnp.float32(1.0))
    var = jnp.maximum(var, jnp.float32(0.0))  # guard tiny negative from cancellation
    std = jnp.sqrt(var)

    # Per-row reciprocal on the (tile_rows, 1) column (EUP slot), then broadcast-mul.
    inv = pl.reciprocal(std + jnp.float32(eps), approx=False)

    alpha = alpha_ref[...].astype(jnp.float32)
    bias = bias_ref[...].astype(jnp.float32)
    out = (x - mean) * inv * alpha + bias
    o_ref[...] = out.astype(o_ref.dtype)


def _sublane_multiple(dtype):
    itemsize = jnp.dtype(dtype).itemsize
    if itemsize == 1:
        return 32
    if itemsize == 2:
        return 16
    return 8


def layer_norm_pallas(x2d, alpha, bias, *, eps=1e-6, max_block_bytes=4 * 1024 * 1024):
    """x2d: (rows, features) -> (rows, features), torch-style LayerNorm over last dim."""
    rows, features = x2d.shape
    assert features > 1, "features must be > 1 (unbiased std divides by N-1)"

    # --- Lane-dense feature padding (multiple of 128). ---
    f_pad = pl.cdiv(features, 128) * 128

    # --- Row tiling: largest aligned tile <= 1024 rows fitting the per-block budget. ---
    sub = _sublane_multiple(x2d.dtype)
    bytes_per_row = f_pad * 4  # kernel computes in f32
    tile_rows = max(sub, min(1024, max_block_bytes // bytes_per_row))
    tile_rows = max(sub, (tile_rows // sub) * sub)

    r_pad = pl.cdiv(rows, tile_rows) * tile_rows

    # --- Pad inputs (zeros are neutral for sum / sumsq; padded outputs sliced off). ---
    if r_pad != rows or f_pad != features:
        x_p = jnp.pad(x2d, ((0, r_pad - rows), (0, f_pad - features)))
    else:
        x_p = x2d
    alpha2d = jnp.pad(alpha.reshape(1, features), ((0, 0), (0, f_pad - features)))
    bias2d = jnp.pad(bias.reshape(1, features), ((0, 0), (0, f_pad - features)))

    kernel = functools.partial(_layernorm_kernel, eps=eps, n_features=features)
    out_p = pl.pallas_call(
        kernel,
        out_shape=jax.ShapeDtypeStruct((r_pad, f_pad), x2d.dtype),
        grid_spec=pltpu.PrefetchScalarGridSpec(
            num_scalar_prefetch=0,
            grid=(r_pad // tile_rows,),
            in_specs=[
                pl.BlockSpec((tile_rows, f_pad), lambda i: (i, 0)),
                pl.BlockSpec((1, f_pad), lambda i: (0, 0)),
                pl.BlockSpec((1, f_pad), lambda i: (0, 0)),
            ],
            out_specs=pl.BlockSpec((tile_rows, f_pad), lambda i: (i, 0)),
        ),
        compiler_params=pltpu.CompilerParams(
            dimension_semantics=("parallel",),
            vmem_limit_bytes=64 * 1024 * 1024,
        ),
    )(x_p, alpha2d, bias2d)

    if r_pad != rows or f_pad != features:
        out_p = out_p[:rows, :features]
    return out_p


class Decoder:
    """JAX/Pallas port of the PyTorch Decoder module."""

    def __init__(self, features, layers=()):
        self.features = features
        self.layers = list(layers)  # each: fn(x, encoder_output, src_mask, tgt_mask)
        self.eps = 1e-6
        # nn.Parameter(torch.ones(features)) / nn.Parameter(torch.zeros(features))
        self.alpha = jnp.ones((features,), dtype=jnp.float32)
        self.bias = jnp.zeros((features,), dtype=jnp.float32)

    def __call__(self, x, encoder_output, src_mask, tgt_mask):
        for layer in self.layers:
            x = layer(x, encoder_output, src_mask, tgt_mask)
        b, s, f = x.shape
        out2d = layer_norm_pallas(
            x.reshape(b * s, f), self.alpha, self.bias, eps=self.eps
        )
        return out2d.reshape(b, s, f)


if __name__ == "__main__":
    batch, seq, features = 2, 8, 32
    key = jax.random.PRNGKey(0)
    kx, ke = jax.random.split(key)
    x = jax.random.normal(kx, (batch, seq, features), dtype=jnp.float32)
    encoder_output = jax.random.normal(ke, (batch, seq, features), dtype=jnp.float32)
    src_mask = jnp.ones((batch, 1, 1, seq), dtype=jnp.float32)
    tgt_mask = jnp.ones((batch, 1, seq, seq), dtype=jnp.float32)

    decoder = Decoder(features, layers=[])
    out = decoder(x, encoder_output, src_mask, tgt_mask)
    out = jax.block_until_ready(out)

    # Reference in plain JAX (torch-std semantics: unbiased, eps added to std).
    mean = x.mean(axis=-1, keepdims=True)
    std = jnp.sqrt(((x - mean) ** 2).sum(axis=-1, keepdims=True) / (features - 1))
    ref = decoder.alpha * (x - mean) / (std + decoder.eps) + decoder.bias

    assert out.shape == (batch, seq, features)
    assert jnp.max(jnp.abs(out - ref)) < 1e-4, "mismatch vs reference"

    print("KERNEL_OK")
</pallas_src>

<mosaic_0001>
module attributes {stable_mosaic.version = 11 : i64} {
  func.func @_layernorm_kernel(%arg0: i32, %arg1: memref<1024x128xf32, #tpu.memory_space<vmem>>, %arg2: memref<1x128xf32, #tpu.memory_space<vmem>>, %arg3: memref<1x128xf32, #tpu.memory_space<vmem>>, %arg4: memref<1024x128xf32, #tpu.memory_space<vmem>>) attributes {dimension_semantics = [#tpu.dimension_semantics<parallel>], iteration_bounds = array<i64: 1>, scalar_prefetch = 0 : i64, scratch_operands = 0 : i64, tpu.core_type = #tpu.core_type<tc>, window_params = [{transform_indices = @transform_0, window_bounds = array<i64: 1024, 128>}, {pipeline_mode = #tpu.pipeline_mode<synchronous>, transform_indices = @transform_1, window_bounds = array<i64: 1, 128>}, {pipeline_mode = #tpu.pipeline_mode<synchronous>, transform_indices = @transform_2, window_bounds = array<i64: 1, 128>}, {transform_indices = @transform_3, window_bounds = array<i64: 1024, 128>}]} {
    %c0 = arith.constant 0 : index
    %c0_0 = arith.constant 0 : index
    %0 = vector.load %arg1[%c0, %c0_0] : memref<1024x128xf32, #tpu.memory_space<vmem>>, vector<1024x128xf32>
    %cst = arith.constant dense<0.000000e+00> : vector<1024xf32>
    %1 = vector.multi_reduction <add>, %0, %cst [1] : vector<1024x128xf32> to vector<1024xf32>
    %2 = vector.shape_cast %1 : vector<1024xf32> to vector<1024x1xf32>
    %3 = arith.mulf %0, %0 : vector<1024x128xf32>
    %cst_1 = arith.constant dense<0.000000e+00> : vector<1024xf32>
    %4 = vector.multi_reduction <add>, %3, %cst_1 [1] : vector<1024x128xf32> to vector<1024xf32>
    %5 = vector.shape_cast %4 : vector<1024xf32> to vector<1024x1xf32>
    %cst_2 = arith.constant 3.200000e+01 : f32
    %6 = vector.broadcast %cst_2 : f32 to vector<1024x1xf32>
    %7 = arith.divf %2, %6 : vector<1024x1xf32>
    %cst_3 = arith.constant 3.200000e+01 : f32
    %8 = vector.broadcast %cst_3 : f32 to vector<1024x1xf32>
    %9 = arith.mulf %8, %7 : vector<1024x1xf32>
    %10 = arith.mulf %9, %7 : vector<1024x1xf32>
    %11 = arith.subf %5, %10 : vector<1024x1xf32>
    %cst_4 = arith.constant 3.200000e+01 : f32
    %cst_5 = arith.constant 1.000000e+00 : f32
    %12 = arith.subf %cst_4, %cst_5 : f32
    %13 = vector.broadcast %12 : f32 to vector<1024x1xf32>
    %14 = arith.divf %11, %13 : vector<1024x1xf32>
    %cst_6 = arith.constant 0.000000e+00 : f32
    %15 = vector.broadcast %cst_6 : f32 to vector<1024x1xf32>
    %16 = arith.maximumf %14, %15 : vector<1024x1xf32>
    %17 = math.sqrt %16 : vector<1024x1xf32>
    %cst_7 = arith.constant 9.99999997E-7 : f32
    %18 = vector.broadcast %cst_7 : f32 to vector<1024x1xf32>
    %19 = arith.addf %17, %18 : vector<1024x1xf32>
    %20 = tpu.reciprocal %19 : vector<1024x1xf32> -> vector<1024x1xf32>
    %c0_8 = arith.constant 0 : index
    %c0_9 = arith.constant 0 : index
    %21 = vector.load %arg2[%c0_8, %c0_9] : memref<1x128xf32, #tpu.memory_space<vmem>>, vector<1x128xf32>
    %c0_10 = arith.constant 0 : index
    %c0_11 = arith.constant 0 : index
    %22 = vector.load %arg3[%c0_10, %c0_11] : memref<1x128xf32, #tpu.memory_space<vmem>>, vector<1x128xf32>
    %23 = vector.broadcast %7 : vector<1024x1xf32> to vector<1024x128xf32>
    %24 = arith.subf %0, %23 : vector<1024x128xf32>
    %25 = vector.broadcast %20 : vector<1024x1xf32> to vector<1024x128xf32>
    %26 = arith.mulf %24, %25 : vector<1024x128xf32>
    %27 = vector.broadcast %21 : vector<1x128xf32> to vector<1024x128xf32>
    %28 = arith.mulf %26, %27 : vector<1024x128xf32>
    %29 = vector.broadcast %22 : vector<1x128xf32> to vector<1024x128xf32>
    %30 = arith.addf %28, %29 : vector<1024x128xf32>
    %c0_12 = arith.constant 0 : index
    %c0_13 = arith.constant 0 : index
    %31 = vector.load %arg4[%c0_12, %c0_13] : memref<1024x128xf32, #tpu.memory_space<vmem>>, vector<1024x128xf32>
    tpu.vector_store %arg4[%c0_12, %c0_13], %30 {strides = array<i32>} : memref<1024x128xf32, #tpu.memory_space<vmem>>, vector<1024x128xf32>,
    return
  }
  func.func @transform_0(%arg0: i32) -> (i32, i32) {
    %c0_i32 = arith.constant 0 : i32
    %c0_i32_0 = arith.constant 0 : i32
    return %arg0, %c0_i32 : i32, i32
  }
  func.func @transform_1(%arg0: i32) -> (i32, i32) {
    %c0_i32 = arith.constant 0 : i32
    %c0_i32_0 = arith.constant 0 : i32
    %c0_i32_1 = arith.constant 0 : i32
    return %c0_i32, %c0_i32_0 : i32, i32
  }
  func.func @transform_2(%arg0: i32) -> (i32, i32) {
    %c0_i32 = arith.constant 0 : i32
    %c0_i32_0 = arith.constant 0 : i32
    %c0_i32_1 = arith.constant 0 : i32
    return %c0_i32, %c0_i32_0 : i32, i32
  }
  func.func @transform_3(%arg0: i32) -> (i32, i32) {
    %c0_i32 = arith.constant 0 : i32
    %c0_i32_0 = arith.constant 0 : i32
    return %arg0, %c0_i32 : i32, i32
  }
}

</mosaic_0001>

<llo_original>
// kernel: tpu_custom_call.1
$region0: #{tpu_custom_call.1}
  #allocation0 [shape = 'u32[]', space=smem, size = 0x4, offset = 0x4, fixed_abs, tag = 'smem constant byte address 0x4 - core index']
  #allocation1 [shape = 'u32[144,128]{1,0:T(1,128)}', space=vmem, size = 0x12000, scoped, tag = 'internal scratch']
  %s0 = inlined_call_operand.hbm [shape: f32[1024,128], index: 0, kind: input, shape index: {}]
  %s1 = inlined_call_operand.hbm [shape: f32[1,128], index: 1, kind: input, shape index: {}]
  %s2 = inlined_call_operand.hbm [shape: f32[1,128], index: 2, kind: input, shape index: {}]
  %s3 = inlined_call_operand.hbm [shape: f32[1024,128], index: 3, kind: output, shape index: {}]
  %s4 = sld [smem:[#allocation0]]
  $region34: #{tpu_custom_call.1} parent=0
    _
  %s6 = ssub.s32 1, %s4
  %s7 = scalar_select 0, %s6, %s4
  $region1: #{tpu_custom_call.1} parent=0
    #allocation2 [shape = 'u8[524288]{0}', space=vmem, size = 0x80000, scoped, tag = 'input window, operand 0, single buffered']
    #allocation3 [shape = 's32[1]{0}', space=sflag, size = 0x4, scoped, tag = 'scoped memory for tpu_custom_call.1']
    #allocation4 [shape = 's32[1]{0}', space=sflag, size = 0x4, scoped, tag = 'scoped memory for tpu_custom_call.1']
    #allocation5 [shape = 'u8[512]{0}', space=vmem, size = 0x400, scoped, tag = 'input window, operand 1, single buffered']
    #allocation6 [shape = 's32[1]{0}', space=sflag, size = 0x4, scoped, tag = 'scoped memory for tpu_custom_call.1']
    #allocation7 [shape = 'u8[512]{0}', space=vmem, size = 0x400, scoped, tag = 'input window, operand 2, single buffered']
    #allocation8 [shape = 'u8[524288]{0}', space=vmem, size = 0x80000, scoped, tag = 'output window, operand 0, single buffered']
    %8 = vsyncpa [#allocation3], 0
    %9 = vsyncpa [#allocation6], 0
    %10 = vsyncpa [#allocation4], 0
    // Predicated region
    $region2: #{tpu_custom_call.1} parent=1 // pred_check
      _
    $region3: #{tpu_custom_call.1} parent=1 // pred_check_branch
      %12 = sbr.rel (0) target = $region5
    $region4: #{tpu_custom_call.1} parent=1 // pred_region
      %s14 = ssub.s32 16384, 16384
      %15 = vsyncadd [#allocation3], %s14
      %s16 = sshll.u32 [#allocation2], 4
      %s17 = int_to_ptr.vmem [resolvable:$true] %s16
      %22 = dma.hbm_to_vmem [thread:$0]  %s0, 16384, %s17, [#allocation3], 128, 128, 8
    $region5: #{tpu_custom_call.1} parent=1 // pred_fallthru
      _
    // Predicated region
    $region6: #{tpu_custom_call.1} parent=1 // pred_check
      _
    $region7: #{tpu_custom_call.1} parent=1 // pred_check_branch
      %24 = sbr.rel (0) target = $region9
    $region8: #{tpu_custom_call.1} parent=1 // pred_region
      %s26 = ssub.s32 16, 16
      %27 = vsyncadd [#allocation6], %s26
      %s29 = sshll.u32 [#allocation5], 4
      %s30 = int_to_ptr.vmem [resolvable:$true] %s29
      %32 = dma.hbm_to_vmem [thread:$0]  %s1, 16, %s30, [#allocation6]
    $region9: #{tpu_custom_call.1} parent=1 // pred_fallthru
      _
    // Predicated region
    $region10: #{tpu_custom_call.1} parent=1 // pred_check
      _
    $region11: #{tpu_custom_call.1} parent=1 // pred_check_branch
      %34 = sbr.rel (0) target = $region13
    $region12: #{tpu_custom_call.1} parent=1 // pred_region
      %s36 = ssub.s32 16, 16
      %37 = vsyncadd [#allocation6], %s36
      %s39 = sshll.u32 [#allocation7], 4
      %s40 = int_to_ptr.vmem [resolvable:$true] %s39
      %42 = dma.hbm_to_vmem [thread:$0]  %s2, 16, %s40, [#allocation6]
    $region13: #{tpu_custom_call.1} parent=1 // pred_fallthru
      _
    // Predicated region
    $region14: #{tpu_custom_call.1} parent=1 // pred_check
      _
    $region15: #{tpu_custom_call.1} parent=1 // pred_check_branch
      %44 = sbr.rel (0) target = $region17
    $region16: #{tpu_custom_call.1} parent=1 // pred_region
      %45 = dma.done [#allocation3], 16384
    $region17: #{tpu_custom_call.1} parent=1 // pred_fallthru
      _
    // Predicated region
    $region18: #{tpu_custom_call.1} parent=1 // pred_check
      _
    $region19: #{tpu_custom_call.1} parent=1 // pred_check_branch
      %47 = sbr.rel (0) target = $region21
    $region20: #{tpu_custom_call.1} parent=1 // pred_region
      %48 = dma.done [#allocation6], 16
    $region21: #{tpu_custom_call.1} parent=1 // pred_fallthru
      _
    // Predicated region
    $region22: #{tpu_custom_call.1} parent=1 // pred_check
      _
    $region23: #{tpu_custom_call.1} parent=1 // pred_check_branch
      %50 = sbr.rel (0) target = $region25
    $region24: #{tpu_custom_call.1} parent=1 // pred_region
      %51 = dma.done [#allocation6], 16
    $region25: #{tpu_custom_call.1} parent=1 // pred_fallthru
      _
    %v52 = vld [vmem:[#allocation2] sm:$0xff]
    %v53 = vld [vmem:[#allocation2 + $0x8] sm:$0xff]
    %v54 = vld [vmem:[#allocation2 + $0x10] sm:$0xff]
    %v55 = vld [vmem:[#allocation2 + $0x18] sm:$0xff]
    %v56 = vld [vmem:[#allocation2 + $0x20] sm:$0xff]
    %v57 = vld [vmem:[#allocation2 + $0x28] sm:$0xff]
    %v58 = vld [vmem:[#allocation2 + $0x30] sm:$0xff]
    %v59 = vld [vmem:[#allocation2 + $0x38] sm:$0xff]
    %v60 = vld [vmem:[#allocation2 + $0x40] sm:$0xff]
    %v61 = vld [vmem:[#allocation2 + $0x48] sm:$0xff]
    %v62 = vld [vmem:[#allocation2 + $0x50] sm:$0xff]
    %v63 = vld [vmem:[#allocation2 + $0x58] sm:$0xff]
    %v64 = vld [vmem:[#allocation2 + $0x60] sm:$0xff]
    %v65 = vld [vmem:[#allocation2 + $0x68] sm:$0xff]
    %v66 = vld [vmem:[#allocation2 + $0x70] sm:$0xff]
    %v67 = vld [vmem:[#allocation2 + $0x78] sm:$0xff]
    %v68 = vld [vmem:[#allocation2 + $0x80] sm:$0xff]
    %v69 = vld [vmem:[#allocation2 + $0x88] sm:$0xff]
    %v70 = vld [vmem:[#allocation2 + $0x90] sm:$0xff]
    %v71 = vld [vmem:[#allocation2 + $0x98] sm:$0xff]
    %v72 = vld [vmem:[#allocation2 + $0xa0] sm:$0xff]
    %v73 = vld [vmem:[#allocation2 + $0xa8] sm:$0xff]
    %v74 = vld [vmem:[#allocation2 + $0xb0] sm:$0xff]
    %v75 = vld [vmem:[#allocation2 + $0xb8] sm:$0xff]
    %v76 = vld [vmem:[#allocation2 + $0xc0] sm:$0xff]
    %v77 = vld [vmem:[#allocation2 + $0xc8] sm:$0xff]
    %v78 = vld [vmem:[#allocation2 + $0xd0] sm:$0xff]
    %v79 = vld [vmem:[#allocation2 + $0xd8] sm:$0xff]
    %v80 = vld [vmem:[#allocation2 + $0xe0] sm:$0xff]
    %v81 = vld [vmem:[#allocation2 + $0xe8] sm:$0xff]
    %v82 = vld [vmem:[#allocation2 + $0xf0] sm:$0xff]
    %v83 = vld [vmem:[#allocation2 + $0xf8] sm:$0xff]
    %v84 = vld [vmem:[#allocation2 + $0x100] sm:$0xff]
    %v85 = vld [vmem:[#allocation2 + $0x108] sm:$0xff]
    %v86 = vld [vmem:[#allocation2 + $0x110] sm:$0xff]
    %v87 = vld [vmem:[#allocation2 + $0x118] sm:$0xff]
    %v88 = vld [vmem:[#allocation2 + $0x120] sm:$0xff]
    %v89 = vld [vmem:[#allocation2 + $0x128] sm:$0xff]
    %v90 = vld [vmem:[#allocation2 + $0x130] sm:$0xff]
    %v91 = vld [vmem:[#allocation2 + $0x138] sm:$0xff]
    %v92 = vld [vmem:[#allocation2 + $0x140] sm:$0xff]
    %v93 = vld [vmem:[#allocation2 + $0x148] sm:$0xff]
    %v94 = vld [vmem:[#allocation2 + $0x150] sm:$0xff]
    %v95 = vld [vmem:[#allocation2 + $0x158] sm:$0xff]
    %v96 = vld [vmem:[#allocation2 + $0x160] sm:$0xff]
    %v97 = vld [vmem:[#allocation2 + $0x168] sm:$0xff]
    %v98 = vld [vmem:[#allocation2 + $0x170] sm:$0xff]
    %v99 = vld [vmem:[#allocation2 + $0x178] sm:$0xff]
    %v100 = vld [vmem:[#allocation2 + $0x180] sm:$0xff]
    %v101 = vld [vmem:[#allocation2 + $0x188] sm:$0xff]
    %v102 = vld [vmem:[#allocation2 + $0x190] sm:$0xff]
    %v103 = vld [vmem:[#allocation2 + $0x198] sm:$0xff]
    %v104 = vld [vmem:[#allocation2 + $0x1a0] sm:$0xff]
    %v105 = vld [vmem:[#allocation2 + $0x1a8] sm:$0xff]
    %v106 = vld [vmem:[#allocation2 + $0x1b0] sm:$0xff]
    %v107 = vld [vmem:[#allocation2 + $0x1b8] sm:$0xff]
    %v108 = vld [vmem:[#allocation2 + $0x1c0] sm:$0xff]
    %v109 = vld [vmem:[#allocation2 + $0x1c8] sm:$0xff]
    %v110 = vld [vmem:[#allocation2 + $0x1d0] sm:$0xff]
    %v111 = vld [vmem:[#allocation2 + $0x1d8] sm:$0xff]
    %v112 = vld [vmem:[#allocation2 + $0x1e0] sm:$0xff]
    %v113 = vld [vmem:[#allocation2 + $0x1e8] sm:$0xff]
    %v114 = vld [vmem:[#allocation2 + $0x1f0] sm:$0xff]
    %v115 = vld [vmem:[#allocation2 + $0x1f8] sm:$0xff]
    %v116 = vld [vmem:[#allocation2 + $0x200] sm:$0xff]
    %v117 = vld [vmem:[#allocation2 + $0x208] sm:$0xff]
    %v118 = vld [vmem:[#allocation2 + $0x210] sm:$0xff]
    %v119 = vld [vmem:[#allocation2 + $0x218] sm:$0xff]
    %v120 = vld [vmem:[#allocation2 + $0x220] sm:$0xff]
    %v121 = vld [vmem:[#allocation2 + $0x228] sm:$0xff]
    %v122 = vld [vmem:[#allocation2 + $0x230] sm:$0xff]
    %v123 = vld [vmem:[#allocation2 + $0x238] sm:$0xff]
    %v124 = vld [vmem:[#allocation2 + $0x240] sm:$0xff]
    %v125 = vld [vmem:[#allocation2 + $0x248] sm:$0xff]
    %v126 = vld [vmem:[#allocation2 + $0x250] sm:$0xff]
    %v127 = vld [vmem:[#allocation2 + $0x258] sm:$0xff]
    %v128 = vld [vmem:[#allocation2 + $0x260] sm:$0xff]
    %v129 = vld [vmem:[#allocation2 + $0x268] sm:$0xff]
    %v130 = vld [vmem:[#allocation2 + $0x270] sm:$0xff]
    %v131 = vld [vmem:[#allocation2 + $0x278] sm:$0xff]
    %v132 = vld [vmem:[#allocation2 + $0x280] sm:$0xff]
    %v133 = vld [vmem:[#allocation2 + $0x288] sm:$0xff]
    %v134 = vld [vmem:[#allocation2 + $0x290] sm:$0xff]
    %v135 = vld [vmem:[#allocation2 + $0x298] sm:$0xff]
    %v136 = vld [vmem:[#allocation2 + $0x2a0] sm:$0xff]
    %v137 = vld [vmem:[#allocation2 + $0x2a8] sm:$0xff]
    %v138 = vld [vmem:[#allocation2 + $0x2b0] sm:$0xff]
    %v139 = vld [vmem:[#allocation2 + $0x2b8] sm:$0xff]
    %v140 = vld [vmem:[#allocation2 + $0x2c0] sm:$0xff]
    %v141 = vld [vmem:[#allocation2 + $0x2c8] sm:$0xff]
    %v142 = vld [vmem:[#allocation2 + $0x2d0] sm:$0xff]
    %v143 = vld [vmem:[#allocation2 + $0x2d8] sm:$0xff]
    %v144 = vld [vmem:[#allocation2 + $0x2e0] sm:$0xff]
    %v145 = vld [vmem:[#allocation2 + $0x2e8] sm:$0xff]
    %v146 = vld [vmem:[#allocation2 + $0x2f0] sm:$0xff]
    %v147 = vld [vmem:[#allocation2 + $0x2f8] sm:$0xff]
    %v148 = vld [vmem:[#allocation2 + $0x300] sm:$0xff]
    %v149 = vld [vmem:[#allocation2 + $0x308] sm:$0xff]
    %v150 = vld [vmem:[#allocation2 + $0x310] sm:$0xff]
    %v151 = vld [vmem:[#allocation2 + $0x318] sm:$0xff]
    %v152 = vld [vmem:[#allocation2 + $0x320] sm:$0xff]
    %v153 = vld [vmem:[#allocation2 + $0x328] sm:$0xff]
    %v154 = vld [vmem:[#allocation2 + $0x330] sm:$0xff]
    %v155 = vld [vmem:[#allocation2 + $0x338] sm:$0xff]
    %v156 = vld [vmem:[#allocation2 + $0x340] sm:$0xff]
    %v157 = vld [vmem:[#allocation2 + $0x348] sm:$0xff]
    %v158 = vld [vmem:[#allocation2 + $0x350] sm:$0xff]
    %v159 = vld [vmem:[#allocation2 + $0x358] sm:$0xff]
    %v160 = vld [vmem:[#allocation2 + $0x360] sm:$0xff]
    %v161 = vld [vmem:[#allocation2 + $0x368] sm:$0xff]
    %v162 = vld [vmem:[#allocation2 + $0x370] sm:$0xff]
    %v163 = vld [vmem:[#allocation2 + $0x378] sm:$0xff]
    %v164 = vld [vmem:[#allocation2 + $0x380] sm:$0xff]
    %v165 = vld [vmem:[#allocation2 + $0x388] sm:$0xff]
    %v166 = vld [vmem:[#allocation2 + $0x390] sm:$0xff]
    %v167 = vld [vmem:[#allocation2 + $0x398] sm:$0xff]
    %v168 = vld [vmem:[#allocation2 + $0x3a0] sm:$0xff]
    %v169 = vld [vmem:[#allocation2 + $0x3a8] sm:$0xff]
    %v170 = vld [vmem:[#allocation2 + $0x3b0] sm:$0xff]
    %v171 = vld [vmem:[#allocation2 + $0x3b8] sm:$0xff]
    %v172 = vld [vmem:[#allocation2 + $0x3c0] sm:$0xff]
    %v173 = vld [vmem:[#allocation2 + $0x3c8] sm:$0xff]
    %v174 = vld [vmem:[#allocation2 + $0x3d0] sm:$0xff]
    %v175 = vld [vmem:[#allocation2 + $0x3d8] sm:$0xff]
    %v176 = vld [vmem:[#allocation2 + $0x3e0] sm:$0xff]
    %v177 = vld [vmem:[#allocation2 + $0x3e8] sm:$0xff]
    %v178 = vld [vmem:[#allocation2 + $0x3f0] sm:$0xff]
    %v179 = vld [vmem:[#allocation2 + $0x3f8] sm:$0xff]
    %180 = vadd.xlane.f32.xlu0 %v52
    %v181 = vpop.xlane.xlu0 %180
    %182 = vadd.xlane.f32.xlu0 %v53
    %v183 = vpop.xlane.xlu0 %182
    %184 = vadd.xlane.f32.xlu0 %v54
    %v185 = vpop.xlane.xlu0 %184
    %186 = vadd.xlane.f32.xlu0 %v55
    %v187 = vpop.xlane.xlu0 %186
    %188 = vadd.xlane.f32.xlu0 %v56
    %v189 = vpop.xlane.xlu0 %188
    %190 = vadd.xlane.f32.xlu0 %v57
    %v191 = vpop.xlane.xlu0 %190
    %192 = vadd.xlane.f32.xlu0 %v58
    %v193 = vpop.xlane.xlu0 %192
    %194 = vadd.xlane.f32.xlu0 %v59
    %v195 = vpop.xlane.xlu0 %194
    %196 = vadd.xlane.f32.xlu0 %v60
    %v197 = vpop.xlane.xlu0 %196
    %198 = vadd.xlane.f32.xlu0 %v61
    %v199 = vpop.xlane.xlu0 %198
    %200 = vadd.xlane.f32.xlu0 %v62
    %v201 = vpop.xlane.xlu0 %200
    %202 = vadd.xlane.f32.xlu0 %v63
    %v203 = vpop.xlane.xlu0 %202
    %204 = vadd.xlane.f32.xlu0 %v64
    %v205 = vpop.xlane.xlu0 %204
    %206 = vadd.xlane.f32.xlu0 %v65
    %v207 = vpop.xlane.xlu0 %206
    %208 = vadd.xlane.f32.xlu0 %v66
    %v209 = vpop.xlane.xlu0 %208
    %210 = vadd.xlane.f32.xlu0 %v67
    %v211 = vpop.xlane.xlu0 %210
    %212 = vadd.xlane.f32.xlu0 %v68
    %v213 = vpop.xlane.xlu0 %212
    %214 = vadd.xlane.f32.xlu0 %v69
    %v215 = vpop.xlane.xlu0 %214
    %216 = vadd.xlane.f32.xlu0 %v70
    %v217 = vpop.xlane.xlu0 %216
    %218 = vadd.xlane.f32.xlu0 %v71
    %v219 = vpop.xlane.xlu0 %218
    %220 = vadd.xlane.f32.xlu0 %v72
    %v221 = vpop.xlane.xlu0 %220
    %222 = vadd.xlane.f32.xlu0 %v73
    %v223 = vpop.xlane.xlu0 %222
    %224 = vadd.xlane.f32.xlu0 %v74
    %v225 = vpop.xlane.xlu0 %224
    %226 = vadd.xlane.f32.xlu0 %v75
    %v227 = vpop.xlane.xlu0 %226
    %228 = vadd.xlane.f32.xlu0 %v76
    %v229 = vpop.xlane.xlu0 %228
    %230 = vadd.xlane.f32.xlu0 %v77
    %v231 = vpop.xlane.xlu0 %230
    %232 = vadd.xlane.f32.xlu0 %v78
    %v233 = vpop.xlane.xlu0 %232
    %234 = vadd.xlane.f32.xlu0 %v79
    %v235 = vpop.xlane.xlu0 %234
    %236 = vadd.xlane.f32.xlu0 %v80
    %v237 = vpop.xlane.xlu0 %236
    %238 = vadd.xlane.f32.xlu0 %v81
    %v239 = vpop.xlane.xlu0 %238
    %240 = vadd.xlane.f32.xlu0 %v82
    %v241 = vpop.xlane.xlu0 %240
    %242 = vadd.xlane.f32.xlu0 %v83
    %v243 = vpop.xlane.xlu0 %242
    %244 = vadd.xlane.f32.xlu0 %v84
    %v245 = vpop.xlane.xlu0 %244
    %246 = vadd.xlane.f32.xlu0 %v85
    %v247 = vpop.xlane.xlu0 %246
    %248 = vadd.xlane.f32.xlu0 %v86
    %v249 = vpop.xlane.xlu0 %248
    %250 = vadd.xlane.f32.xlu0 %v87
    %v251 = vpop.xlane.xlu0 %250
    %252 = vadd.xlane.f32.xlu0 %v88
    %v253 = vpop.xlane.xlu0 %252
    %254 = vadd.xlane.f32.xlu0 %v89
    %v255 = vpop.xlane.xlu0 %254
    %256 = vadd.xlane.f32.xlu0 %v90
    %v257 = vpop.xlane.xlu0 %256
    %258 = vadd.xlane.f32.xlu0 %v91
    %v259 = vpop.xlane.xlu0 %258
    %260 = vadd.xlane.f32.xlu0 %v92
    %v261 = vpop.xlane.xlu0 %260
    %262 = vadd.xlane.f32.xlu0 %v93
    %v263 = vpop.xlane.xlu0 %262
    %264 = vadd.xlane.f32.xlu0 %v94
    %v265 = vpop.xlane.xlu0 %264
    %266 = vadd.xlane.f32.xlu0 %v95
    %v267 = vpop.xlane.xlu0 %266
    %268 = vadd.xlane.f32.xlu0 %v96
    %v269 = vpop.xlane.xlu0 %268
    %270 = vadd.xlane.f32.xlu0 %v97
    %v271 = vpop.xlane.xlu0 %270
    %272 = vadd.xlane.f32.xlu0 %v98
    %v273 = vpop.xlane.xlu0 %272
    %274 = vadd.xlane.f32.xlu0 %v99
    %v275 = vpop.xlane.xlu0 %274
    %276 = vadd.xlane.f32.xlu0 %v100
    %v277 = vpop.xlane.xlu0 %276
    %278 = vadd.xlane.f32.xlu0 %v101
    %v279 = vpop.xlane.xlu0 %278
    %280 = vadd.xlane.f32.xlu0 %v102
    %v281 = vpop.xlane.xlu0 %280
    %282 = vadd.xlane.f32.xlu0 %v103
    %v283 = vpop.xlane.xlu0 %282
    %284 = vadd.xlane.f32.xlu0 %v104
    %v285 = vpop.xlane.xlu0 %284
    %286 = vadd.xlane.f32.xlu0 %v105
    %v287 = vpop.xlane.xlu0 %286
    %288 = vadd.xlane.f32.xlu0 %v106
    %v289 = vpop.xlane.xlu0 %288
    %290 = vadd.xlane.f32.xlu0 %v107
    %v291 = vpop.xlane.xlu0 %290
    %292 = vadd.xlane.f32.xlu0 %v108
    %v293 = vpop.xlane.xlu0 %292
    %294 = vadd.xlane.f32.xlu0 %v109
    %v295 = vpop.xlane.xlu0 %294
    %296 = vadd.xlane.f32.xlu0 %v110
    %v297 = vpop.xlane.xlu0 %296
    %298 = vadd.xlane.f32.xlu0 %v111
    %v299 = vpop.xlane.xlu0 %298
    %300 = vadd.xlane.f32.xlu0 %v112
    %v301 = vpop.xlane.xlu0 %300
    %302 = vadd.xlane.f32.xlu0 %v113
    %v303 = vpop.xlane.xlu0 %302
    %304 = vadd.xlane.f32.xlu0 %v114
    %v305 = vpop.xlane.xlu0 %304
    %306 = vadd.xlane.f32.xlu0 %v115
    %v307 = vpop.xlane.xlu0 %306
    %308 = vadd.xlane.f32.xlu0 %v116
    %v309 = vpop.xlane.xlu0 %308
    %310 = vadd.xlane.f32.xlu0 %v117
    %v311 = vpop.xlane.xlu0 %310
    %312 = vadd.xlane.f32.xlu0 %v118
    %v313 = vpop.xlane.xlu0 %312
    %314 = vadd.xlane.f32.xlu0 %v119
    %v315 = vpop.xlane.xlu0 %314
    %316 = vadd.xlane.f32.xlu0 %v120
    %v317 = vpop.xlane.xlu0 %316
    %318 = vadd.xlane.f32.xlu0 %v121
    %v319 = vpop.xlane.xlu0 %318
    %320 = vadd.xlane.f32.xlu0 %v122
    %v321 = vpop.xlane.xlu0 %320
    %322 = vadd.xlane.f32.xlu0 %v123
    %v323 = vpop.xlane.xlu0 %322
    %324 = vadd.xlane.f32.xlu0 %v124
    %v325 = vpop.xlane.xlu0 %324
    %326 = vadd.xlane.f32.xlu0 %v125
    %v327 = vpop.xlane.xlu0 %326
    %328 = vadd.xlane.f32.xlu0 %v126
    %v329 = vpop.xlane.xlu0 %328
    %330 = vadd.xlane.f32.xlu0 %v127
    %v331 = vpop.xlane.xlu0 %330
    %332 = vadd.xlane.f32.xlu0 %v128
    %v333 = vpop.xlane.xlu0 %332
    %334 = vadd.xlane.f32.xlu0 %v129
    %v335 = vpop.xlane.xlu0 %334
    %336 = vadd.xlane.f32.xlu0 %v130
    %v337 = vpop.xlane.xlu0 %336
    %338 = vadd.xlane.f32.xlu0 %v131
    %v339 = vpop.xlane.xlu0 %338
    %340 = vadd.xlane.f32.xlu0 %v132
    %v341 = vpop.xlane.xlu0 %340
    %342 = vadd.xlane.f32.xlu0 %v133
    %v343 = vpop.xlane.xlu0 %342
    %344 = vadd.xlane.f32.xlu0 %v134
    %v345 = vpop.xlane.xlu0 %344
    %346 = vadd.xlane.f32.xlu0 %v135
    %v347 = vpop.xlane.xlu0 %346
    %348 = vadd.xlane.f32.xlu0 %v136
    %v349 = vpop.xlane.xlu0 %348
    %350 = vadd.xlane.f32.xlu0 %v137
    %v351 = vpop.xlane.xlu0 %350
    %352 = vadd.xlane.f32.xlu0 %v138
    %v353 = vpop.xlane.xlu0 %352
    %354 = vadd.xlane.f32.xlu0 %v139
    %v355 = vpop.xlane.xlu0 %354
    %356 = vadd.xlane.f32.xlu0 %v140
    %v357 = vpop.xlane.xlu0 %356
    %358 = vadd.xlane.f32.xlu0 %v141
    %v359 = vpop.xlane.xlu0 %358
    %360 = vadd.xlane.f32.xlu0 %v142
    %v361 = vpop.xlane.xlu0 %360
    %362 = vadd.xlane.f32.xlu0 %v143
    %v363 = vpop.xlane.xlu0 %362
    %364 = vadd.xlane.f32.xlu0 %v144
    %v365 = vpop.xlane.xlu0 %364
    %366 = vadd.xlane.f32.xlu0 %v145
    %v367 = vpop.xlane.xlu0 %366
    %368 = vadd.xlane.f32.xlu0 %v146
    %v369 = vpop.xlane.xlu0 %368
    %370 = vadd.xlane.f32.xlu0 %v147
    %v371 = vpop.xlane.xlu0 %370
    %372 = vadd.xlane.f32.xlu0 %v148
    %v373 = vpop.xlane.xlu0 %372
    %374 = vadd.xlane.f32.xlu0 %v149
    %v375 = vpop.xlane.xlu0 %374
    %376 = vadd.xlane.f32.xlu0 %v150
    %v377 = vpop.xlane.xlu0 %376
    %378 = vadd.xlane.f32.xlu0 %v151
    %v379 = vpop.xlane.xlu0 %378
    %380 = vadd.xlane.f32.xlu0 %v152
    %v381 = vpop.xlane.xlu0 %380
    %382 = vadd.xlane.f32.xlu0 %v153
    %v383 = vpop.xlane.xlu0 %382
    %384 = vadd.xlane.f32.xlu0 %v154
    %v385 = vpop.xlane.xlu0 %384
    %386 = vadd.xlane.f32.xlu0 %v155
    %v387 = vpop.xlane.xlu0 %386
    %388 = vadd.xlane.f32.xlu0 %v156
    %v389 = vpop.xlane.xlu0 %388
    %390 = vadd.xlane.f32.xlu0 %v157
    %v391 = vpop.xlane.xlu0 %390
    %392 = vadd.xlane.f32.xlu0 %v158
    %v393 = vpop.xlane.xlu0 %392
    %394 = vadd.xlane.f32.xlu0 %v159
    %v395 = vpop.xlane.xlu0 %394
    %396 = vadd.xlane.f32.xlu0 %v160
    %v397 = vpop.xlane.xlu0 %396
    %398 = vadd.xlane.f32.xlu0 %v161
    %v399 = vpop.xlane.xlu0 %398
    %400 = vadd.xlane.f32.xlu0 %v162
    %v401 = vpop.xlane.xlu0 %400
    %402 = vadd.xlane.f32.xlu0 %v163
    %v403 = vpop.xlane.xlu0 %402
    %404 = vadd.xlane.f32.xlu0 %v164
    %v405 = vpop.xlane.xlu0 %404
    %406 = vadd.xlane.f32.xlu0 %v165
    %v407 = vpop.xlane.xlu0 %406
    %408 = vadd.xlane.f32.xlu0 %v166
    %v409 = vpop.xlane.xlu0 %408
    %410 = vadd.xlane.f32.xlu0 %v167
    %v411 = vpop.xlane.xlu0 %410
    %412 = vadd.xlane.f32.xlu0 %v168
    %v413 = vpop.xlane.xlu0 %412
    %414 = vadd.xlane.f32.xlu0 %v169
    %v415 = vpop.xlane.xlu0 %414
    %416 = vadd.xlane.f32.xlu0 %v170
    %v417 = vpop.xlane.xlu0 %416
    %418 = vadd.xlane.f32.xlu0 %v171
    %v419 = vpop.xlane.xlu0 %418
    %420 = vadd.xlane.f32.xlu0 %v172
    %v421 = vpop.xlane.xlu0 %420
    %422 = vadd.xlane.f32.xlu0 %v173
    %v423 = vpop.xlane.xlu0 %422
    %424 = vadd.xlane.f32.xlu0 %v174
    %v425 = vpop.xlane.xlu0 %424
    %426 = vadd.xlane.f32.xlu0 %v175
    %v427 = vpop.xlane.xlu0 %426
    %428 = vadd.xlane.f32.xlu0 %v176
    %v429 = vpop.xlane.xlu0 %428
    %430 = vadd.xlane.f32.xlu0 %v177
    %v431 = vpop.xlane.xlu0 %430
    %432 = vadd.xlane.f32.xlu0 %v178
    %v433 = vpop.xlane.xlu0 %432
    %434 = vadd.xlane.f32.xlu0 %v179
    %v435 = vpop.xlane.xlu0 %434
    %v436 = vmul.f32 %v52, %v52
    %v437 = vmul.f32 %v53, %v53
    %v438 = vmul.f32 %v54, %v54
    %v439 = vmul.f32 %v55, %v55
    %v440 = vmul.f32 %v56, %v56
    %v441 = vmul.f32 %v57, %v57
    %v442 = vmul.f32 %v58, %v58
    %v443 = vmul.f32 %v59, %v59
    %v444 = vmul.f32 %v60, %v60
    %v445 = vmul.f32 %v61, %v61
    %v446 = vmul.f32 %v62, %v62
    %v447 = vmul.f32 %v63, %v63
    %v448 = vmul.f32 %v64, %v64
    %v449 = vmul.f32 %v65, %v65
    %v450 = vmul.f32 %v66, %v66
    %v451 = vmul.f32 %v67, %v67
    %v452 = vmul.f32 %v68, %v68
    %v453 = vmul.f32 %v69, %v69
    %v454 = vmul.f32 %v70, %v70
    %v455 = vmul.f32 %v71, %v71
    %v456 = vmul.f32 %v72, %v72
    %v457 = vmul.f32 %v73, %v73
    %v458 = vmul.f32 %v74, %v74
    %v459 = vmul.f32 %v75, %v75
    %v460 = vmul.f32 %v76, %v76
    %v461 = vmul.f32 %v77, %v77
    %v462 = vmul.f32 %v78, %v78
    %v463 = vmul.f32 %v79, %v79
    %v464 = vmul.f32 %v80, %v80
    %v465 = vmul.f32 %v81, %v81
    %v466 = vmul.f32 %v82, %v82
    %v467 = vmul.f32 %v83, %v83
    %v468 = vmul.f32 %v84, %v84
    %v469 = vmul.f32 %v85, %v85
    %v470 = vmul.f32 %v86, %v86
    %v471 = vmul.f32 %v87, %v87
    %v472 = vmul.f32 %v88, %v88
    %v473 = vmul.f32 %v89, %v89
    %v474 = vmul.f32 %v90, %v90
    %v475 = vmul.f32 %v91, %v91
    %v476 = vmul.f32 %v92, %v92
    %v477 = vmul.f32 %v93, %v93
    %v478 = vmul.f32 %v94, %v94
    %v479 = vmul.f32 %v95, %v95
    %v480 = vmul.f32 %v96, %v96
    %v481 = vmul.f32 %v97, %v97
    %v482 = vmul.f32 %v98, %v98
    %v483 = vmul.f32 %v99, %v99
    %v484 = vmul.f32 %v100, %v100
    %v485 = vmul.f32 %v101, %v101
    %v486 = vmul.f32 %v102, %v102
    %v487 = vmul.f32 %v103, %v103
    %v488 = vmul.f32 %v104, %v104
    %v489 = vmul.f32 %v105, %v105
    %v490 = vmul.f32 %v106, %v106
    %v491 = vmul.f32 %v107, %v107
    %v492 = vmul.f32 %v108, %v108
    %v493 = vmul.f32 %v109, %v109
    %v494 = vmul.f32 %v110, %v110
    %v495 = vmul.f32 %v111, %v111
    %v496 = vmul.f32 %v112, %v112
    %v497 = vmul.f32 %v113, %v113
    %v498 = vmul.f32 %v114, %v114
    %v499 = vmul.f32 %v115, %v115
    %v500 = vmul.f32 %v116, %v116
    %v501 = vmul.f32 %v117, %v117
    %v502 = vmul.f32 %v118, %v118
    %v503 = vmul.f32 %v119, %v119
    %v504 = vmul.f32 %v120, %v120
    %v505 = vmul.f32 %v121, %v121
    %v506 = vmul.f32 %v122, %v122
    %v507 = vmul.f32 %v123, %v123
    %v508 = vmul.f32 %v124, %v124
    %v509 = vmul.f32 %v125, %v125
    %v510 = vmul.f32 %v126, %v126
    %v511 = vmul.f32 %v127, %v127
    %v512 = vmul.f32 %v128, %v128
    %v513 = vmul.f32 %v129, %v129
    %v514 = vmul.f32 %v130, %v130
    %v515 = vmul.f32 %v131, %v131
    %v516 = vmul.f32 %v132, %v132
    %v517 = vmul.f32 %v133, %v133
    %v518 = vmul.f32 %v134, %v134
    %v519 = vmul.f32 %v135, %v135
    %v520 = vmul.f32 %v136, %v136
    %v521 = vmul.f32 %v137, %v137
    %v522 = vmul.f32 %v138, %v138
    %v523 = vmul.f32 %v139, %v139
    %v524 = vmul.f32 %v140, %v140
    %v525 = vmul.f32 %v141, %v141
    %v526 = vmul.f32 %v142, %v142
    %v527 = vmul.f32 %v143, %v143
    %v528 = vmul.f32 %v144, %v144
    %v529 = vmul.f32 %v145, %v145
    %v530 = vmul.f32 %v146, %v146
    %v531 = vmul.f32 %v147, %v147
    %v532 = vmul.f32 %v148, %v148
    %v533 = vmul.f32 %v149, %v149
    %v534 = vmul.f32 %v150, %v150
    %v535 = vmul.f32 %v151, %v151
    %v536 = vmul.f32 %v152, %v152
    %v537 = vmul.f32 %v153, %v153
    %v538 = vmul.f32 %v154, %v154
    %v539 = vmul.f32 %v155, %v155
    %v540 = vmul.f32 %v156, %v156
    %v541 = vmul.f32 %v157, %v157
    %v542 = vmul.f32 %v158, %v158
    %v543 = vmul.f32 %v159, %v159
    %v544 = vmul.f32 %v160, %v160
    %v545 = vmul.f32 %v161, %v161
    %v546 = vmul.f32 %v162, %v162
    %v547 = vmul.f32 %v163, %v163
    %v548 = vmul.f32 %v164, %v164
    %v549 = vmul.f32 %v165, %v165
    %v550 = vmul.f32 %v166, %v166
    %v551 = vmul.f32 %v167, %v167
    %v552 = vmul.f32 %v168, %v168
    %v553 = vmul.f32 %v169, %v169
    %v554 = vmul.f32 %v170, %v170
    %v555 = vmul.f32 %v171, %v171
    %v556 = vmul.f32 %v172, %v172
    %v557 = vmul.f32 %v173, %v173
    %v558 = vmul.f32 %v174, %v174
    %v559 = vmul.f32 %v175, %v175
    %v560 = vmul.f32 %v176, %v176
    %v561 = vmul.f32 %v177, %v177
    %v562 = vmul.f32 %v178, %v178
    %v563 = vmul.f32 %v179, %v179
    %564 = vadd.xlane.f32.xlu0 %v436
    %v565 = vpop.xlane.xlu0 %564
    %566 = vadd.xlane.f32.xlu0 %v437
    %v567 = vpop.xlane.xlu0 %566
    %568 = vadd.xlane.f32.xlu0 %v438
    %v569 = vpop.xlane.xlu0 %568
    %570 = vadd.xlane.f32.xlu0 %v439
    %v571 = vpop.xlane.xlu0 %570
    %572 = vadd.xlane.f32.xlu0 %v440
    %v573 = vpop.xlane.xlu0 %572
    %574 = vadd.xlane.f32.xlu0 %v441
    %v575 = vpop.xlane.xlu0 %574
    %576 = vadd.xlane.f32.xlu0 %v442
    %v577 = vpop.xlane.xlu0 %576
    %578 = vadd.xlane.f32.xlu0 %v443
    %v579 = vpop.xlane.xlu0 %578
    %580 = vadd.xlane.f32.xlu0 %v444
    %v581 = vpop.xlane.xlu0 %580
    %582 = vadd.xlane.f32.xlu0 %v445
    %v583 = vpop.xlane.xlu0 %582
    %584 = vadd.xlane.f32.xlu0 %v446
    %v585 = vpop.xlane.xlu0 %584
    %586 = vadd.xlane.f32.xlu0 %v447
    %v587 = vpop.xlane.xlu0 %586
    %588 = vadd.xlane.f32.xlu0 %v448
    %v589 = vpop.xlane.xlu0 %588
    %590 = vadd.xlane.f32.xlu0 %v449
    %v591 = vpop.xlane.xlu0 %590
    %592 = vadd.xlane.f32.xlu0 %v450
    %v593 = vpop.xlane.xlu0 %592
    %594 = vadd.xlane.f32.xlu0 %v451
    %v595 = vpop.xlane.xlu0 %594
    %596 = vadd.xlane.f32.xlu0 %v452
    %v597 = vpop.xlane.xlu0 %596
    %598 = vadd.xlane.f32.xlu0 %v453
    %v599 = vpop.xlane.xlu0 %598
    %600 = vadd.xlane.f32.xlu0 %v454
    %v601 = vpop.xlane.xlu0 %600
    %602 = vadd.xlane.f32.xlu0 %v455
    %v603 = vpop.xlane.xlu0 %602
    %604 = vadd.xlane.f32.xlu0 %v456
    %v605 = vpop.xlane.xlu0 %604
    %606 = vadd.xlane.f32.xlu0 %v457
    %v607 = vpop.xlane.xlu0 %606
    %608 = vadd.xlane.f32.xlu0 %v458
    %v609 = vpop.xlane.xlu0 %608
    %610 = vadd.xlane.f32.xlu0 %v459
    %v611 = vpop.xlane.xlu0 %610
    %612 = vadd.xlane.f32.xlu0 %v460
    %v613 = vpop.xlane.xlu0 %612
    %614 = vadd.xlane.f32.xlu0 %v461
    %v615 = vpop.xlane.xlu0 %614
    %616 = vadd.xlane.f32.xlu0 %v462
    %v617 = vpop.xlane.xlu0 %616
    %618 = vadd.xlane.f32.xlu0 %v463
    %v619 = vpop.xlane.xlu0 %618
    %620 = vadd.xlane.f32.xlu0 %v464
    %v621 = vpop.xlane.xlu0 %620
    %622 = vadd.xlane.f32.xlu0 %v465
    %v623 = vpop.xlane.xlu0 %622
    %624 = vadd.xlane.f32.xlu0 %v466
    %v625 = vpop.xlane.xlu0 %624
    %626 = vadd.xlane.f32.xlu0 %v467
    %v627 = vpop.xlane.xlu0 %626
    %628 = vadd.xlane.f32.xlu0 %v468
    %v629 = vpop.xlane.xlu0 %628
    %630 = vadd.xlane.f32.xlu0 %v469
    %v631 = vpop.xlane.xlu0 %630
    %632 = vadd.xlane.f32.xlu0 %v470
    %v633 = vpop.xlane.xlu0 %632
    %634 = vadd.xlane.f32.xlu0 %v471
    %v635 = vpop.xlane.xlu0 %634
    %636 = vadd.xlane.f32.xlu0 %v472
    %v637 = vpop.xlane.xlu0 %636
    %638 = vadd.xlane.f32.xlu0 %v473
    %v639 = vpop.xlane.xlu0 %638
    %640 = vadd.xlane.f32.xlu0 %v474
    %v641 = vpop.xlane.xlu0 %640
    %642 = vadd.xlane.f32.xlu0 %v475
    %v643 = vpop.xlane.xlu0 %642
    %644 = vadd.xlane.f32.xlu0 %v476
    %v645 = vpop.xlane.xlu0 %644
    %646 = vadd.xlane.f32.xlu0 %v477
    %v647 = vpop.xlane.xlu0 %646
    %648 = vadd.xlane.f32.xlu0 %v478
    %v649 = vpop.xlane.xlu0 %648
    %650 = vadd.xlane.f32.xlu0 %v479
    %v651 = vpop.xlane.xlu0 %650
    %652 = vadd.xlane.f32.xlu0 %v480
    %v653 = vpop.xlane.xlu0 %652
    %654 = vadd.xlane.f32.xlu0 %v481
    %v655 = vpop.xlane.xlu0 %654
    %656 = vadd.xlane.f32.xlu0 %v482
    %v657 = vpop.xlane.xlu0 %656
    %658 = vadd.xlane.f32.xlu0 %v483
    %v659 = vpop.xlane.xlu0 %658
    %660 = vadd.xlane.f32.xlu0 %v484
    %v661 = vpop.xlane.xlu0 %660
    %662 = vadd.xlane.f32.xlu0 %v485
    %v663 = vpop.xlane.xlu0 %662
    %664 = vadd.xlane.f32.xlu0 %v486
    %v665 = vpop.xlane.xlu0 %664
    %666 = vadd.xlane.f32.xlu0 %v487
    %v667 = vpop.xlane.xlu0 %666
    %668 = vadd.xlane.f32.xlu0 %v488
    %v669 = vpop.xlane.xlu0 %668
    %670 = vadd.xlane.f32.xlu0 %v489
    %v671 = vpop.xlane.xlu0 %670
    %672 = vadd.xlane.f32.xlu0 %v490
    %v673 = vpop.xlane.xlu0 %672
    %674 = vadd.xlane.f32.xlu0 %v491
    %v675 = vpop.xlane.xlu0 %674
    %676 = vadd.xlane.f32.xlu0 %v492
    %v677 = vpop.xlane.xlu0 %676
    %678 = vadd.xlane.f32.xlu0 %v493
    %v679 = vpop.xlane.xlu0 %678
    %680 = vadd.xlane.f32.xlu0 %v494
    %v681 = vpop.xlane.xlu0 %680
    %682 = vadd.xlane.f32.xlu0 %v495
    %v683 = vpop.xlane.xlu0 %682
    %684 = vadd.xlane.f32.xlu0 %v496
    %v685 = vpop.xlane.xlu0 %684
    %686 = vadd.xlane.f32.xlu0 %v497
    %v687 = vpop.xlane.xlu0 %686
    %688 = vadd.xlane.f32.xlu0 %v498
    %v689 = vpop.xlane.xlu0 %688
    %690 = vadd.xlane.f32.xlu0 %v499
    %v691 = vpop.xlane.xlu0 %690
    %692 = vadd.xlane.f32.xlu0 %v500
    %v693 = vpop.xlane.xlu0 %692
    %694 = vadd.xlane.f32.xlu0 %v501
    %v695 = vpop.xlane.xlu0 %694
    %696 = vadd.xlane.f32.xlu0 %v502
    %v697 = vpop.xlane.xlu0 %696
    %698 = vadd.xlane.f32.xlu0 %v503
    %v699 = vpop.xlane.xlu0 %698
    %700 = vadd.xlane.f32.xlu0 %v504
    %v701 = vpop.xlane.xlu0 %700
    %702 = vadd.xlane.f32.xlu0 %v505
    %v703 = vpop.xlane.xlu0 %702
    %704 = vadd.xlane.f32.xlu0 %v506
    %v705 = vpop.xlane.xlu0 %704
    %706 = vadd.xlane.f32.xlu0 %v507
    %v707 = vpop.xlane.xlu0 %706
    %708 = vadd.xlane.f32.xlu0 %v508
    %v709 = vpop.xlane.xlu0 %708
    %710 = vadd.xlane.f32.xlu0 %v509
    %v711 = vpop.xlane.xlu0 %710
    %712 = vadd.xlane.f32.xlu0 %v510
    %v713 = vpop.xlane.xlu0 %712
    %714 = vadd.xlane.f32.xlu0 %v511
    %v715 = vpop.xlane.xlu0 %714
    %716 = vadd.xlane.f32.xlu0 %v512
    %v717 = vpop.xlane.xlu0 %716
    %718 = vadd.xlane.f32.xlu0 %v513
    %v719 = vpop.xlane.xlu0 %718
    %720 = vadd.xlane.f32.xlu0 %v514
    %v721 = vpop.xlane.xlu0 %720
    %722 = vadd.xlane.f32.xlu0 %v515
    %v723 = vpop.xlane.xlu0 %722
    %724 = vadd.xlane.f32.xlu0 %v516
    %v725 = vpop.xlane.xlu0 %724
    %726 = vadd.xlane.f32.xlu0 %v517
    %v727 = vpop.xlane.xlu0 %726
    %728 = vadd.xlane.f32.xlu0 %v518
    %v729 = vpop.xlane.xlu0 %728
    %730 = vadd.xlane.f32.xlu0 %v519
    %v731 = vpop.xlane.xlu0 %730
    %732 = vadd.xlane.f32.xlu0 %v520
    %v733 = vpop.xlane.xlu0 %732
    %734 = vadd.xlane.f32.xlu0 %v521
    %v735 = vpop.xlane.xlu0 %734
    %736 = vadd.xlane.f32.xlu0 %v522
    %v737 = vpop.xlane.xlu0 %736
    %738 = vadd.xlane.f32.xlu0 %v523
    %v739 = vpop.xlane.xlu0 %738
    %740 = vadd.xlane.f32.xlu0 %v524
    %v741 = vpop.xlane.xlu0 %740
    %742 = vadd.xlane.f32.xlu0 %v525
    %v743 = vpop.xlane.xlu0 %742
    %744 = vadd.xlane.f32.xlu0 %v526
    %v745 = vpop.xlane.xlu0 %744
    %746 = vadd.xlane.f32.xlu0 %v527
    %v747 = vpop.xlane.xlu0 %746
    %748 = vadd.xlane.f32.xlu0 %v528
    %v749 = vpop.xlane.xlu0 %748
    %750 = vadd.xlane.f32.xlu0 %v529
    %v751 = vpop.xlane.xlu0 %750
    %752 = vadd.xlane.f32.xlu0 %v530
    %v753 = vpop.xlane.xlu0 %752
    %754 = vadd.xlane.f32.xlu0 %v531
    %v755 = vpop.xlane.xlu0 %754
    %756 = vadd.xlane.f32.xlu0 %v532
    %v757 = vpop.xlane.xlu0 %756
    %758 = vadd.xlane.f32.xlu0 %v533
    %v759 = vpop.xlane.xlu0 %758
    %760 = vadd.xlane.f32.xlu0 %v534
    %v761 = vpop.xlane.xlu0 %760
    %762 = vadd.xlane.f32.xlu0 %v535
    %v763 = vpop.xlane.xlu0 %762
    %764 = vadd.xlane.f32.xlu0 %v536
    %v765 = vpop.xlane.xlu0 %764
    %766 = vadd.xlane.f32.xlu0 %v537
    %v767 = vpop.xlane.xlu0 %766
    %768 = vadd.xlane.f32.xlu0 %v538
    %v769 = vpop.xlane.xlu0 %768
    %770 = vadd.xlane.f32.xlu0 %v539
    %v771 = vpop.xlane.xlu0 %770
    %772 = vadd.xlane.f32.xlu0 %v540
    %v773 = vpop.xlane.xlu0 %772
    %774 = vadd.xlane.f32.xlu0 %v541
    %v775 = vpop.xlane.xlu0 %774
    %776 = vadd.xlane.f32.xlu0 %v542
    %v777 = vpop.xlane.xlu0 %776
    %778 = vadd.xlane.f32.xlu0 %v543
    %v779 = vpop.xlane.xlu0 %778
    %780 = vadd.xlane.f32.xlu0 %v544
    %v781 = vpop.xlane.xlu0 %780
    %782 = vadd.xlane.f32.xlu0 %v545
    %v783 = vpop.xlane.xlu0 %782
    %784 = vadd.xlane.f32.xlu0 %v546
    %v785 = vpop.xlane.xlu0 %784
    %786 = vadd.xlane.f32.xlu0 %v547
    %v787 = vpop.xlane.xlu0 %786
    %788 = vadd.xlane.f32.xlu0 %v548
    %v789 = vpop.xlane.xlu0 %788
    %790 = vadd.xlane.f32.xlu0 %v549
    %v791 = vpop.xlane.xlu0 %790
    %792 = vadd.xlane.f32.xlu0 %v550
    %v793 = vpop.xlane.xlu0 %792
    %794 = vadd.xlane.f32.xlu0 %v551
    %v795 = vpop.xlane.xlu0 %794
    %796 = vadd.xlane.f32.xlu0 %v552
    %v797 = vpop.xlane.xlu0 %796
    %798 = vadd.xlane.f32.xlu0 %v553
    %v799 = vpop.xlane.xlu0 %798
    %800 = vadd.xlane.f32.xlu0 %v554
    %v801 = vpop.xlane.xlu0 %800
    %802 = vadd.xlane.f32.xlu0 %v555
    %v803 = vpop.xlane.xlu0 %802
    %804 = vadd.xlane.f32.xlu0 %v556
    %v805 = vpop.xlane.xlu0 %804
    %806 = vadd.xlane.f32.xlu0 %v557
    %v807 = vpop.xlane.xlu0 %806
    %808 = vadd.xlane.f32.xlu0 %v558
    %v809 = vpop.xlane.xlu0 %808
    %810 = vadd.xlane.f32.xlu0 %v559
    %v811 = vpop.xlane.xlu0 %810
    %812 = vadd.xlane.f32.xlu0 %v560
    %v813 = vpop.xlane.xlu0 %812
    %814 = vadd.xlane.f32.xlu0 %v561
    %v815 = vpop.xlane.xlu0 %814
    %816 = vadd.xlane.f32.xlu0 %v562
    %v817 = vpop.xlane.xlu0 %816
    %818 = vadd.xlane.f32.xlu0 %v563
    %v819 = vpop.xlane.xlu0 %818
    %v820 = vrcp.pop 32.0
    %v821 = vmul.f32 %v181, %v820
    %v822 = vmul.f32 %v183, %v820
    %v823 = vmul.f32 %v185, %v820
    %v824 = vmul.f32 %v187, %v820
    %v825 = vmul.f32 %v189, %v820
    %v826 = vmul.f32 %v191, %v820
    %v827 = vmul.f32 %v193, %v820
    %v828 = vmul.f32 %v195, %v820
    %v829 = vmul.f32 %v197, %v820
    %v830 = vmul.f32 %v199, %v820
    %v831 = vmul.f32 %v201, %v820
    %v832 = vmul.f32 %v203, %v820
    %v833 = vmul.f32 %v205, %v820
    %v834 = vmul.f32 %v207, %v820
    %v835 = vmul.f32 %v209, %v820
    %v836 = vmul.f32 %v211, %v820
    %v837 = vmul.f32 %v213, %v820
    %v838 = vmul.f32 %v215, %v820
    %v839 = vmul.f32 %v217, %v820
    %v840 = vmul.f32 %v219, %v820
    %v841 = vmul.f32 %v221, %v820
    %v842 = vmul.f32 %v223, %v820
    %v843 = vmul.f32 %v225, %v820
    %v844 = vmul.f32 %v227, %v820
    %v845 = vmul.f32 %v229, %v820
    %v846 = vmul.f32 %v231, %v820
    %v847 = vmul.f32 %v233, %v820
    %v848 = vmul.f32 %v235, %v820
    %v849 = vmul.f32 %v237, %v820
    %v850 = vmul.f32 %v239, %v820
    %v851 = vmul.f32 %v241, %v820
    %v852 = vmul.f32 %v243, %v820
    %v853 = vmul.f32 %v245, %v820
    %v854 = vmul.f32 %v247, %v820
    %v855 = vmul.f32 %v249, %v820
    %v856 = vmul.f32 %v251, %v820
    %v857 = vmul.f32 %v253, %v820
    %v858 = vmul.f32 %v255, %v820
    %v859 = vmul.f32 %v257, %v820
    %v860 = vmul.f32 %v259, %v820
    %v861 = vmul.f32 %v261, %v820
    %v862 = vmul.f32 %v263, %v820
    %v863 = vmul.f32 %v265, %v820
    %v864 = vmul.f32 %v267, %v820
    %v865 = vmul.f32 %v269, %v820
    %v866 = vmul.f32 %v271, %v820
    %v867 = vmul.f32 %v273, %v820
    %v868 = vmul.f32 %v275, %v820
    %v869 = vmul.f32 %v277, %v820
    %v870 = vmul.f32 %v279, %v820
    %v871 = vmul.f32 %v281, %v820
    %v872 = vmul.f32 %v283, %v820
    %v873 = vmul.f32 %v285, %v820
    %v874 = vmul.f32 %v287, %v820
    %v875 = vmul.f32 %v289, %v820
    %v876 = vmul.f32 %v291, %v820
    %v877 = vmul.f32 %v293, %v820
    %v878 = vmul.f32 %v295, %v820
    %v879 = vmul.f32 %v297, %v820
    %v880 = vmul.f32 %v299, %v820
    %v881 = vmul.f32 %v301, %v820
    %v882 = vmul.f32 %v303, %v820
    %v883 = vmul.f32 %v305, %v820
    %v884 = vmul.f32 %v307, %v820
    %v885 = vmul.f32 %v309, %v820
    %v886 = vmul.f32 %v311, %v820
    %v887 = vmul.f32 %v313, %v820
    %v888 = vmul.f32 %v315, %v820
    %v889 = vmul.f32 %v317, %v820
    %v890 = vmul.f32 %v319, %v820
    %v891 = vmul.f32 %v321, %v820
    %v892 = vmul.f32 %v323, %v820
    %v893 = vmul.f32 %v325, %v820
    %v894 = vmul.f32 %v327, %v820
    %v895 = vmul.f32 %v329, %v820
    %v896 = vmul.f32 %v331, %v820
    %v897 = vmul.f32 %v333, %v820
    %v898 = vmul.f32 %v335, %v820
    %v899 = vmul.f32 %v337, %v820
    %v900 = vmul.f32 %v339, %v820
    %v901 = vmul.f32 %v341, %v820
    %v902 = vmul.f32 %v343, %v820
    %v903 = vmul.f32 %v345, %v820
    %v904 = vmul.f32 %v347, %v820
    %v905 = vmul.f32 %v349, %v820
    %v906 = vmul.f32 %v351, %v820
    %v907 = vmul.f32 %v353, %v820
    %v908 = vmul.f32 %v355, %v820
    %v909 = vmul.f32 %v357, %v820
    %v910 = vmul.f32 %v359, %v820
    %v911 = vmul.f32 %v361, %v820
    %v912 = vmul.f32 %v363, %v820
    %v913 = vmul.f32 %v365, %v820
    %v914 = vmul.f32 %v367, %v820
    %v915 = vmul.f32 %v369, %v820
    %v916 = vmul.f32 %v371, %v820
    %v917 = vmul.f32 %v373, %v820
    %v918 = vmul.f32 %v375, %v820
    %v919 = vmul.f32 %v377, %v820
    %v920 = vmul.f32 %v379, %v820
    %v921 = vmul.f32 %v381, %v820
    %v922 = vmul.f32 %v383, %v820
    %v923 = vmul.f32 %v385, %v820
    %v924 = vmul.f32 %v387, %v820
    %v925 = vmul.f32 %v389, %v820
    %v926 = vmul.f32 %v391, %v820
    %v927 = vmul.f32 %v393, %v820
    %v928 = vmul.f32 %v395, %v820
    %v929 = vmul.f32 %v397, %v820
    %v930 = vmul.f32 %v399, %v820
    %v931 = vmul.f32 %v401, %v820
    %v932 = vmul.f32 %v403, %v820
    %v933 = vmul.f32 %v405, %v820
    %v934 = vmul.f32 %v407, %v820
    %v935 = vmul.f32 %v409, %v820
    %v936 = vmul.f32 %v411, %v820
    %v937 = vmul.f32 %v413, %v820
    %v938 = vmul.f32 %v415, %v820
    %v939 = vmul.f32 %v417, %v820
    %v940 = vmul.f32 %v419, %v820
    %v941 = vmul.f32 %v421, %v820
    %v942 = vmul.f32 %v423, %v820
    %v943 = vmul.f32 %v425, %v820
    %v944 = vmul.f32 %v427, %v820
    %v945 = vmul.f32 %v429, %v820
    %v946 = vmul.f32 %v431, %v820
    %v947 = vmul.f32 %v433, %v820
    %v948 = vmul.f32 %v435, %v820
    %v949 = vmul.f32 %v821, 32.0
    %v950 = vmul.f32 %v822, 32.0
    %v951 = vmul.f32 %v823, 32.0
    %v952 = vmul.f32 %v824, 32.0
    %v953 = vmul.f32 %v825, 32.0
    %v954 = vmul.f32 %v826, 32.0
    %v955 = vmul.f32 %v827, 32.0
    %v956 = vmul.f32 %v828, 32.0
    %v957 = vmul.f32 %v829, 32.0
    %v958 = vmul.f32 %v830, 32.0
    %v959 = vmul.f32 %v831, 32.0
    %v960 = vmul.f32 %v832, 32.0
    %v961 = vmul.f32 %v833, 32.0
    %v962 = vmul.f32 %v834, 32.0
    %v963 = vmul.f32 %v835, 32.0
    %v964 = vmul.f32 %v836, 32.0
    %v965 = vmul.f32 %v837, 32.0
    %v966 = vmul.f32 %v838, 32.0
    %v967 = vmul.f32 %v839, 32.0
    %v968 = vmul.f32 %v840, 32.0
    %v969 = vmul.f32 %v841, 32.0
    %v970 = vmul.f32 %v842, 32.0
    %v971 = vmul.f32 %v843, 32.0
    %v972 = vmul.f32 %v844, 32.0
    %v973 = vmul.f32 %v845, 32.0
    %v974 = vmul.f32 %v846, 32.0
    %v975 = vmul.f32 %v847, 32.0
    %v976 = vmul.f32 %v848, 32.0
    %v977 = vmul.f32 %v849, 32.0
    %v978 = vmul.f32 %v850, 32.0
    %v979 = vmul.f32 %v851, 32.0
    %v980 = vmul.f32 %v852, 32.0
    %v981 = vmul.f32 %v853, 32.0
    %v982 = vmul.f32 %v854, 32.0
    %v983 = vmul.f32 %v855, 32.0
    %v984 = vmul.f32 %v856, 32.0
    %v985 = vmul.f32 %v857, 32.0
    %v986 = vmul.f32 %v858, 32.0
    %v987 = vmul.f32 %v859, 32.0
    %v988 = vmul.f32 %v860, 32.0
    %v989 = vmul.f32 %v861, 32.0
    %v990 = vmul.f32 %v862, 32.0
    %v991 = vmul.f32 %v863, 32.0
    %v992 = vmul.f32 %v864, 32.0
    %v993 = vmul.f32 %v865, 32.0
    %v994 = vmul.f32 %v866, 32.0
    %v995 = vmul.f32 %v867, 32.0
    %v996 = vmul.f32 %v868, 32.0
    %v997 = vmul.f32 %v869, 32.0
    %v998 = vmul.f32 %v870, 32.0
    %v999 = vmul.f32 %v871, 32.0
    %v1000 = vmul.f32 %v872, 32.0
    %v1001 = vmul.f32 %v873, 32.0
    %v1002 = vmul.f32 %v874, 32.0
    %v1003 = vmul.f32 %v875, 32.0
    %v1004 = vmul.f32 %v876, 32.0
    %v1005 = vmul.f32 %v877, 32.0
    %v1006 = vmul.f32 %v878, 32.0
    %v1007 = vmul.f32 %v879, 32.0
    %v1008 = vmul.f32 %v880, 32.0
    %v1009 = vmul.f32 %v881, 32.0
    %v1010 = vmul.f32 %v882, 32.0
    %v1011 = vmul.f32 %v883, 32.0
    %v1012 = vmul.f32 %v884, 32.0
    %v1013 = vmul.f32 %v885, 32.0
    %v1014 = vmul.f32 %v886, 32.0
    %v1015 = vmul.f32 %v887, 32.0
    %v1016 = vmul.f32 %v888, 32.0
    %v1017 = vmul.f32 %v889, 32.0
    %v1018 = vmul.f32 %v890, 32.0
    %v1019 = vmul.f32 %v891, 32.0
    %v1020 = vmul.f32 %v892, 32.0
    %v1021 = vmul.f32 %v893, 32.0
    %v1022 = vmul.f32 %v894, 32.0
    %v1023 = vmul.f32 %v895, 32.0
    %v1024 = vmul.f32 %v896, 32.0
    %v1025 = vmul.f32 %v897, 32.0
    %v1026 = vmul.f32 %v898, 32.0
    %v1027 = vmul.f32 %v899, 32.0
    %v1028 = vmul.f32 %v900, 32.0
    %v1029 = vmul.f32 %v901, 32.0
    %v1030 = vmul.f32 %v902, 32.0
    %v1031 = vmul.f32 %v903, 32.0
    %v1032 = vmul.f32 %v904, 32.0
    %v1033 = vmul.f32 %v905, 32.0
    %v1034 = vmul.f32 %v906, 32.0
    %v1035 = vmul.f32 %v907, 32.0
    %v1036 = vmul.f32 %v908, 32.0
    %v1037 = vmul.f32 %v909, 32.0
    %v1038 = vmul.f32 %v910, 32.0
    %v1039 = vmul.f32 %v911, 32.0
    %v1040 = vmul.f32 %v912, 32.0
    %v1041 = vmul.f32 %v913, 32.0
    %v1042 = vmul.f32 %v914, 32.0
    %v1043 = vmul.f32 %v915, 32.0
    %v1044 = vmul.f32 %v916, 32.0
    %v1045 = vmul.f32 %v917, 32.0
    %v1046 = vmul.f32 %v918, 32.0
    %v1047 = vmul.f32 %v919, 32.0
    %v1048 = vmul.f32 %v920, 32.0
    %v1049 = vmul.f32 %v921, 32.0
    %v1050 = vmul.f32 %v922, 32.0
    %v1051 = vmul.f32 %v923, 32.0
    %v1052 = vmul.f32 %v924, 32.0
    %v1053 = vmul.f32 %v925, 32.0
    %v1054 = vmul.f32 %v926, 32.0
    %v1055 = vmul.f32 %v927, 32.0
    %v1056 = vmul.f32 %v928, 32.0
    %v1057 = vmul.f32 %v929, 32.0
    %v1058 = vmul.f32 %v930, 32.0
    %v1059 = vmul.f32 %v931, 32.0
    %v1060 = vmul.f32 %v932, 32.0
    %v1061 = vmul.f32 %v933, 32.0
    %v1062 = vmul.f32 %v934, 32.0
    %v1063 = vmul.f32 %v935, 32.0
    %v1064 = vmul.f32 %v936, 32.0
    %v1065 = vmul.f32 %v937, 32.0
    %v1066 = vmul.f32 %v938, 32.0
    %v1067 = vmul.f32 %v939, 32.0
    %v1068 = vmul.f32 %v940, 32.0
    %v1069 = vmul.f32 %v941, 32.0
    %v1070 = vmul.f32 %v942, 32.0
    %v1071 = vmul.f32 %v943, 32.0
    %v1072 = vmul.f32 %v944, 32.0
    %v1073 = vmul.f32 %v945, 32.0
    %v1074 = vmul.f32 %v946, 32.0
    %v1075 = vmul.f32 %v947, 32.0
    %v1076 = vmul.f32 %v948, 32.0
    %v1077 = vmul.f32 %v949, %v821
    %v1078 = vmul.f32 %v950, %v822
    %v1079 = vmul.f32 %v951, %v823
    %v1080 = vmul.f32 %v952, %v824
    %v1081 = vmul.f32 %v953, %v825
    %v1082 = vmul.f32 %v954, %v826
    %v1083 = vmul.f32 %v955, %v827
    %v1084 = vmul.f32 %v956, %v828
    %v1085 = vmul.f32 %v957, %v829
    %v1086 = vmul.f32 %v958, %v830
    %v1087 = vmul.f32 %v959, %v831
    %v1088 = vmul.f32 %v960, %v832
    %v1089 = vmul.f32 %v961, %v833
    %v1090 = vmul.f32 %v962, %v834
    %v1091 = vmul.f32 %v963, %v835
    %v1092 = vmul.f32 %v964, %v836
    %v1093 = vmul.f32 %v965, %v837
    %v1094 = vmul.f32 %v966, %v838
    %v1095 = vmul.f32 %v967, %v839
    %v1096 = vmul.f32 %v968, %v840
    %v1097 = vmul.f32 %v969, %v841
    %v1098 = vmul.f32 %v970, %v842
    %v1099 = vmul.f32 %v971, %v843
    %v1100 = vmul.f32 %v972, %v844
    %v1101 = vmul.f32 %v973, %v845
    %v1102 = vmul.f32 %v974, %v846
    %v1103 = vmul.f32 %v975, %v847
    %v1104 = vmul.f32 %v976, %v848
    %v1105 = vmul.f32 %v977, %v849
    %v1106 = vmul.f32 %v978, %v850
    %v1107 = vmul.f32 %v979, %v851
    %v1108 = vmul.f32 %v980, %v852
    %v1109 = vmul.f32 %v981, %v853
    %v1110 = vmul.f32 %v982, %v854
    %v1111 = vmul.f32 %v983, %v855
    %v1112 = vmul.f32 %v984, %v856
    %v1113 = vmul.f32 %v985, %v857
    %v1114 = vmul.f32 %v986, %v858
    %v1115 = vmul.f32 %v987, %v859
    %v1116 = vmul.f32 %v988, %v860
    %v1117 = vmul.f32 %v989, %v861
    %v1118 = vmul.f32 %v990, %v862
    %v1119 = vmul.f32 %v991, %v863
    %v1120 = vmul.f32 %v992, %v864
    %v1121 = vmul.f32 %v993, %v865
    %v1122 = vmul.f32 %v994, %v866
    %v1123 = vmul.f32 %v995, %v867
    %v1124 = vmul.f32 %v996, %v868
    %v1125 = vmul.f32 %v997, %v869
    %v1126 = vmul.f32 %v998, %v870
    %v1127 = vmul.f32 %v999, %v871
    %v1128 = vmul.f32 %v1000, %v872
    %v1129 = vmul.f32 %v1001, %v873
    %v1130 = vmul.f32 %v1002, %v874
    %v1131 = vmul.f32 %v1003, %v875
    %v1132 = vmul.f32 %v1004, %v876
    %v1133 = vmul.f32 %v1005, %v877
    %v1134 = vmul.f32 %v1006, %v878
    %v1135 = vmul.f32 %v1007, %v879
    %v1136 = vmul.f32 %v1008, %v880
    %v1137 = vmul.f32 %v1009, %v881
    %v1138 = vmul.f32 %v1010, %v882
    %v1139 = vmul.f32 %v1011, %v883
    %v1140 = vmul.f32 %v1012, %v884
    %v1141 = vmul.f32 %v1013, %v885
    %v1142 = vmul.f32 %v1014, %v886
    %v1143 = vmul.f32 %v1015, %v887
    %v1144 = vmul.f32 %v1016, %v888
    %v1145 = vmul.f32 %v1017, %v889
    %v1146 = vmul.f32 %v1018, %v890
    %v1147 = vmul.f32 %v1019, %v891
    %v1148 = vmul.f32 %v1020, %v892
    %v1149 = vmul.f32 %v1021, %v893
    %v1150 = vmul.f32 %v1022, %v894
    %v1151 = vmul.f32 %v1023, %v895
    %v1152 = vmul.f32 %v1024, %v896
    %v1153 = vmul.f32 %v1025, %v897
    %v1154 = vmul.f32 %v1026, %v898
    %v1155 = vmul.f32 %v1027, %v899
    %v1156 = vmul.f32 %v1028, %v900
    %v1157 = vmul.f32 %v1029, %v901
    %v1158 = vmul.f32 %v1030, %v902
    %v1159 = vmul.f32 %v1031, %v903
    %v1160 = vmul.f32 %v1032, %v904
    %v1161 = vmul.f32 %v1033, %v905
    %v1162 = vmul.f32 %v1034, %v906
    %v1163 = vmul.f32 %v1035, %v907
    %v1164 = vmul.f32 %v1036, %v908
    %v1165 = vmul.f32 %v1037, %v909
    %v1166 = vmul.f32 %v1038, %v910
    %v1167 = vmul.f32 %v1039, %v911
    %v1168 = vmul.f32 %v1040, %v912
    %v1169 = vmul.f32 %v1041, %v913
    %v1170 = vmul.f32 %v1042, %v914
    %v1171 = vmul.f32 %v1043, %v915
    %v1172 = vmul.f32 %v1044, %v916
    %v1173 = vmul.f32 %v1045, %v917
    %v1174 = vmul.f32 %v1046, %v918
    %v1175 = vmul.f32 %v1047, %v919
    %v1176 = vmul.f32 %v1048, %v920
    %v1177 = vmul.f32 %v1049, %v921
    %v1178 = vmul.f32 %v1050, %v922
    %v1179 = vmul.f32 %v1051, %v923
    %v1180 = vmul.f32 %v1052, %v924
    %v1181 = vmul.f32 %v1053, %v925
    %v1182 = vmul.f32 %v1054, %v926
    %v1183 = vmul.f32 %v1055, %v927
    %v1184 = vmul.f32 %v1056, %v928
    %v1185 = vmul.f32 %v1057, %v929
    %v1186 = vmul.f32 %v1058, %v930
    %v1187 = vmul.f32 %v1059, %v931
    %v1188 = vmul.f32 %v1060, %v932
    %v1189 = vmul.f32 %v1061, %v933
    %v1190 = vmul.f32 %v1062, %v934
    %v1191 = vmul.f32 %v1063, %v935
    %v1192 = vmul.f32 %v1064, %v936
    %v1193 = vmul.f32 %v1065, %v937
    %v1194 = vmul.f32 %v1066, %v938
    %v1195 = vmul.f32 %v1067, %v939
    %v1196 = vmul.f32 %v1068, %v940
    %v1197 = vmul.f32 %v1069, %v941
    %v1198 = vmul.f32 %v1070, %v942
    %v1199 = vmul.f32 %v1071, %v943
    %v1200 = vmul.f32 %v1072, %v944
    %v1201 = vmul.f32 %v1073, %v945
    %v1202 = vmul.f32 %v1074, %v946
    %v1203 = vmul.f32 %v1075, %v947
    %v1204 = vmul.f32 %v1076, %v948
    %v1205 = vsub.f32 %v565, %v1077
    %v1206 = vsub.f32 %v567, %v1078
    %v1207 = vsub.f32 %v569, %v1079
    %v1208 = vsub.f32 %v571, %v1080
    %v1209 = vsub.f32 %v573, %v1081
    %v1210 = vsub.f32 %v575, %v1082
    %v1211 = vsub.f32 %v577, %v1083
    %v1212 = vsub.f32 %v579, %v1084
    %v1213 = vsub.f32 %v581, %v1085
    %v1214 = vsub.f32 %v583, %v1086
    %v1215 = vsub.f32 %v585, %v1087
    %v1216 = vsub.f32 %v587, %v1088
    %v1217 = vsub.f32 %v589, %v1089
    %v1218 = vsub.f32 %v591, %v1090
    %v1219 = vsub.f32 %v593, %v1091
    %v1220 = vsub.f32 %v595, %v1092
    %v1221 = vsub.f32 %v597, %v1093
    %v1222 = vsub.f32 %v599, %v1094
    %v1223 = vsub.f32 %v601, %v1095
    %v1224 = vsub.f32 %v603, %v1096
    %v1225 = vsub.f32 %v605, %v1097
    %v1226 = vsub.f32 %v607, %v1098
    %v1227 = vsub.f32 %v609, %v1099
    %v1228 = vsub.f32 %v611, %v1100
    %v1229 = vsub.f32 %v613, %v1101
    %v1230 = vsub.f32 %v615, %v1102
    %v1231 = vsub.f32 %v617, %v1103
    %v1232 = vsub.f32 %v619, %v1104
    %v1233 = vsub.f32 %v621, %v1105
    %v1234 = vsub.f32 %v623, %v1106
    %v1235 = vsub.f32 %v625, %v1107
    %v1236 = vsub.f32 %v627, %v1108
    %v1237 = vsub.f32 %v629, %v1109
    %v1238 = vsub.f32 %v631, %v1110
    %v1239 = vsub.f32 %v633, %v1111
    %v1240 = vsub.f32 %v635, %v1112
    %v1241 = vsub.f32 %v637, %v1113
    %v1242 = vsub.f32 %v639, %v1114
    %v1243 = vsub.f32 %v641, %v1115
    %v1244 = vsub.f32 %v643, %v1116
    %v1245 = vsub.f32 %v645, %v1117
    %v1246 = vsub.f32 %v647, %v1118
    %v1247 = vsub.f32 %v649, %v1119
    %v1248 = vsub.f32 %v651, %v1120
    %v1249 = vsub.f32 %v653, %v1121
    %v1250 = vsub.f32 %v655, %v1122
    %v1251 = vsub.f32 %v657, %v1123
    %v1252 = vsub.f32 %v659, %v1124
    %v1253 = vsub.f32 %v661, %v1125
    %v1254 = vsub.f32 %v663, %v1126
    %v1255 = vsub.f32 %v665, %v1127
    %v1256 = vsub.f32 %v667, %v1128
    %v1257 = vsub.f32 %v669, %v1129
    %v1258 = vsub.f32 %v671, %v1130
    %v1259 = vsub.f32 %v673, %v1131
    %v1260 = vsub.f32 %v675, %v1132
    %v1261 = vsub.f32 %v677, %v1133
    %v1262 = vsub.f32 %v679, %v1134
    %v1263 = vsub.f32 %v681, %v1135
    %v1264 = vsub.f32 %v683, %v1136
    %v1265 = vsub.f32 %v685, %v1137
    %v1266 = vsub.f32 %v687, %v1138
    %v1267 = vsub.f32 %v689, %v1139
    %v1268 = vsub.f32 %v691, %v1140
    %v1269 = vsub.f32 %v693, %v1141
    %v1270 = vsub.f32 %v695, %v1142
    %v1271 = vsub.f32 %v697, %v1143
    %v1272 = vsub.f32 %v699, %v1144
    %v1273 = vsub.f32 %v701, %v1145
    %v1274 = vsub.f32 %v703, %v1146
    %v1275 = vsub.f32 %v705, %v1147
    %v1276 = vsub.f32 %v707, %v1148
    %v1277 = vsub.f32 %v709, %v1149
    %v1278 = vsub.f32 %v711, %v1150
    %v1279 = vsub.f32 %v713, %v1151
    %v1280 = vsub.f32 %v715, %v1152
    %v1281 = vsub.f32 %v717, %v1153
    %v1282 = vsub.f32 %v719, %v1154
    %v1283 = vsub.f32 %v721, %v1155
    %v1284 = vsub.f32 %v723, %v1156
    %v1285 = vsub.f32 %v725, %v1157
    %v1286 = vsub.f32 %v727, %v1158
    %v1287 = vsub.f32 %v729, %v1159
    %v1288 = vsub.f32 %v731, %v1160
    %v1289 = vsub.f32 %v733, %v1161
    %v1290 = vsub.f32 %v735, %v1162
    %v1291 = vsub.f32 %v737, %v1163
    %v1292 = vsub.f32 %v739, %v1164
    %v1293 = vsub.f32 %v741, %v1165
    %v1294 = vsub.f32 %v743, %v1166
    %v1295 = vsub.f32 %v745, %v1167
    %v1296 = vsub.f32 %v747, %v1168
    %v1297 = vsub.f32 %v749, %v1169
    %v1298 = vsub.f32 %v751, %v1170
    %v1299 = vsub.f32 %v753, %v1171
    %v1300 = vsub.f32 %v755, %v1172
    %v1301 = vsub.f32 %v757, %v1173
    %v1302 = vsub.f32 %v759, %v1174
    %v1303 = vsub.f32 %v761, %v1175
    %v1304 = vsub.f32 %v763, %v1176
    %v1305 = vsub.f32 %v765, %v1177
    %v1306 = vsub.f32 %v767, %v1178
    %v1307 = vsub.f32 %v769, %v1179
    %v1308 = vsub.f32 %v771, %v1180
    %v1309 = vsub.f32 %v773, %v1181
    %v1310 = vsub.f32 %v775, %v1182
    %v1311 = vsub.f32 %v777, %v1183
    %v1312 = vsub.f32 %v779, %v1184
    %v1313 = vsub.f32 %v781, %v1185
    %v1314 = vsub.f32 %v783, %v1186
    %v1315 = vsub.f32 %v785, %v1187
    %v1316 = vsub.f32 %v787, %v1188
    %v1317 = vsub.f32 %v789, %v1189
    %v1318 = vsub.f32 %v791, %v1190
    %v1319 = vsub.f32 %v793, %v1191
    %v1320 = vsub.f32 %v795, %v1192
    %v1321 = vsub.f32 %v797, %v1193
    %v1322 = vsub.f32 %v799, %v1194
    %v1323 = vsub.f32 %v801, %v1195
    %v1324 = vsub.f32 %v803, %v1196
    %v1325 = vsub.f32 %v805, %v1197
    %v1326 = vsub.f32 %v807, %v1198
    %v1327 = vsub.f32 %v809, %v1199
    %v1328 = vsub.f32 %v811, %v1200
    %v1329 = vsub.f32 %v813, %v1201
    %v1330 = vsub.f32 %v815, %v1202
    %v1331 = vsub.f32 %v817, %v1203
    %v1332 = vsub.f32 %v819, %v1204
    %v1333 = vrcp.pop 31.0
    %v1334 = vmul.f32 %v1205, %v1333
    %v1335 = vmul.f32 %v1206, %v1333
    %v1336 = vmul.f32 %v1207, %v1333
    %v1337 = vmul.f32 %v1208, %v1333
    %v1338 = vmul.f32 %v1209, %v1333
    %v1339 = vmul.f32 %v1210, %v1333
    %v1340 = vmul.f32 %v1211, %v1333
    %v1341 = vmul.f32 %v1212, %v1333
    %v1342 = vmul.f32 %v1213, %v1333
    %v1343 = vmul.f32 %v1214, %v1333
    %v1344 = vmul.f32 %v1215, %v1333
    %v1345 = vmul.f32 %v1216, %v1333
    %v1346 = vmul.f32 %v1217, %v1333
    %v1347 = vmul.f32 %v1218, %v1333
    %v1348 = vmul.f32 %v1219, %v1333
    %v1349 = vmul.f32 %v1220, %v1333
    %v1350 = vmul.f32 %v1221, %v1333
    %v1351 = vmul.f32 %v1222, %v1333
    %v1352 = vmul.f32 %v1223, %v1333
    %v1353 = vmul.f32 %v1224, %v1333
    %v1354 = vmul.f32 %v1225, %v1333
    %v1355 = vmul.f32 %v1226, %v1333
    %v1356 = vmul.f32 %v1227, %v1333
    %v1357 = vmul.f32 %v1228, %v1333
    %v1358 = vmul.f32 %v1229, %v1333
    %v1359 = vmul.f32 %v1230, %v1333
    %v1360 = vmul.f32 %v1231, %v1333
    %v1361 = vmul.f32 %v1232, %v1333
    %v1362 = vmul.f32 %v1233, %v1333
    %v1363 = vmul.f32 %v1234, %v1333
    %v1364 = vmul.f32 %v1235, %v1333
    %v1365 = vmul.f32 %v1236, %v1333
    %v1366 = vmul.f32 %v1237, %v1333
    %v1367 = vmul.f32 %v1238, %v1333
    %v1368 = vmul.f32 %v1239, %v1333
    %v1369 = vmul.f32 %v1240, %v1333
    %v1370 = vmul.f32 %v1241, %v1333
    %v1371 = vmul.f32 %v1242, %v1333
    %v1372 = vmul.f32 %v1243, %v1333
    %v1373 = vmul.f32 %v1244, %v1333
    %v1374 = vmul.f32 %v1245, %v1333
    %v1375 = vmul.f32 %v1246, %v1333
    %v1376 = vmul.f32 %v1247, %v1333
    %v1377 = vmul.f32 %v1248, %v1333
    %v1378 = vmul.f32 %v1249, %v1333
    %v1379 = vmul.f32 %v1250, %v1333
    %v1380 = vmul.f32 %v1251, %v1333
    %v1381 = vmul.f32 %v1252, %v1333
    %v1382 = vmul.f32 %v1253, %v1333
    %v1383 = vmul.f32 %v1254, %v1333
    %v1384 = vmul.f32 %v1255, %v1333
    %v1385 = vmul.f32 %v1256, %v1333
    %v1386 = vmul.f32 %v1257, %v1333
    %v1387 = vmul.f32 %v1258, %v1333
    %v1388 = vmul.f32 %v1259, %v1333
    %v1389 = vmul.f32 %v1260, %v1333
    %v1390 = vmul.f32 %v1261, %v1333
    %v1391 = vmul.f32 %v1262, %v1333
    %v1392 = vmul.f32 %v1263, %v1333
    %v1393 = vmul.f32 %v1264, %v1333
    %v1394 = vmul.f32 %v1265, %v1333
    %v1395 = vmul.f32 %v1266, %v1333
    %v1396 = vmul.f32 %v1267, %v1333
    %v1397 = vmul.f32 %v1268, %v1333
    %v1398 = vmul.f32 %v1269, %v1333
    %v1399 = vmul.f32 %v1270, %v1333
    %v1400 = vmul.f32 %v1271, %v1333
    %v1401 = vmul.f32 %v1272, %v1333
    %v1402 = vmul.f32 %v1273, %v1333
    %v1403 = vmul.f32 %v1274, %v1333
    %v1404 = vmul.f32 %v1275, %v1333
    %v1405 = vmul.f32 %v1276, %v1333
    %v1406 = vmul.f32 %v1277, %v1333
    %v1407 = vmul.f32 %v1278, %v1333
    %v1408 = vmul.f32 %v1279, %v1333
    %v1409 = vmul.f32 %v1280, %v1333
    %v1410 = vmul.f32 %v1281, %v1333
    %v1411 = vmul.f32 %v1282, %v1333
    %v1412 = vmul.f32 %v1283, %v1333
    %v1413 = vmul.f32 %v1284, %v1333
    %v1414 = vmul.f32 %v1285, %v1333
    %v1415 = vmul.f32 %v1286, %v1333
    %v1416 = vmul.f32 %v1287, %v1333
    %v1417 = vmul.f32 %v1288, %v1333
    %v1418 = vmul.f32 %v1289, %v1333
    %v1419 = vmul.f32 %v1290, %v1333
    %v1420 = vmul.f32 %v1291, %v1333
    %v1421 = vmul.f32 %v1292, %v1333
    %v1422 = vmul.f32 %v1293, %v1333
    %v1423 = vmul.f32 %v1294, %v1333
    %v1424 = vmul.f32 %v1295, %v1333
    %v1425 = vmul.f32 %v1296, %v1333
    %v1426 = vmul.f32 %v1297, %v1333
    %v1427 = vmul.f32 %v1298, %v1333
    %v1428 = vmul.f32 %v1299, %v1333
    %v1429 = vmul.f32 %v1300, %v1333
    %v1430 = vmul.f32 %v1301, %v1333
    %v1431 = vmul.f32 %v1302, %v1333
    %v1432 = vmul.f32 %v1303, %v1333
    %v1433 = vmul.f32 %v1304, %v1333
    %v1434 = vmul.f32 %v1305, %v1333
    %v1435 = vmul.f32 %v1306, %v1333
    %v1436 = vmul.f32 %v1307, %v1333
    %v1437 = vmul.f32 %v1308, %v1333
    %v1438 = vmul.f32 %v1309, %v1333
    %v1439 = vmul.f32 %v1310, %v1333
    %v1440 = vmul.f32 %v1311, %v1333
    %v1441 = vmul.f32 %v1312, %v1333
    %v1442 = vmul.f32 %v1313, %v1333
    %v1443 = vmul.f32 %v1314, %v1333
    %v1444 = vmul.f32 %v1315, %v1333
    %v1445 = vmul.f32 %v1316, %v1333
    %v1446 = vmul.f32 %v1317, %v1333
    %v1447 = vmul.f32 %v1318, %v1333
    %v1448 = vmul.f32 %v1319, %v1333
    %v1449 = vmul.f32 %v1320, %v1333
    %v1450 = vmul.f32 %v1321, %v1333
    %v1451 = vmul.f32 %v1322, %v1333
    %v1452 = vmul.f32 %v1323, %v1333
    %v1453 = vmul.f32 %v1324, %v1333
    %v1454 = vmul.f32 %v1325, %v1333
    %v1455 = vmul.f32 %v1326, %v1333
    %v1456 = vmul.f32 %v1327, %v1333
    %v1457 = vmul.f32 %v1328, %v1333
    %v1458 = vmul.f32 %v1329, %v1333
    %v1459 = vmul.f32 %v1330, %v1333
    %v1460 = vmul.f32 %v1331, %v1333
    %v1461 = vmul.f32 %v1332, %v1333
    %v1462 = vmax.f32 %v1334, 0.0
    %v1463 = vmax.f32 %v1335, 0.0
    %v1464 = vmax.f32 %v1336, 0.0
    %v1465 = vmax.f32 %v1337, 0.0
    %v1466 = vmax.f32 %v1338, 0.0
    %v1467 = vmax.f32 %v1339, 0.0
    %v1468 = vmax.f32 %v1340, 0.0
    %v1469 = vmax.f32 %v1341, 0.0
    %v1470 = vmax.f32 %v1342, 0.0
    %v1471 = vmax.f32 %v1343, 0.0
    %v1472 = vmax.f32 %v1344, 0.0
    %v1473 = vmax.f32 %v1345, 0.0
    %v1474 = vmax.f32 %v1346, 0.0
    %v1475 = vmax.f32 %v1347, 0.0
    %v1476 = vmax.f32 %v1348, 0.0
    %v1477 = vmax.f32 %v1349, 0.0
    %v1478 = vmax.f32 %v1350, 0.0
    %v1479 = vmax.f32 %v1351, 0.0
    %v1480 = vmax.f32 %v1352, 0.0
    %v1481 = vmax.f32 %v1353, 0.0
    %v1482 = vmax.f32 %v1354, 0.0
    %v1483 = vmax.f32 %v1355, 0.0
    %v1484 = vmax.f32 %v1356, 0.0
    %v1485 = vmax.f32 %v1357, 0.0
    %v1486 = vmax.f32 %v1358, 0.0
    %v1487 = vmax.f32 %v1359, 0.0
    %v1488 = vmax.f32 %v1360, 0.0
    %v1489 = vmax.f32 %v1361, 0.0
    %v1490 = vmax.f32 %v1362, 0.0
    %v1491 = vmax.f32 %v1363, 0.0
    %v1492 = vmax.f32 %v1364, 0.0
    %v1493 = vmax.f32 %v1365, 0.0
    %v1494 = vmax.f32 %v1366, 0.0
    %v1495 = vmax.f32 %v1367, 0.0
    %v1496 = vmax.f32 %v1368, 0.0
    %v1497 = vmax.f32 %v1369, 0.0
    %v1498 = vmax.f32 %v1370, 0.0
    %v1499 = vmax.f32 %v1371, 0.0
    %v1500 = vmax.f32 %v1372, 0.0
    %v1501 = vmax.f32 %v1373, 0.0
    %v1502 = vmax.f32 %v1374, 0.0
    %v1503 = vmax.f32 %v1375, 0.0
    %v1504 = vmax.f32 %v1376, 0.0
    %v1505 = vmax.f32 %v1377, 0.0
    %v1506 = vmax.f32 %v1378, 0.0
    %v1507 = vmax.f32 %v1379, 0.0
    %v1508 = vmax.f32 %v1380, 0.0
    %v1509 = vmax.f32 %v1381, 0.0
    %v1510 = vmax.f32 %v1382, 0.0
    %v1511 = vmax.f32 %v1383, 0.0
    %v1512 = vmax.f32 %v1384, 0.0
    %v1513 = vmax.f32 %v1385, 0.0
    %v1514 = vmax.f32 %v1386, 0.0
    %v1515 = vmax.f32 %v1387, 0.0
    %v1516 = vmax.f32 %v1388, 0.0
    %v1517 = vmax.f32 %v1389, 0.0
    %v1518 = vmax.f32 %v1390, 0.0
    %v1519 = vmax.f32 %v1391, 0.0
    %v1520 = vmax.f32 %v1392, 0.0
    %v1521 = vmax.f32 %v1393, 0.0
    %v1522 = vmax.f32 %v1394, 0.0
    %v1523 = vmax.f32 %v1395, 0.0
    %v1524 = vmax.f32 %v1396, 0.0
    %v1525 = vmax.f32 %v1397, 0.0
    %v1526 = vmax.f32 %v1398, 0.0
    %v1527 = vmax.f32 %v1399, 0.0
    %v1528 = vmax.f32 %v1400, 0.0
    %v1529 = vmax.f32 %v1401, 0.0
    %v1530 = vmax.f32 %v1402, 0.0
    %v1531 = vmax.f32 %v1403, 0.0
    %v1532 = vmax.f32 %v1404, 0.0
    %v1533 = vmax.f32 %v1405, 0.0
    %v1534 = vmax.f32 %v1406, 0.0
    %v1535 = vmax.f32 %v1407, 0.0
    %v1536 = vmax.f32 %v1408, 0.0
    %v1537 = vmax.f32 %v1409, 0.0
    %v1538 = vmax.f32 %v1410, 0.0
    %v1539 = vmax.f32 %v1411, 0.0
    %v1540 = vmax.f32 %v1412, 0.0
    %v1541 = vmax.f32 %v1413, 0.0
    %v1542 = vmax.f32 %v1414, 0.0
    %v1543 = vmax.f32 %v1415, 0.0
    %v1544 = vmax.f32 %v1416, 0.0
    %v1545 = vmax.f32 %v1417, 0.0
    %v1546 = vmax.f32 %v1418, 0.0
    %v1547 = vmax.f32 %v1419, 0.0
    %v1548 = vmax.f32 %v1420, 0.0
    %v1549 = vmax.f32 %v1421, 0.0
    %v1550 = vmax.f32 %v1422, 0.0
    %v1551 = vmax.f32 %v1423, 0.0
    %v1552 = vmax.f32 %v1424, 0.0
    %v1553 = vmax.f32 %v1425, 0.0
    %v1554 = vmax.f32 %v1426, 0.0
    %v1555 = vmax.f32 %v1427, 0.0
    %v1556 = vmax.f32 %v1428, 0.0
    %v1557 = vmax.f32 %v1429, 0.0
    %v1558 = vmax.f32 %v1430, 0.0
    %v1559 = vmax.f32 %v1431, 0.0
    %v1560 = vmax.f32 %v1432, 0.0
    %v1561 = vmax.f32 %v1433, 0.0
    %v1562 = vmax.f32 %v1434, 0.0
    %v1563 = vmax.f32 %v1435, 0.0
    %v1564 = vmax.f32 %v1436, 0.0
    %v1565 = vmax.f32 %v1437, 0.0
    %v1566 = vmax.f32 %v1438, 0.0
    %v1567 = vmax.f32 %v1439, 0.0
    %v1568 = vmax.f32 %v1440, 0.0
    %v1569 = vmax.f32 %v1441, 0.0
    %v1570 = vmax.f32 %v1442, 0.0
    %v1571 = vmax.f32 %v1443, 0.0
    %v1572 = vmax.f32 %v1444, 0.0
    %v1573 = vmax.f32 %v1445, 0.0
    %v1574 = vmax.f32 %v1446, 0.0
    %v1575 = vmax.f32 %v1447, 0.0
    %v1576 = vmax.f32 %v1448, 0.0
    %v1577 = vmax.f32 %v1449, 0.0
    %v1578 = vmax.f32 %v1450, 0.0
    %v1579 = vmax.f32 %v1451, 0.0
    %v1580 = vmax.f32 %v1452, 0.0
    %v1581 = vmax.f32 %v1453, 0.0
    %v1582 = vmax.f32 %v1454, 0.0
    %v1583 = vmax.f32 %v1455, 0.0
    %v1584 = vmax.f32 %v1456, 0.0
    %v1585 = vmax.f32 %v1457, 0.0
    %v1586 = vmax.f32 %v1458, 0.0
    %v1587 = vmax.f32 %v1459, 0.0
    %v1588 = vmax.f32 %v1460, 0.0
    %v1589 = vmax.f32 %v1461, 0.0
    %v1590 = vrsqrt.pop %v1462
    %v1591 = vmul.f32 %v1462, %v1590
    %vm1592 = vcmp.eq.f32.partialorder %v1462, inf
    %v1593 = vsel %vm1592, %v1462, %v1591
    %vm1594 = vcmp.eq.f32.partialorder %v1462, 0.0
    %v1595 = vand.u32 %v1462, 2147483648
    %v1596 = vsel %vm1594, %v1595, %v1593
    %v1597 = vrsqrt.pop %v1463
    %v1598 = vmul.f32 %v1463, %v1597
    %vm1599 = vcmp.eq.f32.partialorder %v1463, inf
    %v1600 = vsel %vm1599, %v1463, %v1598
    %vm1601 = vcmp.eq.f32.partialorder %v1463, 0.0
    %v1602 = vand.u32 %v1463, 2147483648
    %v1603 = vsel %vm1601, %v1602, %v1600
    %v1604 = vrsqrt.pop %v1464
    %v1605 = vmul.f32 %v1464, %v1604
    %vm1606 = vcmp.eq.f32.partialorder %v1464, inf
    %v1607 = vsel %vm1606, %v1464, %v1605
    %vm1608 = vcmp.eq.f32.partialorder %v1464, 0.0
    %v1609 = vand.u32 %v1464, 2147483648
    %v1610 = vsel %vm1608, %v1609, %v1607
    %v1611 = vrsqrt.pop %v1465
    %v1612 = vmul.f32 %v1465, %v1611
    %vm1613 = vcmp.eq.f32.partialorder %v1465, inf
    %v1614 = vsel %vm1613, %v1465, %v1612
    %vm1615 = vcmp.eq.f32.partialorder %v1465, 0.0
    %v1616 = vand.u32 %v1465, 2147483648
    %v1617 = vsel %vm1615, %v1616, %v1614
    %v1618 = vrsqrt.pop %v1466
    %v1619 = vmul.f32 %v1466, %v1618
    %vm1620 = vcmp.eq.f32.partialorder %v1466, inf
    %v1621 = vsel %vm1620, %v1466, %v1619
    %vm1622 = vcmp.eq.f32.partialorder %v1466, 0.0
    %v1623 = vand.u32 %v1466, 2147483648
    %v1624 = vsel %vm1622, %v1623, %v1621
    %v1625 = vrsqrt.pop %v1467
    %v1626 = vmul.f32 %v1467, %v1625
    %vm1627 = vcmp.eq.f32.partialorder %v1467, inf
    %v1628 = vsel %vm1627, %v1467, %v1626
    %vm1629 = vcmp.eq.f32.partialorder %v1467, 0.0
    %v1630 = vand.u32 %v1467, 2147483648
    %v1631 = vsel %vm1629, %v1630, %v1628
    %v1632 = vrsqrt.pop %v1468
    %v1633 = vmul.f32 %v1468, %v1632
    %vm1634 = vcmp.eq.f32.partialorder %v1468, inf
    %v1635 = vsel %vm1634, %v1468, %v1633
    %vm1636 = vcmp.eq.f32.partialorder %v1468, 0.0
    %v1637 = vand.u32 %v1468, 2147483648
    %v1638 = vsel %vm1636, %v1637, %v1635
    %v1639 = vrsqrt.pop %v1469
    %v1640 = vmul.f32 %v1469, %v1639
    %vm1641 = vcmp.eq.f32.partialorder %v1469, inf
    %v1642 = vsel %vm1641, %v1469, %v1640
    %vm1643 = vcmp.eq.f32.partialorder %v1469, 0.0
    %v1644 = vand.u32 %v1469, 2147483648
    %v1645 = vsel %vm1643, %v1644, %v1642
    %v1646 = vrsqrt.pop %v1470
    %v1647 = vmul.f32 %v1470, %v1646
    %vm1648 = vcmp.eq.f32.partialorder %v1470, inf
    %v1649 = vsel %vm1648, %v1470, %v1647
    %vm1650 = vcmp.eq.f32.partialorder %v1470, 0.0
    %v1651 = vand.u32 %v1470, 2147483648
    %v1652 = vsel %vm1650, %v1651, %v1649
    %v1653 = vrsqrt.pop %v1471
    %v1654 = vmul.f32 %v1471, %v1653
    %vm1655 = vcmp.eq.f32.partialorder %v1471, inf
    %v1656 = vsel %vm1655, %v1471, %v1654
    %vm1657 = vcmp.eq.f32.partialorder %v1471, 0.0
    %v1658 = vand.u32 %v1471, 2147483648
    %v1659 = vsel %vm1657, %v1658, %v1656
    %v1660 = vrsqrt.pop %v1472
    %v1661 = vmul.f32 %v1472, %v1660
    %vm1662 = vcmp.eq.f32.partialorder %v1472, inf
    %v1663 = vsel %vm1662, %v1472, %v1661
    %vm1664 = vcmp.eq.f32.partialorder %v1472, 0.0
    %v1665 = vand.u32 %v1472, 2147483648
    %v1666 = vsel %vm1664, %v1665, %v1663
    %v1667 = vrsqrt.pop %v1473
    %v1668 = vmul.f32 %v1473, %v1667
    %vm1669 = vcmp.eq.f32.partialorder %v1473, inf
    %v1670 = vsel %vm1669, %v1473, %v1668
    %vm1671 = vcmp.eq.f32.partialorder %v1473, 0.0
    %v1672 = vand.u32 %v1473, 2147483648
    %v1673 = vsel %vm1671, %v1672, %v1670
    %v1674 = vrsqrt.pop %v1474
    %v1675 = vmul.f32 %v1474, %v1674
    %vm1676 = vcmp.eq.f32.partialorder %v1474, inf
    %v1677 = vsel %vm1676, %v1474, %v1675
    %vm1678 = vcmp.eq.f32.partialorder %v1474, 0.0
    %v1679 = vand.u32 %v1474, 2147483648
    %v1680 = vsel %vm1678, %v1679, %v1677
    %v1681 = vrsqrt.pop %v1475
    %v1682 = vmul.f32 %v1475, %v1681
    %vm1683 = vcmp.eq.f32.partialorder %v1475, inf
    %v1684 = vsel %vm1683, %v1475, %v1682
    %vm1685 = vcmp.eq.f32.partialorder %v1475, 0.0
    %v1686 = vand.u32 %v1475, 2147483648
    %v1687 = vsel %vm1685, %v1686, %v1684
    %v1688 = vrsqrt.pop %v1476
    %v1689 = vmul.f32 %v1476, %v1688
    %vm1690 = vcmp.eq.f32.partialorder %v1476, inf
    %v1691 = vsel %vm1690, %v1476, %v1689
    %vm1692 = vcmp.eq.f32.partialorder %v1476, 0.0
    %v1693 = vand.u32 %v1476, 2147483648
    %v1694 = vsel %vm1692, %v1693, %v1691
    %v1695 = vrsqrt.pop %v1477
    %v1696 = vmul.f32 %v1477, %v1695
    %vm1697 = vcmp.eq.f32.partialorder %v1477, inf
    %v1698 = vsel %vm1697, %v1477, %v1696
    %vm1699 = vcmp.eq.f32.partialorder %v1477, 0.0
    %v1700 = vand.u32 %v1477, 2147483648
    %v1701 = vsel %vm1699, %v1700, %v1698
    %v1702 = vrsqrt.pop %v1478
    %v1703 = vmul.f32 %v1478, %v1702
    %vm1704 = vcmp.eq.f32.partialorder %v1478, inf
    %v1705 = vsel %vm1704, %v1478, %v1703
    %vm1706 = vcmp.eq.f32.partialorder %v1478, 0.0
    %v1707 = vand.u32 %v1478, 2147483648
    %v1708 = vsel %vm1706, %v1707, %v1705
    %v1709 = vrsqrt.pop %v1479
    %v1710 = vmul.f32 %v1479, %v1709
    %vm1711 = vcmp.eq.f32.partialorder %v1479, inf
    %v1712 = vsel %vm1711, %v1479, %v1710
    %vm1713 = vcmp.eq.f32.partialorder %v1479, 0.0
    %v1714 = vand.u32 %v1479, 2147483648
    %v1715 = vsel %vm1713, %v1714, %v1712
    %v1716 = vrsqrt.pop %v1480
    %v1717 = vmul.f32 %v1480, %v1716
    %vm1718 = vcmp.eq.f32.partialorder %v1480, inf
    %v1719 = vsel %vm1718, %v1480, %v1717
    %vm1720 = vcmp.eq.f32.partialorder %v1480, 0.0
    %v1721 = vand.u32 %v1480, 2147483648
    %v1722 = vsel %vm1720, %v1721, %v1719
    %v1723 = vrsqrt.pop %v1481
    %v1724 = vmul.f32 %v1481, %v1723
    %vm1725 = vcmp.eq.f32.partialorder %v1481, inf
    %v1726 = vsel %vm1725, %v1481, %v1724
    %vm1727 = vcmp.eq.f32.partialorder %v1481, 0.0
    %v1728 = vand.u32 %v1481, 2147483648
    %v1729 = vsel %vm1727, %v1728, %v1726
    %v1730 = vrsqrt.pop %v1482
    %v1731 = vmul.f32 %v1482, %v1730
    %vm1732 = vcmp.eq.f32.partialorder %v1482, inf
    %v1733 = vsel %vm1732, %v1482, %v1731
    %vm1734 = vcmp.eq.f32.partialorder %v1482, 0.0
    %v1735 = vand.u32 %v1482, 2147483648
    %v1736 = vsel %vm1734, %v1735, %v1733
    %v1737 = vrsqrt.pop %v1483
    %v1738 = vmul.f32 %v1483, %v1737
    %vm1739 = vcmp.eq.f32.partialorder %v1483, inf
    %v1740 = vsel %vm1739, %v1483, %v1738
    %vm1741 = vcmp.eq.f32.partialorder %v1483, 0.0
    %v1742 = vand.u32 %v1483, 2147483648
    %v1743 = vsel %vm1741, %v1742, %v1740
    %v1744 = vrsqrt.pop %v1484
    %v1745 = vmul.f32 %v1484, %v1744
    %vm1746 = vcmp.eq.f32.partialorder %v1484, inf
    %v1747 = vsel %vm1746, %v1484, %v1745
    %vm1748 = vcmp.eq.f32.partialorder %v1484, 0.0
    %v1749 = vand.u32 %v1484, 2147483648
    %v1750 = vsel %vm1748, %v1749, %v1747
    %v1751 = vrsqrt.pop %v1485
    %v1752 = vmul.f32 %v1485, %v1751
    %vm1753 = vcmp.eq.f32.partialorder %v1485, inf
    %v1754 = vsel %vm1753, %v1485, %v1752
    %vm1755 = vcmp.eq.f32.partialorder %v1485, 0.0
    %v1756 = vand.u32 %v1485, 2147483648
    %v1757 = vsel %vm1755, %v1756, %v1754
    %v1758 = vrsqrt.pop %v1486
    %v1759 = vmul.f32 %v1486, %v1758
    %vm1760 = vcmp.eq.f32.partialorder %v1486, inf
    %v1761 = vsel %vm1760, %v1486, %v1759
    %vm1762 = vcmp.eq.f32.partialorder %v1486, 0.0
    %v1763 = vand.u32 %v1486, 2147483648
    %v1764 = vsel %vm1762, %v1763, %v1761
    %v1765 = vrsqrt.pop %v1487
    %v1766 = vmul.f32 %v1487, %v1765
    %vm1767 = vcmp.eq.f32.partialorder %v1487, inf
    %v1768 = vsel %vm1767, %v1487, %v1766
    %vm1769 = vcmp.eq.f32.partialorder %v1487, 0.0
    %v1770 = vand.u32 %v1487, 2147483648
    %v1771 = vsel %vm1769, %v1770, %v1768
    %v1772 = vrsqrt.pop %v1488
    %v1773 = vmul.f32 %v1488, %v1772
    %vm1774 = vcmp.eq.f32.partialorder %v1488, inf
    %v1775 = vsel %vm1774, %v1488, %v1773
    %vm1776 = vcmp.eq.f32.partialorder %v1488, 0.0
    %v1777 = vand.u32 %v1488, 2147483648
    %v1778 = vsel %vm1776, %v1777, %v1775
    %v1779 = vrsqrt.pop %v1489
    %v1780 = vmul.f32 %v1489, %v1779
    %vm1781 = vcmp.eq.f32.partialorder %v1489, inf
    %v1782 = vsel %vm1781, %v1489, %v1780
    %vm1783 = vcmp.eq.f32.partialorder %v1489, 0.0
    %v1784 = vand.u32 %v1489, 2147483648
    %v1785 = vsel %vm1783, %v1784, %v1782
    %v1786 = vrsqrt.pop %v1490
    %v1787 = vmul.f32 %v1490, %v1786
    %vm1788 = vcmp.eq.f32.partialorder %v1490, inf
    %v1789 = vsel %vm1788, %v1490, %v1787
    %vm1790 = vcmp.eq.f32.partialorder %v1490, 0.0
    %v1791 = vand.u32 %v1490, 2147483648
    %v1792 = vsel %vm1790, %v1791, %v1789
    %v1793 = vrsqrt.pop %v1491
    %v1794 = vmul.f32 %v1491, %v1793
    %vm1795 = vcmp.eq.f32.partialorder %v1491, inf
    %v1796 = vsel %vm1795, %v1491, %v1794
    %vm1797 = vcmp.eq.f32.partialorder %v1491, 0.0
    %v1798 = vand.u32 %v1491, 2147483648
    %v1799 = vsel %vm1797, %v1798, %v1796
    %v1800 = vrsqrt.pop %v1492
    %v1801 = vmul.f32 %v1492, %v1800
    %vm1802 = vcmp.eq.f32.partialorder %v1492, inf
    %v1803 = vsel %vm1802, %v1492, %v1801
    %vm1804 = vcmp.eq.f32.partialorder %v1492, 0.0
    %v1805 = vand.u32 %v1492, 2147483648
    %v1806 = vsel %vm1804, %v1805, %v1803
    %v1807 = vrsqrt.pop %v1493
    %v1808 = vmul.f32 %v1493, %v1807
    %vm1809 = vcmp.eq.f32.partialorder %v1493, inf
    %v1810 = vsel %vm1809, %v1493, %v1808
    %vm1811 = vcmp.eq.f32.partialorder %v1493, 0.0
    %v1812 = vand.u32 %v1493, 2147483648
    %v1813 = vsel %vm1811, %v1812, %v1810
    %v1814 = vrsqrt.pop %v1494
    %v1815 = vmul.f32 %v1494, %v1814
    %vm1816 = vcmp.eq.f32.partialorder %v1494, inf
    %v1817 = vsel %vm1816, %v1494, %v1815
    %vm1818 = vcmp.eq.f32.partialorder %v1494, 0.0
    %v1819 = vand.u32 %v1494, 2147483648
    %v1820 = vsel %vm1818, %v1819, %v1817
    %v1821 = vrsqrt.pop %v1495
    %v1822 = vmul.f32 %v1495, %v1821
    %vm1823 = vcmp.eq.f32.partialorder %v1495, inf
    %v1824 = vsel %vm1823, %v1495, %v1822
    %vm1825 = vcmp.eq.f32.partialorder %v1495, 0.0
    %v1826 = vand.u32 %v1495, 2147483648
    %v1827 = vsel %vm1825, %v1826, %v1824
    %v1828 = vrsqrt.pop %v1496
    %v1829 = vmul.f32 %v1496, %v1828
    %vm1830 = vcmp.eq.f32.partialorder %v1496, inf
    %v1831 = vsel %vm1830, %v1496, %v1829
    %vm1832 = vcmp.eq.f32.partialorder %v1496, 0.0
    %v1833 = vand.u32 %v1496, 2147483648
    %v1834 = vsel %vm1832, %v1833, %v1831
    %v1835 = vrsqrt.pop %v1497
    %v1836 = vmul.f32 %v1497, %v1835
    %vm1837 = vcmp.eq.f32.partialorder %v1497, inf
    %v1838 = vsel %vm1837, %v1497, %v1836
    %vm1839 = vcmp.eq.f32.partialorder %v1497, 0.0
    %v1840 = vand.u32 %v1497, 2147483648
    %v1841 = vsel %vm1839, %v1840, %v1838
    %v1842 = vrsqrt.pop %v1498
    %v1843 = vmul.f32 %v1498, %v1842
    %vm1844 = vcmp.eq.f32.partialorder %v1498, inf
    %v1845 = vsel %vm1844, %v1498, %v1843
    %vm1846 = vcmp.eq.f32.partialorder %v1498, 0.0
    %v1847 = vand.u32 %v1498, 2147483648
    %v1848 = vsel %vm1846, %v1847, %v1845
    %v1849 = vrsqrt.pop %v1499
    %v1850 = vmul.f32 %v1499, %v1849
    %vm1851 = vcmp.eq.f32.partialorder %v1499, inf
    %v1852 = vsel %vm1851, %v1499, %v1850
    %vm1853 = vcmp.eq.f32.partialorder %v1499, 0.0
    %v1854 = vand.u32 %v1499, 2147483648
    %v1855 = vsel %vm1853, %v1854, %v1852
    %v1856 = vrsqrt.pop %v1500
    %v1857 = vmul.f32 %v1500, %v1856
    %vm1858 = vcmp.eq.f32.partialorder %v1500, inf
    %v1859 = vsel %vm1858, %v1500, %v1857
    %vm1860 = vcmp.eq.f32.partialorder %v1500, 0.0
    %v1861 = vand.u32 %v1500, 2147483648
    %v1862 = vsel %vm1860, %v1861, %v1859
    %v1863 = vrsqrt.pop %v1501
    %v1864 = vmul.f32 %v1501, %v1863
    %vm1865 = vcmp.eq.f32.partialorder %v1501, inf
    %v1866 = vsel %vm1865, %v1501, %v1864
    %vm1867 = vcmp.eq.f32.partialorder %v1501, 0.0
    %v1868 = vand.u32 %v1501, 2147483648
    %v1869 = vsel %vm1867, %v1868, %v1866
    %v1870 = vrsqrt.pop %v1502
    %v1871 = vmul.f32 %v1502, %v1870
    %vm1872 = vcmp.eq.f32.partialorder %v1502, inf
    %v1873 = vsel %vm1872, %v1502, %v1871
    %vm1874 = vcmp.eq.f32.partialorder %v1502, 0.0
    %v1875 = vand.u32 %v1502, 2147483648
    %v1876 = vsel %vm1874, %v1875, %v1873
    %v1877 = vrsqrt.pop %v1503
    %v1878 = vmul.f32 %v1503, %v1877
    %vm1879 = vcmp.eq.f32.partialorder %v1503, inf
    %v1880 = vsel %vm1879, %v1503, %v1878
    %vm1881 = vcmp.eq.f32.partialorder %v1503, 0.0
    %v1882 = vand.u32 %v1503, 2147483648
    %v1883 = vsel %vm1881, %v1882, %v1880
    %v1884 = vrsqrt.pop %v1504
    %v1885 = vmul.f32 %v1504, %v1884
    %vm1886 = vcmp.eq.f32.partialorder %v1504, inf
    %v1887 = vsel %vm1886, %v1504, %v1885
    %vm1888 = vcmp.eq.f32.partialorder %v1504, 0.0
    %v1889 = vand.u32 %v1504, 2147483648
    %v1890 = vsel %vm1888, %v1889, %v1887
    %v1891 = vrsqrt.pop %v1505
    %v1892 = vmul.f32 %v1505, %v1891
    %vm1893 = vcmp.eq.f32.partialorder %v1505, inf
    %v1894 = vsel %vm1893, %v1505, %v1892
    %vm1895 = vcmp.eq.f32.partialorder %v1505, 0.0
    %v1896 = vand.u32 %v1505, 2147483648
    %v1897 = vsel %vm1895, %v1896, %v1894
    %v1898 = vrsqrt.pop %v1506
    %v1899 = vmul.f32 %v1506, %v1898
    %vm1900 = vcmp.eq.f32.partialorder %v1506, inf
    %v1901 = vsel %vm1900, %v1506, %v1899
    %vm1902 = vcmp.eq.f32.partialorder %v1506, 0.0
    %v1903 = vand.u32 %v1506, 2147483648
    %v1904 = vsel %vm1902, %v1903, %v1901
    %v1905 = vrsqrt.pop %v1507
    %v1906 = vmul.f32 %v1507, %v1905
    %vm1907 = vcmp.eq.f32.partialorder %v1507, inf
    %v1908 = vsel %vm1907, %v1507, %v1906
    %vm1909 = vcmp.eq.f32.partialorder %v1507, 0.0
    %v1910 = vand.u32 %v1507, 2147483648
    %v1911 = vsel %vm1909, %v1910, %v1908
    %v1912 = vrsqrt.pop %v1508
    %v1913 = vmul.f32 %v1508, %v1912
    %vm1914 = vcmp.eq.f32.partialorder %v1508, inf
    %v1915 = vsel %vm1914, %v1508, %v1913
    %vm1916 = vcmp.eq.f32.partialorder %v1508, 0.0
    %v1917 = vand.u32 %v1508, 2147483648
    %v1918 = vsel %vm1916, %v1917, %v1915
    %v1919 = vrsqrt.pop %v1509
    %v1920 = vmul.f32 %v1509, %v1919
    %vm1921 = vcmp.eq.f32.partialorder %v1509, inf
    %v1922 = vsel %vm1921, %v1509, %v1920
    %vm1923 = vcmp.eq.f32.partialorder %v1509, 0.0
    %v1924 = vand.u32 %v1509, 2147483648
    %v1925 = vsel %vm1923, %v1924, %v1922
    %v1926 = vrsqrt.pop %v1510
    %v1927 = vmul.f32 %v1510, %v1926
    %vm1928 = vcmp.eq.f32.partialorder %v1510, inf
    %v1929 = vsel %vm1928, %v1510, %v1927
    %vm1930 = vcmp.eq.f32.partialorder %v1510, 0.0
    %v1931 = vand.u32 %v1510, 2147483648
    %v1932 = vsel %vm1930, %v1931, %v1929
    %v1933 = vrsqrt.pop %v1511
    %v1934 = vmul.f32 %v1511, %v1933
    %vm1935 = vcmp.eq.f32.partialorder %v1511, inf
    %v1936 = vsel %vm1935, %v1511, %v1934
    %vm1937 = vcmp.eq.f32.partialorder %v1511, 0.0
    %v1938 = vand.u32 %v1511, 2147483648
    %v1939 = vsel %vm1937, %v1938, %v1936
    %v1940 = vrsqrt.pop %v1512
    %v1941 = vmul.f32 %v1512, %v1940
    %vm1942 = vcmp.eq.f32.partialorder %v1512, inf
    %v1943 = vsel %vm1942, %v1512, %v1941
    %vm1944 = vcmp.eq.f32.partialorder %v1512, 0.0
    %v1945 = vand.u32 %v1512, 2147483648
    %v1946 = vsel %vm1944, %v1945, %v1943
    %v1947 = vrsqrt.pop %v1513
    %v1948 = vmul.f32 %v1513, %v1947
    %vm1949 = vcmp.eq.f32.partialorder %v1513, inf
    %v1950 = vsel %vm1949, %v1513, %v1948
    %vm1951 = vcmp.eq.f32.partialorder %v1513, 0.0
    %v1952 = vand.u32 %v1513, 2147483648
    %v1953 = vsel %vm1951, %v1952, %v1950
    %v1954 = vrsqrt.pop %v1514
    %v1955 = vmul.f32 %v1514, %v1954
    %vm1956 = vcmp.eq.f32.partialorder %v1514, inf
    %v1957 = vsel %vm1956, %v1514, %v1955
    %vm1958 = vcmp.eq.f32.partialorder %v1514, 0.0
    %v1959 = vand.u32 %v1514, 2147483648
    %v1960 = vsel %vm1958, %v1959, %v1957
    %v1961 = vrsqrt.pop %v1515
    %v1962 = vmul.f32 %v1515, %v1961
    %vm1963 = vcmp.eq.f32.partialorder %v1515, inf
    %v1964 = vsel %vm1963, %v1515, %v1962
    %vm1965 = vcmp.eq.f32.partialorder %v1515, 0.0
    %v1966 = vand.u32 %v1515, 2147483648
    %v1967 = vsel %vm1965, %v1966, %v1964
    %v1968 = vrsqrt.pop %v1516
    %v1969 = vmul.f32 %v1516, %v1968
    %vm1970 = vcmp.eq.f32.partialorder %v1516, inf
    %v1971 = vsel %vm1970, %v1516, %v1969
    %vm1972 = vcmp.eq.f32.partialorder %v1516, 0.0
    %v1973 = vand.u32 %v1516, 2147483648
    %v1974 = vsel %vm1972, %v1973, %v1971
    %v1975 = vrsqrt.pop %v1517
    %v1976 = vmul.f32 %v1517, %v1975
    %vm1977 = vcmp.eq.f32.partialorder %v1517, inf
    %v1978 = vsel %vm1977, %v1517, %v1976
    %vm1979 = vcmp.eq.f32.partialorder %v1517, 0.0
    %v1980 = vand.u32 %v1517, 2147483648
    %v1981 = vsel %vm1979, %v1980, %v1978
    %v1982 = vrsqrt.pop %v1518
    %v1983 = vmul.f32 %v1518, %v1982
    %vm1984 = vcmp.eq.f32.partialorder %v1518, inf
    %v1985 = vsel %vm1984, %v1518, %v1983
    %vm1986 = vcmp.eq.f32.partialorder %v1518, 0.0
    %v1987 = vand.u32 %v1518, 2147483648
    %v1988 = vsel %vm1986, %v1987, %v1985
    %v1989 = vrsqrt.pop %v1519
    %v1990 = vmul.f32 %v1519, %v1989
    %vm1991 = vcmp.eq.f32.partialorder %v1519, inf
    %v1992 = vsel %vm1991, %v1519, %v1990
    %vm1993 = vcmp.eq.f32.partialorder %v1519, 0.0
    %v1994 = vand.u32 %v1519, 2147483648
    %v1995 = vsel %vm1993, %v1994, %v1992
    %v1996 = vrsqrt.pop %v1520
    %v1997 = vmul.f32 %v1520, %v1996
    %vm1998 = vcmp.eq.f32.partialorder %v1520, inf
    %v1999 = vsel %vm1998, %v1520, %v1997
    %vm2000 = vcmp.eq.f32.partialorder %v1520, 0.0
    %v2001 = vand.u32 %v1520, 2147483648
    %v2002 = vsel %vm2000, %v2001, %v1999
    %v2003 = vrsqrt.pop %v1521
    %v2004 = vmul.f32 %v1521, %v2003
    %vm2005 = vcmp.eq.f32.partialorder %v1521, inf
    %v2006 = vsel %vm2005, %v1521, %v2004
    %vm2007 = vcmp.eq.f32.partialorder %v1521, 0.0
    %v2008 = vand.u32 %v1521, 2147483648
    %v2009 = vsel %vm2007, %v2008, %v2006
    %v2010 = vrsqrt.pop %v1522
    %v2011 = vmul.f32 %v1522, %v2010
    %vm2012 = vcmp.eq.f32.partialorder %v1522, inf
    %v2013 = vsel %vm2012, %v1522, %v2011
    %vm2014 = vcmp.eq.f32.partialorder %v1522, 0.0
    %v2015 = vand.u32 %v1522, 2147483648
    %v2016 = vsel %vm2014, %v2015, %v2013
    %v2017 = vrsqrt.pop %v1523
    %v2018 = vmul.f32 %v1523, %v2017
    %vm2019 = vcmp.eq.f32.partialorder %v1523, inf
    %v2020 = vsel %vm2019, %v1523, %v2018
    %vm2021 = vcmp.eq.f32.partialorder %v1523, 0.0
    %v2022 = vand.u32 %v1523, 2147483648
    %v2023 = vsel %vm2021, %v2022, %v2020
    %v2024 = vrsqrt.pop %v1524
    %v2025 = vmul.f32 %v1524, %v2024
    %vm2026 = vcmp.eq.f32.partialorder %v1524, inf
    %v2027 = vsel %vm2026, %v1524, %v2025
    %vm2028 = vcmp.eq.f32.partialorder %v1524, 0.0
    %v2029 = vand.u32 %v1524, 2147483648
    %v2030 = vsel %vm2028, %v2029, %v2027
    %v2031 = vrsqrt.pop %v1525
    %v2032 = vmul.f32 %v1525, %v2031
    %vm2033 = vcmp.eq.f32.partialorder %v1525, inf
    %v2034 = vsel %vm2033, %v1525, %v2032
    %vm2035 = vcmp.eq.f32.partialorder %v1525, 0.0
    %v2036 = vand.u32 %v1525, 2147483648
    %v2037 = vsel %vm2035, %v2036, %v2034
    %v2038 = vrsqrt.pop %v1526
    %v2039 = vmul.f32 %v1526, %v2038
    %vm2040 = vcmp.eq.f32.partialorder %v1526, inf
    %v2041 = vsel %vm2040, %v1526, %v2039
    %vm2042 = vcmp.eq.f32.partialorder %v1526, 0.0
    %v2043 = vand.u32 %v1526, 2147483648
    %v2044 = vsel %vm2042, %v2043, %v2041
    %v2045 = vrsqrt.pop %v1527
    %v2046 = vmul.f32 %v1527, %v2045
    %vm2047 = vcmp.eq.f32.partialorder %v1527, inf
    %v2048 = vsel %vm2047, %v1527, %v2046
    %vm2049 = vcmp.eq.f32.partialorder %v1527, 0.0
    %v2050 = vand.u32 %v1527, 2147483648
    %v2051 = vsel %vm2049, %v2050, %v2048
    %v2052 = vrsqrt.pop %v1528
    %v2053 = vmul.f32 %v1528, %v2052
    %vm2054 = vcmp.eq.f32.partialorder %v1528, inf
    %v2055 = vsel %vm2054, %v1528, %v2053
    %vm2056 = vcmp.eq.f32.partialorder %v1528, 0.0
    %v2057 = vand.u32 %v1528, 2147483648
    %v2058 = vsel %vm2056, %v2057, %v2055
    %v2059 = vrsqrt.pop %v1529
    %v2060 = vmul.f32 %v1529, %v2059
    %vm2061 = vcmp.eq.f32.partialorder %v1529, inf
    %v2062 = vsel %vm2061, %v1529, %v2060
    %vm2063 = vcmp.eq.f32.partialorder %v1529, 0.0
    %v2064 = vand.u32 %v1529, 2147483648
    %v2065 = vsel %vm2063, %v2064, %v2062
    %v2066 = vrsqrt.pop %v1530
    %v2067 = vmul.f32 %v1530, %v2066
    %vm2068 = vcmp.eq.f32.partialorder %v1530, inf
    %v2069 = vsel %vm2068, %v1530, %v2067
    %vm2070 = vcmp.eq.f32.partialorder %v1530, 0.0
    %v2071 = vand.u32 %v1530, 2147483648
    %v2072 = vsel %vm2070, %v2071, %v2069
    %v2073 = vrsqrt.pop %v1531
    %v2074 = vmul.f32 %v1531, %v2073
    %vm2075 = vcmp.eq.f32.partialorder %v1531, inf
    %v2076 = vsel %vm2075, %v1531, %v2074
    %vm2077 = vcmp.eq.f32.partialorder %v1531, 0.0
    %v2078 = vand.u32 %v1531, 2147483648
    %v2079 = vsel %vm2077, %v2078, %v2076
    %v2080 = vrsqrt.pop %v1532
    %v2081 = vmul.f32 %v1532, %v2080
    %vm2082 = vcmp.eq.f32.partialorder %v1532, inf
    %v2083 = vsel %vm2082, %v1532, %v2081
    %vm2084 = vcmp.eq.f32.partialorder %v1532, 0.0
    %v2085 = vand.u32 %v1532, 2147483648
    %v2086 = vsel %vm2084, %v2085, %v2083
    %v2087 = vrsqrt.pop %v1533
    %v2088 = vmul.f32 %v1533, %v2087
    %vm2089 = vcmp.eq.f32.partialorder %v1533, inf
    %v2090 = vsel %vm2089, %v1533, %v2088
    %vm2091 = vcmp.eq.f32.partialorder %v1533, 0.0
    %v2092 = vand.u32 %v1533, 2147483648
    %v2093 = vsel %vm2091, %v2092, %v2090
    %v2094 = vrsqrt.pop %v1534
    %v2095 = vmul.f32 %v1534, %v2094
    %vm2096 = vcmp.eq.f32.partialorder %v1534, inf
    %v2097 = vsel %vm2096, %v1534, %v2095
    %vm2098 = vcmp.eq.f32.partialorder %v1534, 0.0
    %v2099 = vand.u32 %v1534, 2147483648
    %v2100 = vsel %vm2098, %v2099, %v2097
    %v2101 = vrsqrt.pop %v1535
    %v2102 = vmul.f32 %v1535, %v2101
    %vm2103 = vcmp.eq.f32.partialorder %v1535, inf
    %v2104 = vsel %vm2103, %v1535, %v2102
    %vm2105 = vcmp.eq.f32.partialorder %v1535, 0.0
    %v2106 = vand.u32 %v1535, 2147483648
    %v2107 = vsel %vm2105, %v2106, %v2104
    %v2108 = vrsqrt.pop %v1536
    %v2109 = vmul.f32 %v1536, %v2108
    %vm2110 = vcmp.eq.f32.partialorder %v1536, inf
    %v2111 = vsel %vm2110, %v1536, %v2109
    %vm2112 = vcmp.eq.f32.partialorder %v1536, 0.0
    %v2113 = vand.u32 %v1536, 2147483648
    %v2114 = vsel %vm2112, %v2113, %v2111
    %v2115 = vrsqrt.pop %v1537
    %v2116 = vmul.f32 %v1537, %v2115
    %vm2117 = vcmp.eq.f32.partialorder %v1537, inf
    %v2118 = vsel %vm2117, %v1537, %v2116
    %vm2119 = vcmp.eq.f32.partialorder %v1537, 0.0
    %v2120 = vand.u32 %v1537, 2147483648
    %v2121 = vsel %vm2119, %v2120, %v2118
    %v2122 = vrsqrt.pop %v1538
    %v2123 = vmul.f32 %v1538, %v2122
    %vm2124 = vcmp.eq.f32.partialorder %v1538, inf
    %v2125 = vsel %vm2124, %v1538, %v2123
    %vm2126 = vcmp.eq.f32.partialorder %v1538, 0.0
    %v2127 = vand.u32 %v1538, 2147483648
    %v2128 = vsel %vm2126, %v2127, %v2125
    %v2129 = vrsqrt.pop %v1539
    %v2130 = vmul.f32 %v1539, %v2129
    %vm2131 = vcmp.eq.f32.partialorder %v1539, inf
    %v2132 = vsel %vm2131, %v1539, %v2130
    %vm2133 = vcmp.eq.f32.partialorder %v1539, 0.0
    %v2134 = vand.u32 %v1539, 2147483648
    %v2135 = vsel %vm2133, %v2134, %v2132
    %v2136 = vrsqrt.pop %v1540
    %v2137 = vmul.f32 %v1540, %v2136
    %vm2138 = vcmp.eq.f32.partialorder %v1540, inf
    %v2139 = vsel %vm2138, %v1540, %v2137
    %vm2140 = vcmp.eq.f32.partialorder %v1540, 0.0
    %v2141 = vand.u32 %v1540, 2147483648
    %v2142 = vsel %vm2140, %v2141, %v2139
    %v2143 = vrsqrt.pop %v1541
    %v2144 = vmul.f32 %v1541, %v2143
    %vm2145 = vcmp.eq.f32.partialorder %v1541, inf
    %v2146 = vsel %vm2145, %v1541, %v2144
    %vm2147 = vcmp.eq.f32.partialorder %v1541, 0.0
    %v2148 = vand.u32 %v1541, 2147483648
    %v2149 = vsel %vm2147, %v2148, %v2146
    %v2150 = vrsqrt.pop %v1542
    %v2151 = vmul.f32 %v1542, %v2150
    %vm2152 = vcmp.eq.f32.partialorder %v1542, inf
    %v2153 = vsel %vm2152, %v1542, %v2151
    %vm2154 = vcmp.eq.f32.partialorder %v1542, 0.0
    %v2155 = vand.u32 %v1542, 2147483648
    %v2156 = vsel %vm2154, %v2155, %v2153
    %v2157 = vrsqrt.pop %v1543
    %v2158 = vmul.f32 %v1543, %v2157
    %vm2159 = vcmp.eq.f32.partialorder %v1543, inf
    %v2160 = vsel %vm2159, %v1543, %v2158
    %vm2161 = vcmp.eq.f32.partialorder %v1543, 0.0
    %v2162 = vand.u32 %v1543, 2147483648
    %v2163 = vsel %vm2161, %v2162, %v2160
    %v2164 = vrsqrt.pop %v1544
    %v2165 = vmul.f32 %v1544, %v2164
    %vm2166 = vcmp.eq.f32.partialorder %v1544, inf
    %v2167 = vsel %vm2166, %v1544, %v2165
    %vm2168 = vcmp.eq.f32.partialorder %v1544, 0.0
    %v2169 = vand.u32 %v1544, 2147483648
    %v2170 = vsel %vm2168, %v2169, %v2167
    %v2171 = vrsqrt.pop %v1545
    %v2172 = vmul.f32 %v1545, %v2171
    %vm2173 = vcmp.eq.f32.partialorder %v1545, inf
    %v2174 = vsel %vm2173, %v1545, %v2172
    %vm2175 = vcmp.eq.f32.partialorder %v1545, 0.0
    %v2176 = vand.u32 %v1545, 2147483648
    %v2177 = vsel %vm2175, %v2176, %v2174
    %v2178 = vrsqrt.pop %v1546
    %v2179 = vmul.f32 %v1546, %v2178
    %vm2180 = vcmp.eq.f32.partialorder %v1546, inf
    %v2181 = vsel %vm2180, %v1546, %v2179
    %vm2182 = vcmp.eq.f32.partialorder %v1546, 0.0
    %v2183 = vand.u32 %v1546, 2147483648
    %v2184 = vsel %vm2182, %v2183, %v2181
    %v2185 = vrsqrt.pop %v1547
    %v2186 = vmul.f32 %v1547, %v2185
    %vm2187 = vcmp.eq.f32.partialorder %v1547, inf
    %v2188 = vsel %vm2187, %v1547, %v2186
    %vm2189 = vcmp.eq.f32.partialorder %v1547, 0.0
    %v2190 = vand.u32 %v1547, 2147483648
    %v2191 = vsel %vm2189, %v2190, %v2188
    %v2192 = vrsqrt.pop %v1548
    %v2193 = vmul.f32 %v1548, %v2192
    %vm2194 = vcmp.eq.f32.partialorder %v1548, inf
    %v2195 = vsel %vm2194, %v1548, %v2193
    %vm2196 = vcmp.eq.f32.partialorder %v1548, 0.0
    %v2197 = vand.u32 %v1548, 2147483648
    %v2198 = vsel %vm2196, %v2197, %v2195
    %v2199 = vrsqrt.pop %v1549
    %v2200 = vmul.f32 %v1549, %v2199
    %vm2201 = vcmp.eq.f32.partialorder %v1549, inf
    %v2202 = vsel %vm2201, %v1549, %v2200
    %vm2203 = vcmp.eq.f32.partialorder %v1549, 0.0
    %v2204 = vand.u32 %v1549, 2147483648
    %v2205 = vsel %vm2203, %v2204, %v2202
    %v2206 = vrsqrt.pop %v1550
    %v2207 = vmul.f32 %v1550, %v2206
    %vm2208 = vcmp.eq.f32.partialorder %v1550, inf
    %v2209 = vsel %vm2208, %v1550, %v2207
    %vm2210 = vcmp.eq.f32.partialorder %v1550, 0.0
    %v2211 = vand.u32 %v1550, 2147483648
    %v2212 = vsel %vm2210, %v2211, %v2209
    %v2213 = vrsqrt.pop %v1551
    %v2214 = vmul.f32 %v1551, %v2213
    %vm2215 = vcmp.eq.f32.partialorder %v1551, inf
    %v2216 = vsel %vm2215, %v1551, %v2214
    %vm2217 = vcmp.eq.f32.partialorder %v1551, 0.0
    %v2218 = vand.u32 %v1551, 2147483648
    %v2219 = vsel %vm2217, %v2218, %v2216
    %v2220 = vrsqrt.pop %v1552
    %v2221 = vmul.f32 %v1552, %v2220
    %vm2222 = vcmp.eq.f32.partialorder %v1552, inf
    %v2223 = vsel %vm2222, %v1552, %v2221
    %vm2224 = vcmp.eq.f32.partialorder %v1552, 0.0
    %v2225 = vand.u32 %v1552, 2147483648
    %v2226 = vsel %vm2224, %v2225, %v2223
    %v2227 = vrsqrt.pop %v1553
    %v2228 = vmul.f32 %v1553, %v2227
    %vm2229 = vcmp.eq.f32.partialorder %v1553, inf
    %v2230 = vsel %vm2229, %v1553, %v2228
    %vm2231 = vcmp.eq.f32.partialorder %v1553, 0.0
    %v2232 = vand.u32 %v1553, 2147483648
    %v2233 = vsel %vm2231, %v2232, %v2230
    %v2234 = vrsqrt.pop %v1554
    %v2235 = vmul.f32 %v1554, %v2234
    %vm2236 = vcmp.eq.f32.partialorder %v1554, inf
    %v2237 = vsel %vm2236, %v1554, %v2235
    %vm2238 = vcmp.eq.f32.partialorder %v1554, 0.0
    %v2239 = vand.u32 %v1554, 2147483648
    %v2240 = vsel %vm2238, %v2239, %v2237
    %v2241 = vrsqrt.pop %v1555
    %v2242 = vmul.f32 %v1555, %v2241
    %vm2243 = vcmp.eq.f32.partialorder %v1555, inf
    %v2244 = vsel %vm2243, %v1555, %v2242
    %vm2245 = vcmp.eq.f32.partialorder %v1555, 0.0
    %v2246 = vand.u32 %v1555, 2147483648
    %v2247 = vsel %vm2245, %v2246, %v2244
    %v2248 = vrsqrt.pop %v1556
    %v2249 = vmul.f32 %v1556, %v2248
    %vm2250 = vcmp.eq.f32.partialorder %v1556, inf
    %v2251 = vsel %vm2250, %v1556, %v2249
    %vm2252 = vcmp.eq.f32.partialorder %v1556, 0.0
    %v2253 = vand.u32 %v1556, 2147483648
    %v2254 = vsel %vm2252, %v2253, %v2251
    %v2255 = vrsqrt.pop %v1557
    %v2256 = vmul.f32 %v1557, %v2255
    %vm2257 = vcmp.eq.f32.partialorder %v1557, inf
    %v2258 = vsel %vm2257, %v1557, %v2256
    %vm2259 = vcmp.eq.f32.partialorder %v1557, 0.0
    %v2260 = vand.u32 %v1557, 2147483648
    %v2261 = vsel %vm2259, %v2260, %v2258
    %v2262 = vrsqrt.pop %v1558
    %v2263 = vmul.f32 %v1558, %v2262
    %vm2264 = vcmp.eq.f32.partialorder %v1558, inf
    %v2265 = vsel %vm2264, %v1558, %v2263
    %vm2266 = vcmp.eq.f32.partialorder %v1558, 0.0
    %v2267 = vand.u32 %v1558, 2147483648
    %v2268 = vsel %vm2266, %v2267, %v2265
    %v2269 = vrsqrt.pop %v1559
    %v2270 = vmul.f32 %v1559, %v2269
    %vm2271 = vcmp.eq.f32.partialorder %v1559, inf
    %v2272 = vsel %vm2271, %v1559, %v2270
    %vm2273 = vcmp.eq.f32.partialorder %v1559, 0.0
    %v2274 = vand.u32 %v1559, 2147483648
    %v2275 = vsel %vm2273, %v2274, %v2272
    %v2276 = vrsqrt.pop %v1560
    %v2277 = vmul.f32 %v1560, %v2276
    %vm2278 = vcmp.eq.f32.partialorder %v1560, inf
    %v2279 = vsel %vm2278, %v1560, %v2277
    %vm2280 = vcmp.eq.f32.partialorder %v1560, 0.0
    %v2281 = vand.u32 %v1560, 2147483648
    %v2282 = vsel %vm2280, %v2281, %v2279
    %v2283 = vrsqrt.pop %v1561
    %v2284 = vmul.f32 %v1561, %v2283
    %vm2285 = vcmp.eq.f32.partialorder %v1561, inf
    %v2286 = vsel %vm2285, %v1561, %v2284
    %vm2287 = vcmp.eq.f32.partialorder %v1561, 0.0
    %v2288 = vand.u32 %v1561, 2147483648
    %v2289 = vsel %vm2287, %v2288, %v2286
    %v2290 = vrsqrt.pop %v1562
    %v2291 = vmul.f32 %v1562, %v2290
    %vm2292 = vcmp.eq.f32.partialorder %v1562, inf
    %v2293 = vsel %vm2292, %v1562, %v2291
    %vm2294 = vcmp.eq.f32.partialorder %v1562, 0.0
    %v2295 = vand.u32 %v1562, 2147483648
    %v2296 = vsel %vm2294, %v2295, %v2293
    %v2297 = vrsqrt.pop %v1563
    %v2298 = vmul.f32 %v1563, %v2297
    %vm2299 = vcmp.eq.f32.partialorder %v1563, inf
    %v2300 = vsel %vm2299, %v1563, %v2298
    %vm2301 = vcmp.eq.f32.partialorder %v1563, 0.0
    %v2302 = vand.u32 %v1563, 2147483648
    %v2303 = vsel %vm2301, %v2302, %v2300
    %v2304 = vrsqrt.pop %v1564
    %v2305 = vmul.f32 %v1564, %v2304
    %vm2306 = vcmp.eq.f32.partialorder %v1564, inf
    %v2307 = vsel %vm2306, %v1564, %v2305
    %vm2308 = vcmp.eq.f32.partialorder %v1564, 0.0
    %v2309 = vand.u32 %v1564, 2147483648
    %v2310 = vsel %vm2308, %v2309, %v2307
    %v2311 = vrsqrt.pop %v1565
    %v2312 = vmul.f32 %v1565, %v2311
    %vm2313 = vcmp.eq.f32.partialorder %v1565, inf
    %v2314 = vsel %vm2313, %v1565, %v2312
    %vm2315 = vcmp.eq.f32.partialorder %v1565, 0.0
    %v2316 = vand.u32 %v1565, 2147483648
    %v2317 = vsel %vm2315, %v2316, %v2314
    %v2318 = vrsqrt.pop %v1566
    %v2319 = vmul.f32 %v1566, %v2318
    %vm2320 = vcmp.eq.f32.partialorder %v1566, inf
    %v2321 = vsel %vm2320, %v1566, %v2319
    %vm2322 = vcmp.eq.f32.partialorder %v1566, 0.0
    %v2323 = vand.u32 %v1566, 2147483648
    %v2324 = vsel %vm2322, %v2323, %v2321
    %v2325 = vrsqrt.pop %v1567
    %v2326 = vmul.f32 %v1567, %v2325
    %vm2327 = vcmp.eq.f32.partialorder %v1567, inf
    %v2328 = vsel %vm2327, %v1567, %v2326
    %vm2329 = vcmp.eq.f32.partialorder %v1567, 0.0
    %v2330 = vand.u32 %v1567, 2147483648
    %v2331 = vsel %vm2329, %v2330, %v2328
    %v2332 = vrsqrt.pop %v1568
    %v2333 = vmul.f32 %v1568, %v2332
    %vm2334 = vcmp.eq.f32.partialorder %v1568, inf
    %v2335 = vsel %vm2334, %v1568, %v2333
    %vm2336 = vcmp.eq.f32.partialorder %v1568, 0.0
    %v2337 = vand.u32 %v1568, 2147483648
    %v2338 = vsel %vm2336, %v2337, %v2335
    %v2339 = vrsqrt.pop %v1569
    %v2340 = vmul.f32 %v1569, %v2339
    %vm2341 = vcmp.eq.f32.partialorder %v1569, inf
    %v2342 = vsel %vm2341, %v1569, %v2340
    %vm2343 = vcmp.eq.f32.partialorder %v1569, 0.0
    %v2344 = vand.u32 %v1569, 2147483648
    %v2345 = vsel %vm2343, %v2344, %v2342
    %v2346 = vrsqrt.pop %v1570
    %v2347 = vmul.f32 %v1570, %v2346
    %vm2348 = vcmp.eq.f32.partialorder %v1570, inf
    %v2349 = vsel %vm2348, %v1570, %v2347
    %vm2350 = vcmp.eq.f32.partialorder %v1570, 0.0
    %v2351 = vand.u32 %v1570, 2147483648
    %v2352 = vsel %vm2350, %v2351, %v2349
    %v2353 = vrsqrt.pop %v1571
    %v2354 = vmul.f32 %v1571, %v2353
    %vm2355 = vcmp.eq.f32.partialorder %v1571, inf
    %v2356 = vsel %vm2355, %v1571, %v2354
    %vm2357 = vcmp.eq.f32.partialorder %v1571, 0.0
    %v2358 = vand.u32 %v1571, 2147483648
    %v2359 = vsel %vm2357, %v2358, %v2356
    %v2360 = vrsqrt.pop %v1572
    %v2361 = vmul.f32 %v1572, %v2360
    %vm2362 = vcmp.eq.f32.partialorder %v1572, inf
    %v2363 = vsel %vm2362, %v1572, %v2361
    %vm2364 = vcmp.eq.f32.partialorder %v1572, 0.0
    %v2365 = vand.u32 %v1572, 2147483648
    %v2366 = vsel %vm2364, %v2365, %v2363
    %v2367 = vrsqrt.pop %v1573
    %v2368 = vmul.f32 %v1573, %v2367
    %vm2369 = vcmp.eq.f32.partialorder %v1573, inf
    %v2370 = vsel %vm2369, %v1573, %v2368
    %vm2371 = vcmp.eq.f32.partialorder %v1573, 0.0
    %v2372 = vand.u32 %v1573, 2147483648
    %v2373 = vsel %vm2371, %v2372, %v2370
    %v2374 = vrsqrt.pop %v1574
    %v2375 = vmul.f32 %v1574, %v2374
    %vm2376 = vcmp.eq.f32.partialorder %v1574, inf
    %v2377 = vsel %vm2376, %v1574, %v2375
    %vm2378 = vcmp.eq.f32.partialorder %v1574, 0.0
    %v2379 = vand.u32 %v1574, 2147483648
    %v2380 = vsel %vm2378, %v2379, %v2377
    %v2381 = vrsqrt.pop %v1575
    %v2382 = vmul.f32 %v1575, %v2381
    %vm2383 = vcmp.eq.f32.partialorder %v1575, inf
    %v2384 = vsel %vm2383, %v1575, %v2382
    %vm2385 = vcmp.eq.f32.partialorder %v1575, 0.0
    %v2386 = vand.u32 %v1575, 2147483648
    %v2387 = vsel %vm2385, %v2386, %v2384
    %v2388 = vrsqrt.pop %v1576
    %v2389 = vmul.f32 %v1576, %v2388
    %vm2390 = vcmp.eq.f32.partialorder %v1576, inf
    %v2391 = vsel %vm2390, %v1576, %v2389
    %vm2392 = vcmp.eq.f32.partialorder %v1576, 0.0
    %v2393 = vand.u32 %v1576, 2147483648
    %v2394 = vsel %vm2392, %v2393, %v2391
    %v2395 = vrsqrt.pop %v1577
    %v2396 = vmul.f32 %v1577, %v2395
    %vm2397 = vcmp.eq.f32.partialorder %v1577, inf
    %v2398 = vsel %vm2397, %v1577, %v2396
    %vm2399 = vcmp.eq.f32.partialorder %v1577, 0.0
    %v2400 = vand.u32 %v1577, 2147483648
    %v2401 = vsel %vm2399, %v2400, %v2398
    %v2402 = vrsqrt.pop %v1578
    %v2403 = vmul.f32 %v1578, %v2402
    %vm2404 = vcmp.eq.f32.partialorder %v1578, inf
    %v2405 = vsel %vm2404, %v1578, %v2403
    %vm2406 = vcmp.eq.f32.partialorder %v1578, 0.0
    %v2407 = vand.u32 %v1578, 2147483648
    %v2408 = vsel %vm2406, %v2407, %v2405
    %v2409 = vrsqrt.pop %v1579
    %v2410 = vmul.f32 %v1579, %v2409
    %vm2411 = vcmp.eq.f32.partialorder %v1579, inf
    %v2412 = vsel %vm2411, %v1579, %v2410
    %vm2413 = vcmp.eq.f32.partialorder %v1579, 0.0
    %v2414 = vand.u32 %v1579, 2147483648
    %v2415 = vsel %vm2413, %v2414, %v2412
    %v2416 = vrsqrt.pop %v1580
    %v2417 = vmul.f32 %v1580, %v2416
    %vm2418 = vcmp.eq.f32.partialorder %v1580, inf
    %v2419 = vsel %vm2418, %v1580, %v2417
    %vm2420 = vcmp.eq.f32.partialorder %v1580, 0.0
    %v2421 = vand.u32 %v1580, 2147483648
    %v2422 = vsel %vm2420, %v2421, %v2419
    %v2423 = vrsqrt.pop %v1581
    %v2424 = vmul.f32 %v1581, %v2423
    %vm2425 = vcmp.eq.f32.partialorder %v1581, inf
    %v2426 = vsel %vm2425, %v1581, %v2424
    %vm2427 = vcmp.eq.f32.partialorder %v1581, 0.0
    %v2428 = vand.u32 %v1581, 2147483648
    %v2429 = vsel %vm2427, %v2428, %v2426
    %v2430 = vrsqrt.pop %v1582
    %v2431 = vmul.f32 %v1582, %v2430
    %vm2432 = vcmp.eq.f32.partialorder %v1582, inf
    %v2433 = vsel %vm2432, %v1582, %v2431
    %vm2434 = vcmp.eq.f32.partialorder %v1582, 0.0
    %v2435 = vand.u32 %v1582, 2147483648
    %v2436 = vsel %vm2434, %v2435, %v2433
    %v2437 = vrsqrt.pop %v1583
    %v2438 = vmul.f32 %v1583, %v2437
    %vm2439 = vcmp.eq.f32.partialorder %v1583, inf
    %v2440 = vsel %vm2439, %v1583, %v2438
    %vm2441 = vcmp.eq.f32.partialorder %v1583, 0.0
    %v2442 = vand.u32 %v1583, 2147483648
    %v2443 = vsel %vm2441, %v2442, %v2440
    %v2444 = vrsqrt.pop %v1584
    %v2445 = vmul.f32 %v1584, %v2444
    %vm2446 = vcmp.eq.f32.partialorder %v1584, inf
    %v2447 = vsel %vm2446, %v1584, %v2445
    %vm2448 = vcmp.eq.f32.partialorder %v1584, 0.0
    %v2449 = vand.u32 %v1584, 2147483648
    %v2450 = vsel %vm2448, %v2449, %v2447
    %v2451 = vrsqrt.pop %v1585
    %v2452 = vmul.f32 %v1585, %v2451
    %vm2453 = vcmp.eq.f32.partialorder %v1585, inf
    %v2454 = vsel %vm2453, %v1585, %v2452
    %vm2455 = vcmp.eq.f32.partialorder %v1585, 0.0
    %v2456 = vand.u32 %v1585, 2147483648
    %v2457 = vsel %vm2455, %v2456, %v2454
    %v2458 = vrsqrt.pop %v1586
    %v2459 = vmul.f32 %v1586, %v2458
    %vm2460 = vcmp.eq.f32.partialorder %v1586, inf
    %v2461 = vsel %vm2460, %v1586, %v2459
    %vm2462 = vcmp.eq.f32.partialorder %v1586, 0.0
    %v2463 = vand.u32 %v1586, 2147483648
    %v2464 = vsel %vm2462, %v2463, %v2461
    %v2465 = vrsqrt.pop %v1587
    %v2466 = vmul.f32 %v1587, %v2465
    %vm2467 = vcmp.eq.f32.partialorder %v1587, inf
    %v2468 = vsel %vm2467, %v1587, %v2466
    %vm2469 = vcmp.eq.f32.partialorder %v1587, 0.0
    %v2470 = vand.u32 %v1587, 2147483648
    %v2471 = vsel %vm2469, %v2470, %v2468
    %v2472 = vrsqrt.pop %v1588
    %v2473 = vmul.f32 %v1588, %v2472
    %vm2474 = vcmp.eq.f32.partialorder %v1588, inf
    %v2475 = vsel %vm2474, %v1588, %v2473
    %vm2476 = vcmp.eq.f32.partialorder %v1588, 0.0
    %v2477 = vand.u32 %v1588, 2147483648
    %v2478 = vsel %vm2476, %v2477, %v2475
    %v2479 = vrsqrt.pop %v1589
    %v2480 = vmul.f32 %v1589, %v2479
    %vm2481 = vcmp.eq.f32.partialorder %v1589, inf
    %v2482 = vsel %vm2481, %v1589, %v2480
    %vm2483 = vcmp.eq.f32.partialorder %v1589, 0.0
    %v2484 = vand.u32 %v1589, 2147483648
    %v2485 = vsel %vm2483, %v2484, %v2482
    %v2486 = vadd.f32 %v1596, 1e-06
    %v2487 = vadd.f32 %v1603, 1e-06
    %v2488 = vadd.f32 %v1610, 1e-06
    %v2489 = vadd.f32 %v1617, 1e-06
    %v2490 = vadd.f32 %v1624, 1e-06
    %v2491 = vadd.f32 %v1631, 1e-06
    %v2492 = vadd.f32 %v1638, 1e-06
    %v2493 = vadd.f32 %v1645, 1e-06
    %v2494 = vadd.f32 %v1652, 1e-06
    %v2495 = vadd.f32 %v1659, 1e-06
    %v2496 = vadd.f32 %v1666, 1e-06
    %v2497 = vadd.f32 %v1673, 1e-06
    %v2498 = vadd.f32 %v1680, 1e-06
    %v2499 = vadd.f32 %v1687, 1e-06
    %v2500 = vadd.f32 %v1694, 1e-06
    %v2501 = vadd.f32 %v1701, 1e-06
    %v2502 = vadd.f32 %v1708, 1e-06
    %v2503 = vadd.f32 %v1715, 1e-06
    %v2504 = vadd.f32 %v1722, 1e-06
    %v2505 = vadd.f32 %v1729, 1e-06
    %v2506 = vadd.f32 %v1736, 1e-06
    %v2507 = vadd.f32 %v1743, 1e-06
    %v2508 = vadd.f32 %v1750, 1e-06
    %v2509 = vadd.f32 %v1757, 1e-06
    %v2510 = vadd.f32 %v1764, 1e-06
    %v2511 = vadd.f32 %v1771, 1e-06
    %v2512 = vadd.f32 %v1778, 1e-06
    %v2513 = vadd.f32 %v1785, 1e-06
    %v2514 = vadd.f32 %v1792, 1e-06
    %v2515 = vadd.f32 %v1799, 1e-06
    %v2516 = vadd.f32 %v1806, 1e-06
    %v2517 = vadd.f32 %v1813, 1e-06
    %v2518 = vadd.f32 %v1820, 1e-06
    %v2519 = vadd.f32 %v1827, 1e-06
    %v2520 = vadd.f32 %v1834, 1e-06
    %v2521 = vadd.f32 %v1841, 1e-06
    %v2522 = vadd.f32 %v1848, 1e-06
    %v2523 = vadd.f32 %v1855, 1e-06
    %v2524 = vadd.f32 %v1862, 1e-06
    %v2525 = vadd.f32 %v1869, 1e-06
    %v2526 = vadd.f32 %v1876, 1e-06
    %v2527 = vadd.f32 %v1883, 1e-06
    %v2528 = vadd.f32 %v1890, 1e-06
    %v2529 = vadd.f32 %v1897, 1e-06
    %v2530 = vadd.f32 %v1904, 1e-06
    %v2531 = vadd.f32 %v1911, 1e-06
    %v2532 = vadd.f32 %v1918, 1e-06
    %v2533 = vadd.f32 %v1925, 1e-06
    %v2534 = vadd.f32 %v1932, 1e-06
    %v2535 = vadd.f32 %v1939, 1e-06
    %v2536 = vadd.f32 %v1946, 1e-06
    %v2537 = vadd.f32 %v1953, 1e-06
    %v2538 = vadd.f32 %v1960, 1e-06
    %v2539 = vadd.f32 %v1967, 1e-06
    %v2540 = vadd.f32 %v1974, 1e-06
    %v2541 = vadd.f32 %v1981, 1e-06
    %v2542 = vadd.f32 %v1988, 1e-06
    %v2543 = vadd.f32 %v1995, 1e-06
    %v2544 = vadd.f32 %v2002, 1e-06
    %v2545 = vadd.f32 %v2009, 1e-06
    %v2546 = vadd.f32 %v2016, 1e-06
    %v2547 = vadd.f32 %v2023, 1e-06
    %v2548 = vadd.f32 %v2030, 1e-06
    %v2549 = vadd.f32 %v2037, 1e-06
    %v2550 = vadd.f32 %v2044, 1e-06
    %v2551 = vadd.f32 %v2051, 1e-06
    %v2552 = vadd.f32 %v2058, 1e-06
    %v2553 = vadd.f32 %v2065, 1e-06
    %v2554 = vadd.f32 %v2072, 1e-06
    %v2555 = vadd.f32 %v2079, 1e-06
    %v2556 = vadd.f32 %v2086, 1e-06
    %v2557 = vadd.f32 %v2093, 1e-06
    %v2558 = vadd.f32 %v2100, 1e-06
    %v2559 = vadd.f32 %v2107, 1e-06
    %v2560 = vadd.f32 %v2114, 1e-06
    %v2561 = vadd.f32 %v2121, 1e-06
    %v2562 = vadd.f32 %v2128, 1e-06
    %v2563 = vadd.f32 %v2135, 1e-06
    %v2564 = vadd.f32 %v2142, 1e-06
    %v2565 = vadd.f32 %v2149, 1e-06
    %v2566 = vadd.f32 %v2156, 1e-06
    %v2567 = vadd.f32 %v2163, 1e-06
    %v2568 = vadd.f32 %v2170, 1e-06
    %v2569 = vadd.f32 %v2177, 1e-06
    %v2570 = vadd.f32 %v2184, 1e-06
    %v2571 = vadd.f32 %v2191, 1e-06
    %v2572 = vadd.f32 %v2198, 1e-06
    %v2573 = vadd.f32 %v2205, 1e-06
    %v2574 = vadd.f32 %v2212, 1e-06
    %v2575 = vadd.f32 %v2219, 1e-06
    %v2576 = vadd.f32 %v2226, 1e-06
    %v2577 = vadd.f32 %v2233, 1e-06
    %v2578 = vadd.f32 %v2240, 1e-06
    %v2579 = vadd.f32 %v2247, 1e-06
    %v2580 = vadd.f32 %v2254, 1e-06
    %v2581 = vadd.f32 %v2261, 1e-06
    %v2582 = vadd.f32 %v2268, 1e-06
    %v2583 = vadd.f32 %v2275, 1e-06
    %v2584 = vadd.f32 %v2282, 1e-06
    %v2585 = vadd.f32 %v2289, 1e-06
    %v2586 = vadd.f32 %v2296, 1e-06
    %v2587 = vadd.f32 %v2303, 1e-06
    %v2588 = vadd.f32 %v2310, 1e-06
    %v2589 = vadd.f32 %v2317, 1e-06
    %v2590 = vadd.f32 %v2324, 1e-06
    %v2591 = vadd.f32 %v2331, 1e-06
    %v2592 = vadd.f32 %v2338, 1e-06
    %v2593 = vadd.f32 %v2345, 1e-06
    %v2594 = vadd.f32 %v2352, 1e-06
    %v2595 = vadd.f32 %v2359, 1e-06
    %v2596 = vadd.f32 %v2366, 1e-06
    %v2597 = vadd.f32 %v2373, 1e-06
    %v2598 = vadd.f32 %v2380, 1e-06
    %v2599 = vadd.f32 %v2387, 1e-06
    %v2600 = vadd.f32 %v2394, 1e-06
    %v2601 = vadd.f32 %v2401, 1e-06
    %v2602 = vadd.f32 %v2408, 1e-06
    %v2603 = vadd.f32 %v2415, 1e-06
    %v2604 = vadd.f32 %v2422, 1e-06
    %v2605 = vadd.f32 %v2429, 1e-06
    %v2606 = vadd.f32 %v2436, 1e-06
    %v2607 = vadd.f32 %v2443, 1e-06
    %v2608 = vadd.f32 %v2450, 1e-06
    %v2609 = vadd.f32 %v2457, 1e-06
    %v2610 = vadd.f32 %v2464, 1e-06
    %v2611 = vadd.f32 %v2471, 1e-06
    %v2612 = vadd.f32 %v2478, 1e-06
    %v2613 = vadd.f32 %v2485, 1e-06
    %v2614 = vrcp.pop %v2486
    %v2615 = vrcp.pop %v2487
    %v2616 = vrcp.pop %v2488
    %v2617 = vrcp.pop %v2489
    %v2618 = vrcp.pop %v2490
    %v2619 = vrcp.pop %v2491
    %v2620 = vrcp.pop %v2492
    %v2621 = vrcp.pop %v2493
    %v2622 = vrcp.pop %v2494
    %v2623 = vrcp.pop %v2495
    %v2624 = vrcp.pop %v2496
    %v2625 = vrcp.pop %v2497
    %v2626 = vrcp.pop %v2498
    %v2627 = vrcp.pop %v2499
    %v2628 = vrcp.pop %v2500
    %v2629 = vrcp.pop %v2501
    %v2630 = vrcp.pop %v2502
    %v2631 = vrcp.pop %v2503
    %v2632 = vrcp.pop %v2504
    %v2633 = vrcp.pop %v2505
    %v2634 = vrcp.pop %v2506
    %v2635 = vrcp.pop %v2507
    %v2636 = vrcp.pop %v2508
    %v2637 = vrcp.pop %v2509
    %v2638 = vrcp.pop %v2510
    %v2639 = vrcp.pop %v2511
    %v2640 = vrcp.pop %v2512
    %v2641 = vrcp.pop %v2513
    %v2642 = vrcp.pop %v2514
    %v2643 = vrcp.pop %v2515
    %v2644 = vrcp.pop %v2516
    %v2645 = vrcp.pop %v2517
    %v2646 = vrcp.pop %v2518
    %v2647 = vrcp.pop %v2519
    %v2648 = vrcp.pop %v2520
    %v2649 = vrcp.pop %v2521
    %v2650 = vrcp.pop %v2522
    %v2651 = vrcp.pop %v2523
    %v2652 = vrcp.pop %v2524
    %v2653 = vrcp.pop %v2525
    %v2654 = vrcp.pop %v2526
    %v2655 = vrcp.pop %v2527
    %v2656 = vrcp.pop %v2528
    %v2657 = vrcp.pop %v2529
    %v2658 = vrcp.pop %v2530
    %v2659 = vrcp.pop %v2531
    %v2660 = vrcp.pop %v2532
    %v2661 = vrcp.pop %v2533
    %v2662 = vrcp.pop %v2534
    %v2663 = vrcp.pop %v2535
    %v2664 = vrcp.pop %v2536
    %v2665 = vrcp.pop %v2537
    %v2666 = vrcp.pop %v2538
    %v2667 = vrcp.pop %v2539
    %v2668 = vrcp.pop %v2540
    %v2669 = vrcp.pop %v2541
    %v2670 = vrcp.pop %v2542
    %v2671 = vrcp.pop %v2543
    %v2672 = vrcp.pop %v2544
    %v2673 = vrcp.pop %v2545
    %v2674 = vrcp.pop %v2546
    %v2675 = vrcp.pop %v2547
    %v2676 = vrcp.pop %v2548
    %v2677 = vrcp.pop %v2549
    %v2678 = vrcp.pop %v2550
    %v2679 = vrcp.pop %v2551
    %v2680 = vrcp.pop %v2552
    %v2681 = vrcp.pop %v2553
    %v2682 = vrcp.pop %v2554
    %v2683 = vrcp.pop %v2555
    %v2684 = vrcp.pop %v2556
    %v2685 = vrcp.pop %v2557
    %v2686 = vrcp.pop %v2558
    %v2687 = vrcp.pop %v2559
    %v2688 = vrcp.pop %v2560
    %v2689 = vrcp.pop %v2561
    %v2690 = vrcp.pop %v2562
    %v2691 = vrcp.pop %v2563
    %v2692 = vrcp.pop %v2564
    %v2693 = vrcp.pop %v2565
    %v2694 = vrcp.pop %v2566
    %v2695 = vrcp.pop %v2567
    %v2696 = vrcp.pop %v2568
    %v2697 = vrcp.pop %v2569
    %v2698 = vrcp.pop %v2570
    %v2699 = vrcp.pop %v2571
    %v2700 = vrcp.pop %v2572
    %v2701 = vrcp.pop %v2573
    %v2702 = vrcp.pop %v2574
    %v2703 = vrcp.pop %v2575
    %v2704 = vrcp.pop %v2576
    %v2705 = vrcp.pop %v2577
    %v2706 = vrcp.pop %v2578
    %v2707 = vrcp.pop %v2579
    %v2708 = vrcp.pop %v2580
    %v2709 = vrcp.pop %v2581
    %v2710 = vrcp.pop %v2582
    %v2711 = vrcp.pop %v2583
    %v2712 = vrcp.pop %v2584
    %v2713 = vrcp.pop %v2585
    %v2714 = vrcp.pop %v2586
    %v2715 = vrcp.pop %v2587
    %v2716 = vrcp.pop %v2588
    %v2717 = vrcp.pop %v2589
    %v2718 = vrcp.pop %v2590
    %v2719 = vrcp.pop %v2591
    %v2720 = vrcp.pop %v2592
    %v2721 = vrcp.pop %v2593
    %v2722 = vrcp.pop %v2594
    %v2723 = vrcp.pop %v2595
    %v2724 = vrcp.pop %v2596
    %v2725 = vrcp.pop %v2597
    %v2726 = vrcp.pop %v2598
    %v2727 = vrcp.pop %v2599
    %v2728 = vrcp.pop %v2600
    %v2729 = vrcp.pop %v2601
    %v2730 = vrcp.pop %v2602
    %v2731 = vrcp.pop %v2603
    %v2732 = vrcp.pop %v2604
    %v2733 = vrcp.pop %v2605
    %v2734 = vrcp.pop %v2606
    %v2735 = vrcp.pop %v2607
    %v2736 = vrcp.pop %v2608
    %v2737 = vrcp.pop %v2609
    %v2738 = vrcp.pop %v2610
    %v2739 = vrcp.pop %v2611
    %v2740 = vrcp.pop %v2612
    %v2741 = vrcp.pop %v2613
    %v2742 = vld [vmem:[#allocation5] sm:$0x1]
    %v2743 = vld [vmem:[#allocation7] sm:$0x1]
    %v2744 = vsub.f32 %v52, %v821
    %v2745 = vsub.f32 %v53, %v822
    %v2746 = vsub.f32 %v54, %v823
    %v2747 = vsub.f32 %v55, %v824
    %v2748 = vsub.f32 %v56, %v825
    %v2749 = vsub.f32 %v57, %v826
    %v2750 = vsub.f32 %v58, %v827
    %v2751 = vsub.f32 %v59, %v828
    %v2752 = vsub.f32 %v60, %v829
    %v2753 = vsub.f32 %v61, %v830
    %v2754 = vsub.f32 %v62, %v831
    %v2755 = vsub.f32 %v63, %v832
    %v2756 = vsub.f32 %v64, %v833
    %v2757 = vsub.f32 %v65, %v834
    %v2758 = vsub.f32 %v66, %v835
    %v2759 = vsub.f32 %v67, %v836
    %v2760 = vsub.f32 %v68, %v837
    %v2761 = vsub.f32 %v69, %v838
    %v2762 = vsub.f32 %v70, %v839
    %v2763 = vsub.f32 %v71, %v840
    %v2764 = vsub.f32 %v72, %v841
    %v2765 = vsub.f32 %v73, %v842
    %v2766 = vsub.f32 %v74, %v843
    %v2767 = vsub.f32 %v75, %v844
    %v2768 = vsub.f32 %v76, %v845
    %v2769 = vsub.f32 %v77, %v846
    %v2770 = vsub.f32 %v78, %v847
    %v2771 = vsub.f32 %v79, %v848
    %v2772 = vsub.f32 %v80, %v849
    %v2773 = vsub.f32 %v81, %v850
    %v2774 = vsub.f32 %v82, %v851
    %v2775 = vsub.f32 %v83, %v852
    %v2776 = vsub.f32 %v84, %v853
    %v2777 = vsub.f32 %v85, %v854
    %v2778 = vsub.f32 %v86, %v855
    %v2779 = vsub.f32 %v87, %v856
    %v2780 = vsub.f32 %v88, %v857
    %v2781 = vsub.f32 %v89, %v858
    %v2782 = vsub.f32 %v90, %v859
    %v2783 = vsub.f32 %v91, %v860
    %v2784 = vsub.f32 %v92, %v861
    %v2785 = vsub.f32 %v93, %v862
    %v2786 = vsub.f32 %v94, %v863
    %v2787 = vsub.f32 %v95, %v864
    %v2788 = vsub.f32 %v96, %v865
    %v2789 = vsub.f32 %v97, %v866
    %v2790 = vsub.f32 %v98, %v867
    %v2791 = vsub.f32 %v99, %v868
    %v2792 = vsub.f32 %v100, %v869
    %v2793 = vsub.f32 %v101, %v870
    %v2794 = vsub.f32 %v102, %v871
    %v2795 = vsub.f32 %v103, %v872
    %v2796 = vsub.f32 %v104, %v873
    %v2797 = vsub.f32 %v105, %v874
    %v2798 = vsub.f32 %v106, %v875
    %v2799 = vsub.f32 %v107, %v876
    %v2800 = vsub.f32 %v108, %v877
    %v2801 = vsub.f32 %v109, %v878
    %v2802 = vsub.f32 %v110, %v879
    %v2803 = vsub.f32 %v111, %v880
    %v2804 = vsub.f32 %v112, %v881
    %v2805 = vsub.f32 %v113, %v882
    %v2806 = vsub.f32 %v114, %v883
    %v2807 = vsub.f32 %v115, %v884
    %v2808 = vsub.f32 %v116, %v885
    %v2809 = vsub.f32 %v117, %v886
    %v2810 = vsub.f32 %v118, %v887
    %v2811 = vsub.f32 %v119, %v888
    %v2812 = vsub.f32 %v120, %v889
    %v2813 = vsub.f32 %v121, %v890
    %v2814 = vsub.f32 %v122, %v891
    %v2815 = vsub.f32 %v123, %v892
    %v2816 = vsub.f32 %v124, %v893
    %v2817 = vsub.f32 %v125, %v894
    %v2818 = vsub.f32 %v126, %v895
    %v2819 = vsub.f32 %v127, %v896
    %v2820 = vsub.f32 %v128, %v897
    %v2821 = vsub.f32 %v129, %v898
    %v2822 = vsub.f32 %v130, %v899
    %v2823 = vsub.f32 %v131, %v900
    %v2824 = vsub.f32 %v132, %v901
    %v2825 = vsub.f32 %v133, %v902
    %v2826 = vsub.f32 %v134, %v903
    %v2827 = vsub.f32 %v135, %v904
    %v2828 = vsub.f32 %v136, %v905
    %v2829 = vsub.f32 %v137, %v906
    %v2830 = vsub.f32 %v138, %v907
    %v2831 = vsub.f32 %v139, %v908
    %v2832 = vsub.f32 %v140, %v909
    %v2833 = vsub.f32 %v141, %v910
    %v2834 = vsub.f32 %v142, %v911
    %v2835 = vsub.f32 %v143, %v912
    %v2836 = vsub.f32 %v144, %v913
    %v2837 = vsub.f32 %v145, %v914
    %v2838 = vsub.f32 %v146, %v915
    %v2839 = vsub.f32 %v147, %v916
    %v2840 = vsub.f32 %v148, %v917
    %v2841 = vsub.f32 %v149, %v918
    %v2842 = vsub.f32 %v150, %v919
    %v2843 = vsub.f32 %v151, %v920
    %v2844 = vsub.f32 %v152, %v921
    %v2845 = vsub.f32 %v153, %v922
    %v2846 = vsub.f32 %v154, %v923
    %v2847 = vsub.f32 %v155, %v924
    %v2848 = vsub.f32 %v156, %v925
    %v2849 = vsub.f32 %v157, %v926
    %v2850 = vsub.f32 %v158, %v927
    %v2851 = vsub.f32 %v159, %v928
    %v2852 = vsub.f32 %v160, %v929
    %v2853 = vsub.f32 %v161, %v930
    %v2854 = vsub.f32 %v162, %v931
    %v2855 = vsub.f32 %v163, %v932
    %v2856 = vsub.f32 %v164, %v933
    %v2857 = vsub.f32 %v165, %v934
    %v2858 = vsub.f32 %v166, %v935
    %v2859 = vsub.f32 %v167, %v936
    %v2860 = vsub.f32 %v168, %v937
    %v2861 = vsub.f32 %v169, %v938
    %v2862 = vsub.f32 %v170, %v939
    %v2863 = vsub.f32 %v171, %v940
    %v2864 = vsub.f32 %v172, %v941
    %v2865 = vsub.f32 %v173, %v942
    %v2866 = vsub.f32 %v174, %v943
    %v2867 = vsub.f32 %v175, %v944
    %v2868 = vsub.f32 %v176, %v945
    %v2869 = vsub.f32 %v177, %v946
    %v2870 = vsub.f32 %v178, %v947
    %v2871 = vsub.f32 %v179, %v948
    %v2872 = vmul.f32 %v2744, %v2614
    %v2873 = vmul.f32 %v2745, %v2615
    %v2874 = vmul.f32 %v2746, %v2616
    %v2875 = vmul.f32 %v2747, %v2617
    %v2876 = vmul.f32 %v2748, %v2618
    %v2877 = vmul.f32 %v2749, %v2619
    %v2878 = vmul.f32 %v2750, %v2620
    %v2879 = vmul.f32 %v2751, %v2621
    %v2880 = vmul.f32 %v2752, %v2622
    %v2881 = vmul.f32 %v2753, %v2623
    %v2882 = vmul.f32 %v2754, %v2624
    %v2883 = vmul.f32 %v2755, %v2625
    %v2884 = vmul.f32 %v2756, %v2626
    %v2885 = vmul.f32 %v2757, %v2627
    %v2886 = vmul.f32 %v2758, %v2628
    %v2887 = vmul.f32 %v2759, %v2629
    %v2888 = vmul.f32 %v2760, %v2630
    %v2889 = vmul.f32 %v2761, %v2631
    %v2890 = vmul.f32 %v2762, %v2632
    %v2891 = vmul.f32 %v2763, %v2633
    %v2892 = vmul.f32 %v2764, %v2634
    %v2893 = vmul.f32 %v2765, %v2635
    %v2894 = vmul.f32 %v2766, %v2636
    %v2895 = vmul.f32 %v2767, %v2637
    %v2896 = vmul.f32 %v2768, %v2638
    %v2897 = vmul.f32 %v2769, %v2639
    %v2898 = vmul.f32 %v2770, %v2640
    %v2899 = vmul.f32 %v2771, %v2641
    %v2900 = vmul.f32 %v2772, %v2642
    %v2901 = vmul.f32 %v2773, %v2643
    %v2902 = vmul.f32 %v2774, %v2644
    %v2903 = vmul.f32 %v2775, %v2645
    %v2904 = vmul.f32 %v2776, %v2646
    %v2905 = vmul.f32 %v2777, %v2647
    %v2906 = vmul.f32 %v2778, %v2648
    %v2907 = vmul.f32 %v2779, %v2649
    %v2908 = vmul.f32 %v2780, %v2650
    %v2909 = vmul.f32 %v2781, %v2651
    %v2910 = vmul.f32 %v2782, %v2652
    %v2911 = vmul.f32 %v2783, %v2653
    %v2912 = vmul.f32 %v2784, %v2654
    %v2913 = vmul.f32 %v2785, %v2655
    %v2914 = vmul.f32 %v2786, %v2656
    %v2915 = vmul.f32 %v2787, %v2657
    %v2916 = vmul.f32 %v2788, %v2658
    %v2917 = vmul.f32 %v2789, %v2659
    %v2918 = vmul.f32 %v2790, %v2660
    %v2919 = vmul.f32 %v2791, %v2661
    %v2920 = vmul.f32 %v2792, %v2662
    %v2921 = vmul.f32 %v2793, %v2663
    %v2922 = vmul.f32 %v2794, %v2664
    %v2923 = vmul.f32 %v2795, %v2665
    %v2924 = vmul.f32 %v2796, %v2666
    %v2925 = vmul.f32 %v2797, %v2667
    %v2926 = vmul.f32 %v2798, %v2668
    %v2927 = vmul.f32 %v2799, %v2669
    %v2928 = vmul.f32 %v2800, %v2670
    %v2929 = vmul.f32 %v2801, %v2671
    %v2930 = vmul.f32 %v2802, %v2672
    %v2931 = vmul.f32 %v2803, %v2673
    %v2932 = vmul.f32 %v2804, %v2674
    %v2933 = vmul.f32 %v2805, %v2675
    %v2934 = vmul.f32 %v2806, %v2676
    %v2935 = vmul.f32 %v2807, %v2677
    %v2936 = vmul.f32 %v2808, %v2678
    %v2937 = vmul.f32 %v2809, %v2679
    %v2938 = vmul.f32 %v2810, %v2680
    %v2939 = vmul.f32 %v2811, %v2681
    %v2940 = vmul.f32 %v2812, %v2682
    %v2941 = vmul.f32 %v2813, %v2683
    %v2942 = vmul.f32 %v2814, %v2684
    %v2943 = vmul.f32 %v2815, %v2685
    %v2944 = vmul.f32 %v2816, %v2686
    %v2945 = vmul.f32 %v2817, %v2687
    %v2946 = vmul.f32 %v2818, %v2688
    %v2947 = vmul.f32 %v2819, %v2689
    %v2948 = vmul.f32 %v2820, %v2690
    %v2949 = vmul.f32 %v2821, %v2691
    %v2950 = vmul.f32 %v2822, %v2692
    %v2951 = vmul.f32 %v2823, %v2693
    %v2952 = vmul.f32 %v2824, %v2694
    %v2953 = vmul.f32 %v2825, %v2695
    %v2954 = vmul.f32 %v2826, %v2696
    %v2955 = vmul.f32 %v2827, %v2697
    %v2956 = vmul.f32 %v2828, %v2698
    %v2957 = vmul.f32 %v2829, %v2699
    %v2958 = vmul.f32 %v2830, %v2700
    %v2959 = vmul.f32 %v2831, %v2701
    %v2960 = vmul.f32 %v2832, %v2702
    %v2961 = vmul.f32 %v2833, %v2703
    %v2962 = vmul.f32 %v2834, %v2704
    %v2963 = vmul.f32 %v2835, %v2705
    %v2964 = vmul.f32 %v2836, %v2706
    %v2965 = vmul.f32 %v2837, %v2707
    %v2966 = vmul.f32 %v2838, %v2708
    %v2967 = vmul.f32 %v2839, %v2709
    %v2968 = vmul.f32 %v2840, %v2710
    %v2969 = vmul.f32 %v2841, %v2711
    %v2970 = vmul.f32 %v2842, %v2712
    %v2971 = vmul.f32 %v2843, %v2713
    %v2972 = vmul.f32 %v2844, %v2714
    %v2973 = vmul.f32 %v2845, %v2715
    %v2974 = vmul.f32 %v2846, %v2716
    %v2975 = vmul.f32 %v2847, %v2717
    %v2976 = vmul.f32 %v2848, %v2718
    %v2977 = vmul.f32 %v2849, %v2719
    %v2978 = vmul.f32 %v2850, %v2720
    %v2979 = vmul.f32 %v2851, %v2721
    %v2980 = vmul.f32 %v2852, %v2722
    %v2981 = vmul.f32 %v2853, %v2723
    %v2982 = vmul.f32 %v2854, %v2724
    %v2983 = vmul.f32 %v2855, %v2725
    %v2984 = vmul.f32 %v2856, %v2726
    %v2985 = vmul.f32 %v2857, %v2727
    %v2986 = vmul.f32 %v2858, %v2728
    %v2987 = vmul.f32 %v2859, %v2729
    %v2988 = vmul.f32 %v2860, %v2730
    %v2989 = vmul.f32 %v2861, %v2731
    %v2990 = vmul.f32 %v2862, %v2732
    %v2991 = vmul.f32 %v2863, %v2733
    %v2992 = vmul.f32 %v2864, %v2734
    %v2993 = vmul.f32 %v2865, %v2735
    %v2994 = vmul.f32 %v2866, %v2736
    %v2995 = vmul.f32 %v2867, %v2737
    %v2996 = vmul.f32 %v2868, %v2738
    %v2997 = vmul.f32 %v2869, %v2739
    %v2998 = vmul.f32 %v2870, %v2740
    %v2999 = vmul.f32 %v2871, %v2741
    %v3001 = vlaneseq
    %v3002 = vshrl.u32 %v3001, 7
    %v3003 = vsub.s32 0, %v3002
    %v3004 = vrot.slane %v2742, %v3003
    %v3006 = vmul.f32 %v2872, %v3004
    %v3007 = vmul.f32 %v2873, %v3004
    %v3008 = vmul.f32 %v2874, %v3004
    %v3009 = vmul.f32 %v2875, %v3004
    %v3010 = vmul.f32 %v2876, %v3004
    %v3011 = vmul.f32 %v2877, %v3004
    %v3012 = vmul.f32 %v2878, %v3004
    %v3013 = vmul.f32 %v2879, %v3004
    %v3014 = vmul.f32 %v2880, %v3004
    %v3015 = vmul.f32 %v2881, %v3004
    %v3016 = vmul.f32 %v2882, %v3004
    %v3017 = vmul.f32 %v2883, %v3004
    %v3018 = vmul.f32 %v2884, %v3004
    %v3019 = vmul.f32 %v2885, %v3004
    %v3020 = vmul.f32 %v2886, %v3004
    %v3021 = vmul.f32 %v2887, %v3004
    %v3022 = vmul.f32 %v2888, %v3004
    %v3023 = vmul.f32 %v2889, %v3004
    %v3024 = vmul.f32 %v2890, %v3004
    %v3025 = vmul.f32 %v2891, %v3004
    %v3026 = vmul.f32 %v2892, %v3004
    %v3027 = vmul.f32 %v2893, %v3004
    %v3028 = vmul.f32 %v2894, %v3004
    %v3029 = vmul.f32 %v2895, %v3004
    %v3030 = vmul.f32 %v2896, %v3004
    %v3031 = vmul.f32 %v2897, %v3004
    %v3032 = vmul.f32 %v2898, %v3004
    %v3033 = vmul.f32 %v2899, %v3004
    %v3034 = vmul.f32 %v2900, %v3004
    %v3035 = vmul.f32 %v2901, %v3004
    %v3036 = vmul.f32 %v2902, %v3004
    %v3037 = vmul.f32 %v2903, %v3004
    %v3038 = vmul.f32 %v2904, %v3004
    %v3039 = vmul.f32 %v2905, %v3004
    %v3040 = vmul.f32 %v2906, %v3004
    %v3041 = vmul.f32 %v2907, %v3004
    %v3042 = vmul.f32 %v2908, %v3004
    %v3043 = vmul.f32 %v2909, %v3004
    %v3044 = vmul.f32 %v2910, %v3004
    %v3045 = vmul.f32 %v2911, %v3004
    %v3046 = vmul.f32 %v2912, %v3004
    %v3047 = vmul.f32 %v2913, %v3004
    %v3048 = vmul.f32 %v2914, %v3004
    %v3049 = vmul.f32 %v2915, %v3004
    %v3050 = vmul.f32 %v2916, %v3004
    %v3051 = vmul.f32 %v2917, %v3004
    %v3052 = vmul.f32 %v2918, %v3004
    %v3053 = vmul.f32 %v2919, %v3004
    %v3054 = vmul.f32 %v2920, %v3004
    %v3055 = vmul.f32 %v2921, %v3004
    %v3056 = vmul.f32 %v2922, %v3004
    %v3057 = vmul.f32 %v2923, %v3004
    %v3058 = vmul.f32 %v2924, %v3004
    %v3059 = vmul.f32 %v2925, %v3004
    %v3060 = vmul.f32 %v2926, %v3004
    %v3061 = vmul.f32 %v2927, %v3004
    %v3062 = vmul.f32 %v2928, %v3004
    %v3063 = vmul.f32 %v2929, %v3004
    %v3064 = vmul.f32 %v2930, %v3004
    %v3065 = vmul.f32 %v2931, %v3004
    %v3066 = vmul.f32 %v2932, %v3004
    %v3067 = vmul.f32 %v2933, %v3004
    %v3068 = vmul.f32 %v2934, %v3004
    %v3069 = vmul.f32 %v2935, %v3004
    %v3070 = vmul.f32 %v2936, %v3004
    %v3071 = vmul.f32 %v2937, %v3004
    %v3072 = vmul.f32 %v2938, %v3004
    %v3073 = vmul.f32 %v2939, %v3004
    %v3074 = vmul.f32 %v2940, %v3004
    %v3075 = vmul.f32 %v2941, %v3004
    %v3076 = vmul.f32 %v2942, %v3004
    %v3077 = vmul.f32 %v2943, %v3004
    %v3078 = vmul.f32 %v2944, %v3004
    %v3079 = vmul.f32 %v2945, %v3004
    %v3080 = vmul.f32 %v2946, %v3004
    %v3081 = vmul.f32 %v2947, %v3004
    %v3082 = vmul.f32 %v2948, %v3004
    %v3083 = vmul.f32 %v2949, %v3004
    %v3084 = vmul.f32 %v2950, %v3004
    %v3085 = vmul.f32 %v2951, %v3004
    %v3086 = vmul.f32 %v2952, %v3004
    %v3087 = vmul.f32 %v2953, %v3004
    %v3088 = vmul.f32 %v2954, %v3004
    %v3089 = vmul.f32 %v2955, %v3004
    %v3090 = vmul.f32 %v2956, %v3004
    %v3091 = vmul.f32 %v2957, %v3004
    %v3092 = vmul.f32 %v2958, %v3004
    %v3093 = vmul.f32 %v2959, %v3004
    %v3094 = vmul.f32 %v2960, %v3004
    %v3095 = vmul.f32 %v2961, %v3004
    %v3096 = vmul.f32 %v2962, %v3004
    %v3097 = vmul.f32 %v2963, %v3004
    %v3098 = vmul.f32 %v2964, %v3004
    %v3099 = vmul.f32 %v2965, %v3004
    %v3100 = vmul.f32 %v2966, %v3004
    %v3101 = vmul.f32 %v2967, %v3004
    %v3102 = vmul.f32 %v2968, %v3004
    %v3103 = vmul.f32 %v2969, %v3004
    %v3104 = vmul.f32 %v2970, %v3004
    %v3105 = vmul.f32 %v2971, %v3004
    %v3106 = vmul.f32 %v2972, %v3004
    %v3107 = vmul.f32 %v2973, %v3004
    %v3108 = vmul.f32 %v2974, %v3004
    %v3109 = vmul.f32 %v2975, %v3004
    %v3110 = vmul.f32 %v2976, %v3004
    %v3111 = vmul.f32 %v2977, %v3004
    %v3112 = vmul.f32 %v2978, %v3004
    %v3113 = vmul.f32 %v2979, %v3004
    %v3114 = vmul.f32 %v2980, %v3004
    %v3115 = vmul.f32 %v2981, %v3004
    %v3116 = vmul.f32 %v2982, %v3004
    %v3117 = vmul.f32 %v2983, %v3004
    %v3118 = vmul.f32 %v2984, %v3004
    %v3119 = vmul.f32 %v2985, %v3004
    %v3120 = vmul.f32 %v2986, %v3004
    %v3121 = vmul.f32 %v2987, %v3004
    %v3122 = vmul.f32 %v2988, %v3004
    %v3123 = vmul.f32 %v2989, %v3004
    %v3124 = vmul.f32 %v2990, %v3004
    %v3125 = vmul.f32 %v2991, %v3004
    %v3126 = vmul.f32 %v2992, %v3004
    %v3127 = vmul.f32 %v2993, %v3004
    %v3128 = vmul.f32 %v2994, %v3004
    %v3129 = vmul.f32 %v2995, %v3004
    %v3130 = vmul.f32 %v2996, %v3004
    %v3131 = vmul.f32 %v2997, %v3004
    %v3132 = vmul.f32 %v2998, %v3004
    %v3133 = vmul.f32 %v2999, %v3004
    %v3135 = vlaneseq
    %v3136 = vshrl.u32 %v3135, 7
    %v3137 = vsub.s32 0, %v3136
    %v3138 = vrot.slane %v2743, %v3137
    %v3140 = vadd.f32 %v3006, %v3138
    %v3141 = vadd.f32 %v3007, %v3138
    %v3142 = vadd.f32 %v3008, %v3138
    %v3143 = vadd.f32 %v3009, %v3138
    %v3144 = vadd.f32 %v3010, %v3138
    %v3145 = vadd.f32 %v3011, %v3138
    %v3146 = vadd.f32 %v3012, %v3138
    %v3147 = vadd.f32 %v3013, %v3138
    %v3148 = vadd.f32 %v3014, %v3138
    %v3149 = vadd.f32 %v3015, %v3138
    %v3150 = vadd.f32 %v3016, %v3138
    %v3151 = vadd.f32 %v3017, %v3138
    %v3152 = vadd.f32 %v3018, %v3138
    %v3153 = vadd.f32 %v3019, %v3138
    %v3154 = vadd.f32 %v3020, %v3138
    %v3155 = vadd.f32 %v3021, %v3138
    %v3156 = vadd.f32 %v3022, %v3138
    %v3157 = vadd.f32 %v3023, %v3138
    %v3158 = vadd.f32 %v3024, %v3138
    %v3159 = vadd.f32 %v3025, %v3138
    %v3160 = vadd.f32 %v3026, %v3138
    %v3161 = vadd.f32 %v3027, %v3138
    %v3162 = vadd.f32 %v3028, %v3138
    %v3163 = vadd.f32 %v3029, %v3138
    %v3164 = vadd.f32 %v3030, %v3138
    %v3165 = vadd.f32 %v3031, %v3138
    %v3166 = vadd.f32 %v3032, %v3138
    %v3167 = vadd.f32 %v3033, %v3138
    %v3168 = vadd.f32 %v3034, %v3138
    %v3169 = vadd.f32 %v3035, %v3138
    %v3170 = vadd.f32 %v3036, %v3138
    %v3171 = vadd.f32 %v3037, %v3138
    %v3172 = vadd.f32 %v3038, %v3138
    %v3173 = vadd.f32 %v3039, %v3138
    %v3174 = vadd.f32 %v3040, %v3138
    %v3175 = vadd.f32 %v3041, %v3138
    %v3176 = vadd.f32 %v3042, %v3138
    %v3177 = vadd.f32 %v3043, %v3138
    %v3178 = vadd.f32 %v3044, %v3138
    %v3179 = vadd.f32 %v3045, %v3138
    %v3180 = vadd.f32 %v3046, %v3138
    %v3181 = vadd.f32 %v3047, %v3138
    %v3182 = vadd.f32 %v3048, %v3138
    %v3183 = vadd.f32 %v3049, %v3138
    %v3184 = vadd.f32 %v3050, %v3138
    %v3185 = vadd.f32 %v3051, %v3138
    %v3186 = vadd.f32 %v3052, %v3138
    %v3187 = vadd.f32 %v3053, %v3138
    %v3188 = vadd.f32 %v3054, %v3138
    %v3189 = vadd.f32 %v3055, %v3138
    %v3190 = vadd.f32 %v3056, %v3138
    %v3191 = vadd.f32 %v3057, %v3138
    %v3192 = vadd.f32 %v3058, %v3138
    %v3193 = vadd.f32 %v3059, %v3138
    %v3194 = vadd.f32 %v3060, %v3138
    %v3195 = vadd.f32 %v3061, %v3138
    %v3196 = vadd.f32 %v3062, %v3138
    %v3197 = vadd.f32 %v3063, %v3138
    %v3198 = vadd.f32 %v3064, %v3138
    %v3199 = vadd.f32 %v3065, %v3138
    %v3200 = vadd.f32 %v3066, %v3138
    %v3201 = vadd.f32 %v3067, %v3138
    %v3202 = vadd.f32 %v3068, %v3138
    %v3203 = vadd.f32 %v3069, %v3138
    %v3204 = vadd.f32 %v3070, %v3138
    %v3205 = vadd.f32 %v3071, %v3138
    %v3206 = vadd.f32 %v3072, %v3138
    %v3207 = vadd.f32 %v3073, %v3138
    %v3208 = vadd.f32 %v3074, %v3138
    %v3209 = vadd.f32 %v3075, %v3138
    %v3210 = vadd.f32 %v3076, %v3138
    %v3211 = vadd.f32 %v3077, %v3138
    %v3212 = vadd.f32 %v3078, %v3138
    %v3213 = vadd.f32 %v3079, %v3138
    %v3214 = vadd.f32 %v3080, %v3138
    %v3215 = vadd.f32 %v3081, %v3138
    %v3216 = vadd.f32 %v3082, %v3138
    %v3217 = vadd.f32 %v3083, %v3138
    %v3218 = vadd.f32 %v3084, %v3138
    %v3219 = vadd.f32 %v3085, %v3138
    %v3220 = vadd.f32 %v3086, %v3138
    %v3221 = vadd.f32 %v3087, %v3138
    %v3222 = vadd.f32 %v3088, %v3138
    %v3223 = vadd.f32 %v3089, %v3138
    %v3224 = vadd.f32 %v3090, %v3138
    %v3225 = vadd.f32 %v3091, %v3138
    %v3226 = vadd.f32 %v3092, %v3138
    %v3227 = vadd.f32 %v3093, %v3138
    %v3228 = vadd.f32 %v3094, %v3138
    %v3229 = vadd.f32 %v3095, %v3138
    %v3230 = vadd.f32 %v3096, %v3138
    %v3231 = vadd.f32 %v3097, %v3138
    %v3232 = vadd.f32 %v3098, %v3138
    %v3233 = vadd.f32 %v3099, %v3138
    %v3234 = vadd.f32 %v3100, %v3138
    %v3235 = vadd.f32 %v3101, %v3138
    %v3236 = vadd.f32 %v3102, %v3138
    %v3237 = vadd.f32 %v3103, %v3138
    %v3238 = vadd.f32 %v3104, %v3138
    %v3239 = vadd.f32 %v3105, %v3138
    %v3240 = vadd.f32 %v3106, %v3138
    %v3241 = vadd.f32 %v3107, %v3138
    %v3242 = vadd.f32 %v3108, %v3138
    %v3243 = vadd.f32 %v3109, %v3138
    %v3244 = vadd.f32 %v3110, %v3138
    %v3245 = vadd.f32 %v3111, %v3138
    %v3246 = vadd.f32 %v3112, %v3138
    %v3247 = vadd.f32 %v3113, %v3138
    %v3248 = vadd.f32 %v3114, %v3138
    %v3249 = vadd.f32 %v3115, %v3138
    %v3250 = vadd.f32 %v3116, %v3138
    %v3251 = vadd.f32 %v3117, %v3138
    %v3252 = vadd.f32 %v3118, %v3138
    %v3253 = vadd.f32 %v3119, %v3138
    %v3254 = vadd.f32 %v3120, %v3138
    %v3255 = vadd.f32 %v3121, %v3138
    %v3256 = vadd.f32 %v3122, %v3138
    %v3257 = vadd.f32 %v3123, %v3138
    %v3258 = vadd.f32 %v3124, %v3138
    %v3259 = vadd.f32 %v3125, %v3138
    %v3260 = vadd.f32 %v3126, %v3138
    %v3261 = vadd.f32 %v3127, %v3138
    %v3262 = vadd.f32 %v3128, %v3138
    %v3263 = vadd.f32 %v3129, %v3138
    %v3264 = vadd.f32 %v3130, %v3138
    %v3265 = vadd.f32 %v3131, %v3138
    %v3266 = vadd.f32 %v3132, %v3138
    %v3267 = vadd.f32 %v3133, %v3138
    %3268 = vst [vmem:[#allocation8] sm:$0xff] %v3140
    %3269 = vst [vmem:[#allocation8 + $0x8] sm:$0xff] %v3141
    %3270 = vst [vmem:[#allocation8 + $0x10] sm:$0xff] %v3142
    %3271 = vst [vmem:[#allocation8 + $0x18] sm:$0xff] %v3143
    %3272 = vst [vmem:[#allocation8 + $0x20] sm:$0xff] %v3144
    %3273 = vst [vmem:[#allocation8 + $0x28] sm:$0xff] %v3145
    %3274 = vst [vmem:[#allocation8 + $0x30] sm:$0xff] %v3146
    %3275 = vst [vmem:[#allocation8 + $0x38] sm:$0xff] %v3147
    %3276 = vst [vmem:[#allocation8 + $0x40] sm:$0xff] %v3148
    %3277 = vst [vmem:[#allocation8 + $0x48] sm:$0xff] %v3149
    %3278 = vst [vmem:[#allocation8 + $0x50] sm:$0xff] %v3150
    %3279 = vst [vmem:[#allocation8 + $0x58] sm:$0xff] %v3151
    %3280 = vst [vmem:[#allocation8 + $0x60] sm:$0xff] %v3152
    %3281 = vst [vmem:[#allocation8 + $0x68] sm:$0xff] %v3153
    %3282 = vst [vmem:[#allocation8 + $0x70] sm:$0xff] %v3154
    %3283 = vst [vmem:[#allocation8 + $0x78] sm:$0xff] %v3155
    %3284 = vst [vmem:[#allocation8 + $0x80] sm:$0xff] %v3156
    %3285 = vst [vmem:[#allocation8 + $0x88] sm:$0xff] %v3157
    %3286 = vst [vmem:[#allocation8 + $0x90] sm:$0xff] %v3158
    %3287 = vst [vmem:[#allocation8 + $0x98] sm:$0xff] %v3159
    %3288 = vst [vmem:[#allocation8 + $0xa0] sm:$0xff] %v3160
    %3289 = vst [vmem:[#allocation8 + $0xa8] sm:$0xff] %v3161
    %3290 = vst [vmem:[#allocation8 + $0xb0] sm:$0xff] %v3162
    %3291 = vst [vmem:[#allocation8 + $0xb8] sm:$0xff] %v3163
    %3292 = vst [vmem:[#allocation8 + $0xc0] sm:$0xff] %v3164
    %3293 = vst [vmem:[#allocation8 + $0xc8] sm:$0xff] %v3165
    %3294 = vst [vmem:[#allocation8 + $0xd0] sm:$0xff] %v3166
    %3295 = vst [vmem:[#allocation8 + $0xd8] sm:$0xff] %v3167
    %3296 = vst [vmem:[#allocation8 + $0xe0] sm:$0xff] %v3168
    %3297 = vst [vmem:[#allocation8 + $0xe8] sm:$0xff] %v3169
    %3298 = vst [vmem:[#allocation8 + $0xf0] sm:$0xff] %v3170
    %3299 = vst [vmem:[#allocation8 + $0xf8] sm:$0xff] %v3171
    %3300 = vst [vmem:[#allocation8 + $0x100] sm:$0xff] %v3172
    %3301 = vst [vmem:[#allocation8 + $0x108] sm:$0xff] %v3173
    %3302 = vst [vmem:[#allocation8 + $0x110] sm:$0xff] %v3174
    %3303 = vst [vmem:[#allocation8 + $0x118] sm:$0xff] %v3175
    %3304 = vst [vmem:[#allocation8 + $0x120] sm:$0xff] %v3176
    %3305 = vst [vmem:[#allocation8 + $0x128] sm:$0xff] %v3177
    %3306 = vst [vmem:[#allocation8 + $0x130] sm:$0xff] %v3178
    %3307 = vst [vmem:[#allocation8 + $0x138] sm:$0xff] %v3179
    %3308 = vst [vmem:[#allocation8 + $0x140] sm:$0xff] %v3180
    %3309 = vst [vmem:[#allocation8 + $0x148] sm:$0xff] %v3181
    %3310 = vst [vmem:[#allocation8 + $0x150] sm:$0xff] %v3182
    %3311 = vst [vmem:[#allocation8 + $0x158] sm:$0xff] %v3183
    %3312 = vst [vmem:[#allocation8 + $0x160] sm:$0xff] %v3184
    %3313 = vst [vmem:[#allocation8 + $0x168] sm:$0xff] %v3185
    %3314 = vst [vmem:[#allocation8 + $0x170] sm:$0xff] %v3186
    %3315 = vst [vmem:[#allocation8 + $0x178] sm:$0xff] %v3187
    %3316 = vst [vmem:[#allocation8 + $0x180] sm:$0xff] %v3188
    %3317 = vst [vmem:[#allocation8 + $0x188] sm:$0xff] %v3189
    %3318 = vst [vmem:[#allocation8 + $0x190] sm:$0xff] %v3190
    %3319 = vst [vmem:[#allocation8 + $0x198] sm:$0xff] %v3191
    %3320 = vst [vmem:[#allocation8 + $0x1a0] sm:$0xff] %v3192
    %3321 = vst [vmem:[#allocation8 + $0x1a8] sm:$0xff] %v3193
    %3322 = vst [vmem:[#allocation8 + $0x1b0] sm:$0xff] %v3194
    %3323 = vst [vmem:[#allocation8 + $0x1b8] sm:$0xff] %v3195
    %3324 = vst [vmem:[#allocation8 + $0x1c0] sm:$0xff] %v3196
    %3325 = vst [vmem:[#allocation8 + $0x1c8] sm:$0xff] %v3197
    %3326 = vst [vmem:[#allocation8 + $0x1d0] sm:$0xff] %v3198
    %3327 = vst [vmem:[#allocation8 + $0x1d8] sm:$0xff] %v3199
    %3328 = vst [vmem:[#allocation8 + $0x1e0] sm:$0xff] %v3200
    %3329 = vst [vmem:[#allocation8 + $0x1e8] sm:$0xff] %v3201
    %3330 = vst [vmem:[#allocation8 + $0x1f0] sm:$0xff] %v3202
    %3331 = vst [vmem:[#allocation8 + $0x1f8] sm:$0xff] %v3203
    %3332 = vst [vmem:[#allocation8 + $0x200] sm:$0xff] %v3204
    %3333 = vst [vmem:[#allocation8 + $0x208] sm:$0xff] %v3205
    %3334 = vst [vmem:[#allocation8 + $0x210] sm:$0xff] %v3206
    %3335 = vst [vmem:[#allocation8 + $0x218] sm:$0xff] %v3207
    %3336 = vst [vmem:[#allocation8 + $0x220] sm:$0xff] %v3208
    %3337 = vst [vmem:[#allocation8 + $0x228] sm:$0xff] %v3209
    %3338 = vst [vmem:[#allocation8 + $0x230] sm:$0xff] %v3210
    %3339 = vst [vmem:[#allocation8 + $0x238] sm:$0xff] %v3211
    %3340 = vst [vmem:[#allocation8 + $0x240] sm:$0xff] %v3212
    %3341 = vst [vmem:[#allocation8 + $0x248] sm:$0xff] %v3213
    %3342 = vst [vmem:[#allocation8 + $0x250] sm:$0xff] %v3214
    %3343 = vst [vmem:[#allocation8 + $0x258] sm:$0xff] %v3215
    %3344 = vst [vmem:[#allocation8 + $0x260] sm:$0xff] %v3216
    %3345 = vst [vmem:[#allocation8 + $0x268] sm:$0xff] %v3217
    %3346 = vst [vmem:[#allocation8 + $0x270] sm:$0xff] %v3218
    %3347 = vst [vmem:[#allocation8 + $0x278] sm:$0xff] %v3219
    %3348 = vst [vmem:[#allocation8 + $0x280] sm:$0xff] %v3220
    %3349 = vst [vmem:[#allocation8 + $0x288] sm:$0xff] %v3221
    %3350 = vst [vmem:[#allocation8 + $0x290] sm:$0xff] %v3222
    %3351 = vst [vmem:[#allocation8 + $0x298] sm:$0xff] %v3223
    %3352 = vst [vmem:[#allocation8 + $0x2a0] sm:$0xff] %v3224
    %3353 = vst [vmem:[#allocation8 + $0x2a8] sm:$0xff] %v3225
    %3354 = vst [vmem:[#allocation8 + $0x2b0] sm:$0xff] %v3226
    %3355 = vst [vmem:[#allocation8 + $0x2b8] sm:$0xff] %v3227
    %3356 = vst [vmem:[#allocation8 + $0x2c0] sm:$0xff] %v3228
    %3357 = vst [vmem:[#allocation8 + $0x2c8] sm:$0xff] %v3229
    %3358 = vst [vmem:[#allocation8 + $0x2d0] sm:$0xff] %v3230
    %3359 = vst [vmem:[#allocation8 + $0x2d8] sm:$0xff] %v3231
    %3360 = vst [vmem:[#allocation8 + $0x2e0] sm:$0xff] %v3232
    %3361 = vst [vmem:[#allocation8 + $0x2e8] sm:$0xff] %v3233
    %3362 = vst [vmem:[#allocation8 + $0x2f0] sm:$0xff] %v3234
    %3363 = vst [vmem:[#allocation8 + $0x2f8] sm:$0xff] %v3235
    %3364 = vst [vmem:[#allocation8 + $0x300] sm:$0xff] %v3236
    %3365 = vst [vmem:[#allocation8 + $0x308] sm:$0xff] %v3237
    %3366 = vst [vmem:[#allocation8 + $0x310] sm:$0xff] %v3238
    %3367 = vst [vmem:[#allocation8 + $0x318] sm:$0xff] %v3239
    %3368 = vst [vmem:[#allocation8 + $0x320] sm:$0xff] %v3240
    %3369 = vst [vmem:[#allocation8 + $0x328] sm:$0xff] %v3241
    %3370 = vst [vmem:[#allocation8 + $0x330] sm:$0xff] %v3242
    %3371 = vst [vmem:[#allocation8 + $0x338] sm:$0xff] %v3243
    %3372 = vst [vmem:[#allocation8 + $0x340] sm:$0xff] %v3244
    %3373 = vst [vmem:[#allocation8 + $0x348] sm:$0xff] %v3245
    %3374 = vst [vmem:[#allocation8 + $0x350] sm:$0xff] %v3246
    %3375 = vst [vmem:[#allocation8 + $0x358] sm:$0xff] %v3247
    %3376 = vst [vmem:[#allocation8 + $0x360] sm:$0xff] %v3248
    %3377 = vst [vmem:[#allocation8 + $0x368] sm:$0xff] %v3249
    %3378 = vst [vmem:[#allocation8 + $0x370] sm:$0xff] %v3250
    %3379 = vst [vmem:[#allocation8 + $0x378] sm:$0xff] %v3251
    %3380 = vst [vmem:[#allocation8 + $0x380] sm:$0xff] %v3252
    %3381 = vst [vmem:[#allocation8 + $0x388] sm:$0xff] %v3253
    %3382 = vst [vmem:[#allocation8 + $0x390] sm:$0xff] %v3254
    %3383 = vst [vmem:[#allocation8 + $0x398] sm:$0xff] %v3255
    %3384 = vst [vmem:[#allocation8 + $0x3a0] sm:$0xff] %v3256
    %3385 = vst [vmem:[#allocation8 + $0x3a8] sm:$0xff] %v3257
    %3386 = vst [vmem:[#allocation8 + $0x3b0] sm:$0xff] %v3258
    %3387 = vst [vmem:[#allocation8 + $0x3b8] sm:$0xff] %v3259
    %3388 = vst [vmem:[#allocation8 + $0x3c0] sm:$0xff] %v3260
    %3389 = vst [vmem:[#allocation8 + $0x3c8] sm:$0xff] %v3261
    %3390 = vst [vmem:[#allocation8 + $0x3d0] sm:$0xff] %v3262
    %3391 = vst [vmem:[#allocation8 + $0x3d8] sm:$0xff] %v3263
    %3392 = vst [vmem:[#allocation8 + $0x3e0] sm:$0xff] %v3264
    %3393 = vst [vmem:[#allocation8 + $0x3e8] sm:$0xff] %v3265
    %3394 = vst [vmem:[#allocation8 + $0x3f0] sm:$0xff] %v3266
    %3395 = vst [vmem:[#allocation8 + $0x3f8] sm:$0xff] %v3267
    // Predicated region
    $region26: #{tpu_custom_call.1} parent=1 // pred_check
      _
    $region27: #{tpu_custom_call.1} parent=1 // pred_check_branch
      %3397 = sbr.rel (0) target = $region29
    $region28: #{tpu_custom_call.1} parent=1 // pred_region
      %s3399 = ssub.s32 16384, 16384
      %3400 = vsyncadd [#allocation4], %s3399
      %s3401 = sshll.u32 [#allocation8], 4
      %s3402 = int_to_ptr.vmem [resolvable:$true] %s3401
      %3407 = dma.vmem_to_hbm [thread:$0]  %s3402, 16384, %s3, [#allocation4], 128, 128, 8
    $region29: #{tpu_custom_call.1} parent=1 // pred_fallthru
      _
    // Predicated region
    $region30: #{tpu_custom_call.1} parent=1 // pred_check
      _
    $region31: #{tpu_custom_call.1} parent=1 // pred_check_branch
      %3409 = sbr.rel (0) target = $region33
    $region32: #{tpu_custom_call.1} parent=1 // pred_region
      %3410 = dma.done [#allocation4], 16384
    $region33: #{tpu_custom_call.1} parent=1 // pred_fallthru
      _
    %3411 = vsyncpa [#allocation3], 1
    %3412 = vsyncpa [#allocation6], 1
    %3413 = vsyncpa [#allocation4], 1

</llo_original>
